<compile_context>
chip_gen: v6e
topology: v6e:2x2x1
jax: 0.10.0
libtpu: 0.0.40
codegen_flags: <defaults>
</compile_context>

<pallas_src>
import functools

import jax
import jax.numpy as jnp
from jax import lax
from jax.experimental import pallas as pl
from jax.experimental.pallas import tpu as pltpu


# ---------------------------------------------------------------------------
# Helpers
# ---------------------------------------------------------------------------

def _ceil_to(x, m):
    return (x + m - 1) // m * m


def _vmem_limit_bytes():
    cap = 128 * 1024 * 1024
    try:
        info = pltpu.get_tpu_info()
        cap = int(getattr(info, "vmem_capacity_bytes", cap))
    except Exception:
        pass
    # Leave headroom: half of physical VMEM, capped at 64 MiB (v7x has 64 MiB).
    return min(cap // 2, 64 * 1024 * 1024)


# ---------------------------------------------------------------------------
# Pallas kernels
# ---------------------------------------------------------------------------

def _conv_kernel(x_ref, w_ref, b_ref, o_ref, zacc_ref, *, K, OH, OW, Wy, Cp,
                 negative_slope, apply_act):
    """Valid stride-1 KxK conv + bias + LeakyReLU on one image.

    x_ref    : (1, Hy*Wy, Cx)  bf16   flattened, zero-padded activation
    w_ref    : (K, Cx, K*Cp)   bf16   per-qh slabs; lane group qw holds W[qh,qw]
    b_ref    : (1, Cp)         f32
    o_ref    : (1, OH, OW, Cp)
    zacc_ref : (OH*Wy, K*Cp)   f32    MXU accumulator (VMEM scratch)
    """
    # --- K whole-band matmuls: M = OH*Wy, contraction = Cx, N = K*Cp ---------
    for qh in range(K):                                   # static, fully unrolled
        lhs = x_ref[0, qh * Wy:(qh + OH) * Wy, :]         # (OH*Wy, Cx) bf16
        z = jnp.dot(lhs, w_ref[qh], preferred_element_type=jnp.float32)
        if qh == 0:
            zacc_ref[...] = z
        else:
            zacc_ref[...] += z

    # --- qw shift-reduce + bias + LeakyReLU, one lane-dense store per row ----
    bias = b_ref[...]                                     # (1, Cp) f32
    for oh in range(OH):                                  # static, fully unrolled
        base = oh * Wy
        acc = zacc_ref[base:base + OW, 0:Cp]
        for qw in range(1, K):
            acc = acc + zacc_ref[base + qw:base + qw + OW,
                                 qw * Cp:(qw + 1) * Cp]
        acc = acc + bias
        if apply_act:
            acc = jnp.where(acc >= 0.0, acc, jnp.float32(negative_slope) * acc)
        o_ref[0, oh] = acc.astype(o_ref.dtype)


def _avgpool_kernel(xee_ref, xeo_ref, xoe_ref, xoo_ref, o_ref, *, H, W, OH, OW):
    """AvgPool2d(3, stride=2, padding=1, count_include_pad=False).

    Inputs are the 4 row/col parity planes of the zero-padded image, so every
    one of the 9 taps is a contiguous slice (no strided access).
    """
    parts = (xee_ref, xeo_ref, xoe_ref, xoo_ref)
    C = o_ref.shape[-1]
    acc = jnp.zeros((OH, OW, C), jnp.float32)
    for kh in range(3):
        for kw in range(3):
            src = parts[(kh % 2) * 2 + (kw % 2)]
            ro, co = kh // 2, kw // 2
            acc = acc + src[0, ro:ro + OH, co:co + OW, :].astype(jnp.float32)

    # count_include_pad=False divisor: counts are in {4, 6, 9}; select constant
    # reciprocals (no per-element f32 divide).
    ih = lax.broadcasted_iota(jnp.int32, (OH, OW, 1), 0)
    iw = lax.broadcasted_iota(jnp.int32, (OH, OW, 1), 1)
    ch = jnp.minimum(2 * ih + 2, H) - jnp.maximum(2 * ih - 1, 0)
    cw = jnp.minimum(2 * iw + 2, W) - jnp.maximum(2 * iw - 1, 0)
    cnt = ch * cw
    recip = jnp.where(cnt == 9, jnp.float32(1.0 / 9.0),
                      jnp.where(cnt == 6, jnp.float32(1.0 / 6.0),
                                jnp.float32(0.25)))
    o_ref[0] = (acc * recip).astype(o_ref.dtype)


# ---------------------------------------------------------------------------
# Wrappers (pad / space-to-depth glue + pallas_call)
# ---------------------------------------------------------------------------

def conv2d_sn_lrelu(x_nhwc, w_qh, b2, *, stride, apply_act,
                    negative_slope=0.2, kh=4, pad=2):
    """SpectralNorm(Conv2d(k=4, stride, padding=2)) [+ LeakyReLU(0.2)]."""
    N, H, W, C = x_nhwc.shape
    OH = (H + 2 * pad - kh) // stride + 1
    OW = (W + 2 * pad - kh) // stride + 1
    K = 2 if stride == 2 else kh
    KCp = w_qh.shape[-1]
    Cp = KCp // K                                  # 128-padded output channels

    xp = jnp.pad(x_nhwc, ((0, 0), (pad, pad), (pad, pad), (0, 0)))
    if stride == 2:
        # stride-2 4x4 conv == stride-1 2x2 conv on the space-to-depth input.
        Hp, Wp = H + 2 * pad, W + 2 * pad
        Hp2, Wp2 = _ceil_to(Hp, 2), _ceil_to(Wp, 2)
        xp = jnp.pad(xp, ((0, 0), (0, Hp2 - Hp), (0, Wp2 - Wp), (0, 0)))
        xp = xp.reshape(N, Hp2 // 2, 2, Wp2 // 2, 2, C)
        xp = xp.transpose(0, 1, 3, 2, 4, 5).reshape(N, Hp2 // 2, Wp2 // 2, 4 * C)

    _, Hy, Wy0, Cx = xp.shape
    Wy = _ceil_to(Wy0, 8)              # sublane-aligned bands, zero fill unused
    if Wy != Wy0:
        xp = jnp.pad(xp, ((0, 0), (0, 0), (0, Wy - Wy0), (0, 0)))
    assert Hy >= OH + K - 1 and Wy >= OW + K - 1
    assert w_qh.shape == (K, Cx, KCp), (w_qh.shape, (K, Cx, KCp))

    xf = xp.reshape(N, Hy * Wy, Cx)    # flattened rows -> no in-kernel reshapes

    kern = functools.partial(_conv_kernel, K=K, OH=OH, OW=OW, Wy=Wy, Cp=Cp,
                             negative_slope=negative_slope, apply_act=apply_act)

    flops = 2 * N * K * OH * Wy * Cx * KCp
    bytes_accessed = (xf.size + w_qh.size + N * OH * OW * Cp) * 2 + b2.size * 4

    out = pl.pallas_call(
        kern,
        out_shape=jax.ShapeDtypeStruct((N, OH, OW, Cp), x_nhwc.dtype),
        grid=(N,),
        in_specs=[
            pl.BlockSpec((1, Hy * Wy, Cx), lambda n: (n, 0, 0)),
            pl.BlockSpec((K, Cx, KCp), lambda n: (0, 0, 0)),   # resident weights
            pl.BlockSpec((1, Cp), lambda n: (0, 0)),
        ],
        out_specs=pl.BlockSpec((1, OH, OW, Cp), lambda n: (n, 0, 0, 0)),
        scratch_shapes=[pltpu.VMEM((OH * Wy, KCp), jnp.float32)],
        compiler_params=pltpu.CompilerParams(
            dimension_semantics=("parallel",),
            vmem_limit_bytes=_vmem_limit_bytes()),
        cost_estimate=pl.CostEstimate(flops=flops, transcendentals=0,
                                      bytes_accessed=bytes_accessed),
    )(xf, w_qh, b2)
    return out


def avgpool3_s2(x_nhwc):
    """nn.AvgPool2d(3, stride=2, padding=1, count_include_pad=False)."""
    N, H, W, C = x_nhwc.shape
    OH = (H + 2 - 3) // 2 + 1
    OW = (W + 2 - 3) // 2 + 1
    Hp, Wp = H + 2, W + 2
    Hp2, Wp2 = _ceil_to(Hp, 2), _ceil_to(Wp, 2)
    xp = jnp.pad(x_nhwc, ((0, 0), (1, 1 + Hp2 - Hp), (1, 1 + Wp2 - Wp), (0, 0)))

    # Row/col parity planes -> every pool tap becomes a contiguous slice.
    xee = xp[:, 0::2, 0::2, :]
    xeo = xp[:, 0::2, 1::2, :]
    xoe = xp[:, 1::2, 0::2, :]
    xoo = xp[:, 1::2, 1::2, :]
    Hh, Wh = Hp2 // 2, Wp2 // 2

    kern = functools.partial(_avgpool_kernel, H=H, W=W, OH=OH, OW=OW)
    in_spec = pl.BlockSpec((1, Hh, Wh, C), lambda n: (n, 0, 0, 0))

    out = pl.pallas_call(
        kern,
        out_shape=jax.ShapeDtypeStruct((N, OH, OW, C), x_nhwc.dtype),
        grid=(N,),
        in_specs=[in_spec, in_spec, in_spec, in_spec],
        out_specs=pl.BlockSpec((1, OH, OW, C), lambda n: (n, 0, 0, 0)),
        compiler_params=pltpu.CompilerParams(
            dimension_semantics=("parallel",),
            vmem_limit_bytes=_vmem_limit_bytes()),
        cost_estimate=pl.CostEstimate(
            flops=11 * N * OH * OW * C, transcendentals=0,
            bytes_accessed=(4 * N * Hh * Wh * C + N * OH * OW * C) * 2),
    )(xee, xeo, xoe, xoo)
    return out


# ---------------------------------------------------------------------------
# Parameter setup (deterministic, synthetic) + spectral norm in glue
# ---------------------------------------------------------------------------

def _l2normalize(v, eps=1e-12):
    return v / (jnp.sqrt(jnp.sum(v * v)) + eps)


def make_sn_conv_params(key, cin, cout, stride, *, cin_pad, cout_pad, kh=4, kw=4):
    w_key, u_key, b_key = jax.random.split(key, 3)
    w = jax.random.normal(w_key, (cout, cin, kh, kw), jnp.float32) * 0.05
    b = jax.random.normal(b_key, (cout,), jnp.float32) * 0.01

    # Spectral norm: one power iteration with a deterministic u, applied to the
    # weight at parameter-build time.
    # TODO(synk): torch.nn.utils.spectral_norm keeps a persistent `u` that is
    # updated every forward; a trained torch checkpoint would not match exactly.
    w_mat = w.reshape(cout, -1)
    u = _l2normalize(jax.random.normal(u_key, (cout,), jnp.float32))
    v = _l2normalize(w_mat.T @ u)
    u = _l2normalize(w_mat @ v)
    sigma = u @ (w_mat @ v)
    w_sn = w / sigma

    # (Cout, Cin, KH, KW) -> (KH, KW, Cin_pad, Cout_pad), zero-padded channels so
    # stores/loads are 128-lane dense and padded inputs contribute nothing.
    wt = jnp.transpose(w_sn, (2, 3, 1, 0))
    wt = jnp.pad(wt, ((0, 0), (0, 0), (0, cin_pad - cin), (0, cout_pad - cout)))
    bp = jnp.pad(b, (0, cout_pad - cout))

    if stride == 2:
        # stride-2 4x4 conv == stride-1 2x2 conv on the 2x2 space-to-depth input
        # whose channels are ordered (ph, pw, cin_pad).
        wt = wt.reshape(2, 2, 2, 2, cin_pad, cout_pad)     # (qh, ph, qw, pw, ci, co)
        wt = wt.transpose(0, 2, 1, 3, 4, 5)                # (qh, qw, ph, pw, ci, co)
        wt = wt.reshape(2, 2, 4 * cin_pad, cout_pad)       # (qh, qw, Cx, co)
        K = 2
    else:
        wt = wt.reshape(kh, kw, cin_pad, cout_pad)         # (qh, qw, Cx, co)
        K = kh

    # Merge the K qw taps into the matmul output dim: (K, Cx, K*Cout_pad),
    # lane group qw at offset qw*Cout_pad (matches the kernel's epilogue slices).
    cx = wt.shape[2]
    w_qh = wt.transpose(0, 2, 1, 3).reshape(K, cx, K * cout_pad)

    return (w_qh.astype(jnp.bfloat16),
            bp.reshape(1, cout_pad).astype(jnp.float32))


def build_netD_params(key, input_nc, ndf, n_layers):
    """Layer schedule of one NLayerSNDiscriminator (getIntermFeat=False)."""
    specs = [(input_nc, ndf, 2, True)]                    # conv1 + LeakyReLU
    nf = ndf
    for _ in range(1, n_layers):                          # conv_others + LeakyReLU
        nf_prev, nf = nf, min(nf * 2, 512)
        specs.append((nf_prev, nf, 2, True))
    nf_prev, nf = nf, min(nf * 2, 512)
    specs.append((nf_prev, nf, 1, True))                  # conv_final1 + LeakyReLU
    specs.append((nf, 1, 1, False))                       # conv_final2

    keys = jax.random.split(key, len(specs))
    params = []
    cin_pad = input_nc                                    # raw image channels
    for k, (cin, cout, stride, act) in zip(keys, specs):
        cout_pad = _ceil_to(cout, 128)                    # lane-dense activations
        w_qh, b2 = make_sn_conv_params(k, cin, cout, stride,
                                       cin_pad=cin_pad, cout_pad=cout_pad)
        params.append((w_qh, b2, stride, act, cout))
        cin_pad = cout_pad
    return params


def build_multiscale_params(key, input_nc, ndf, n_layers, num_D):
    keys = jax.random.split(key, num_D)
    return [build_netD_params(k, input_nc, ndf, n_layers) for k in keys]


# ---------------------------------------------------------------------------
# Forward passes
# ---------------------------------------------------------------------------

def netD_forward(params, x_nhwc):
    h = x_nhwc
    for w_qh, b2, stride, act, _ in params:
        h = conv2d_sn_lrelu(h, w_qh, b2, stride=stride, apply_act=act)
    # Intermediate activations stay 128-channel padded; only slice the head.
    return h[..., :params[-1][4]]


def multiscale_sn_discriminator_forward(all_params, x_nchw, num_D):
    """Matches MultiscaleSNDiscriminator.forward (use_sigmoid=False,
    getIntermFeat=False): returns a list of num_D single-element lists (NCHW)."""
    x = jnp.transpose(x_nchw, (0, 2, 3, 1)).astype(jnp.bfloat16)   # NCHW -> NHWC
    results = []
    xd = x
    for i in range(num_D):
        params = all_params[num_D - 1 - i]     # coarse-index D on full-res first
        out = netD_forward(params, xd)
        results.append([jnp.transpose(out.astype(jnp.float32), (0, 3, 1, 2))])
        if i != num_D - 1:
            xd = avgpool3_s2(xd)
    return results


# ---------------------------------------------------------------------------
# Main
# ---------------------------------------------------------------------------

if __name__ == "__main__":
    input_nc, ndf, n_layers, num_D = 3, 16, 3, 3
    N, H, W = 2, 32, 32

    key = jax.random.PRNGKey(0)
    k_params, k_input = jax.random.split(key)

    all_params = build_multiscale_params(k_params, input_nc, ndf, n_layers, num_D)
    x = jax.random.normal(k_input, (N, input_nc, H, W), jnp.float32)

    results = multiscale_sn_discriminator_forward(all_params, x, num_D)

    flat = [t for r in results for t in r]
    jax.block_until_ready(flat)

    # sanity: expected output spatial sizes for 32x32 input: 7x7, 5x5, 4x4
    expected = [(N, 1, 7, 7), (N, 1, 5, 5), (N, 1, 4, 4)]
    assert [tuple(t.shape) for t in flat] == expected, \
        [tuple(t.shape) for t in flat]
    assert all(bool(jnp.all(jnp.isfinite(t))) for t in flat)

    print("KERNEL_OK")
</pallas_src>

<mosaic_0001>
module attributes {stable_mosaic.version = 11 : i64} {
  func.func @_conv_kernel(%arg0: i32, %arg1: memref<1x432x12xbf16, #tpu.memory_space<vmem>>, %arg2: memref<2x12x256xbf16, #tpu.memory_space<vmem>>, %arg3: memref<1x128xf32, #tpu.memory_space<vmem>>, %arg4: memref<1x17x17x128xbf16, #tpu.memory_space<vmem>>, %arg5: memref<408x256xf32, #tpu.memory_space<vmem>>) attributes {dimension_semantics = [#tpu.dimension_semantics<parallel>], iteration_bounds = array<i64: 2>, scalar_prefetch = 0 : i64, scratch_operands = 1 : i64, tpu.core_type = #tpu.core_type<tc>, window_params = [{transform_indices = @transform_0, window_bounds = array<i64: 1, 432, 12>}, {pipeline_mode = #tpu.pipeline_mode<synchronous>, transform_indices = @transform_1, window_bounds = array<i64: 2, 12, 256>}, {pipeline_mode = #tpu.pipeline_mode<synchronous>, transform_indices = @transform_2, window_bounds = array<i64: 1, 128>}, {transform_indices = @transform_3, window_bounds = array<i64: 1, 17, 17, 128>}]} {
    %c0 = arith.constant 0 : index
    %c0_0 = arith.constant 0 : index
    %c0_1 = arith.constant 0 : index
    %0 = vector.load %arg1[%c0, %c0_0, %c0_1] : memref<1x432x12xbf16, #tpu.memory_space<vmem>>, vector<1x408x12xbf16>
    %1 = vector.shape_cast %0 : vector<1x408x12xbf16> to vector<408x12xbf16>
    %c0_2 = arith.constant 0 : index
    %c0_3 = arith.constant 0 : index
    %c0_4 = arith.constant 0 : index
    %2 = vector.load %arg2[%c0_2, %c0_3, %c0_4] : memref<2x12x256xbf16, #tpu.memory_space<vmem>>, vector<1x12x256xbf16>
    %3 = vector.shape_cast %2 : vector<1x12x256xbf16> to vector<12x256xbf16>
    %cst = arith.constant dense<0.000000e+00> : vector<408x256xf32>
    %4 = tpu.matmul %1, %3, %cst {dimension_numbers = #tpu.dot_dimension_numbers<[1], [0], [0], [1], [0, 0, 1, 1], [], []>} : vector<408x12xbf16>, vector<12x256xbf16>, vector<408x256xf32> -> vector<408x256xf32>
    %c0_5 = arith.constant 0 : index
    %c0_6 = arith.constant 0 : index
    %5 = vector.load %arg5[%c0_5, %c0_6] : memref<408x256xf32, #tpu.memory_space<vmem>>, vector<408x256xf32>
    tpu.vector_store %arg5[%c0_5, %c0_6], %4 {strides = array<i32>} : memref<408x256xf32, #tpu.memory_space<vmem>>, vector<408x256xf32>,
    %c0_7 = arith.constant 0 : index
    %c24 = arith.constant 24 : index
    %c0_8 = arith.constant 0 : index
    %6 = vector.load %arg1[%c0_7, %c24, %c0_8] : memref<1x432x12xbf16, #tpu.memory_space<vmem>>, vector<1x408x12xbf16>
    %7 = vector.shape_cast %6 : vector<1x408x12xbf16> to vector<408x12xbf16>
    %c1 = arith.constant 1 : index
    %c0_9 = arith.constant 0 : index
    %c0_10 = arith.constant 0 : index
    %8 = vector.load %arg2[%c1, %c0_9, %c0_10] : memref<2x12x256xbf16, #tpu.memory_space<vmem>>, vector<1x12x256xbf16>
    %9 = vector.shape_cast %8 : vector<1x12x256xbf16> to vector<12x256xbf16>
    %cst_11 = arith.constant dense<0.000000e+00> : vector<408x256xf32>
    %10 = tpu.matmul %7, %9, %cst_11 {dimension_numbers = #tpu.dot_dimension_numbers<[1], [0], [0], [1], [0, 0, 1, 1], [], []>} : vector<408x12xbf16>, vector<12x256xbf16>, vector<408x256xf32> -> vector<408x256xf32>
    %c0_12 = arith.constant 0 : index
    %c0_13 = arith.constant 0 : index
    %11 = vector.load %arg5[%c0_12, %c0_13] : memref<408x256xf32, #tpu.memory_space<vmem>>, vector<408x256xf32>
    %12 = arith.addf %11, %10 : vector<408x256xf32>
    %c0_14 = arith.constant 0 : index
    %c0_15 = arith.constant 0 : index
    %13 = vector.load %arg5[%c0_14, %c0_15] : memref<408x256xf32, #tpu.memory_space<vmem>>, vector<408x256xf32>
    tpu.vector_store %arg5[%c0_14, %c0_15], %12 {strides = array<i32>} : memref<408x256xf32, #tpu.memory_space<vmem>>, vector<408x256xf32>,
    %c0_16 = arith.constant 0 : index
    %c0_17 = arith.constant 0 : index
    %14 = vector.load %arg3[%c0_16, %c0_17] : memref<1x128xf32, #tpu.memory_space<vmem>>, vector<1x128xf32>
    %c0_18 = arith.constant 0 : index
    %c0_19 = arith.constant 0 : index
    %15 = vector.load %arg5[%c0_18, %c0_19] : memref<408x256xf32, #tpu.memory_space<vmem>>, vector<17x128xf32>
    %c1_20 = arith.constant 1 : index
    %c128 = arith.constant 128 : index
    %16 = vector.load %arg5[%c1_20, %c128] : memref<408x256xf32, #tpu.memory_space<vmem>>, vector<17x128xf32>
    %17 = arith.addf %15, %16 : vector<17x128xf32>
    %18 = vector.broadcast %14 : vector<1x128xf32> to vector<17x128xf32>
    %19 = arith.addf %17, %18 : vector<17x128xf32>
    %cst_21 = arith.constant 0.000000e+00 : f32
    %20 = vector.broadcast %cst_21 : f32 to vector<17x128xf32>
    %21 = arith.cmpf oge, %19, %20 : vector<17x128xf32>
    %cst_22 = arith.constant 2.000000e-01 : f32
    %22 = vector.broadcast %cst_22 : f32 to vector<17x128xf32>
    %23 = arith.mulf %22, %19 : vector<17x128xf32>
    %24 = arith.select %21, %19, %23 : vector<17x128xi1>, vector<17x128xf32>
    %25 = arith.truncf %24 : vector<17x128xf32> to vector<17x128xbf16>
    %c0_23 = arith.constant 0 : index
    %c0_24 = arith.constant 0 : index
    %c0_25 = arith.constant 0 : index
    %c0_26 = arith.constant 0 : index
    %26 = vector.load %arg4[%c0_23, %c0_24, %c0_25, %c0_26] : memref<1x17x17x128xbf16, #tpu.memory_space<vmem>>, vector<1x1x17x128xbf16>
    %27 = vector.shape_cast %26 : vector<1x1x17x128xbf16> to vector<17x128xbf16>
    %28 = vector.shape_cast %25 : vector<17x128xbf16> to vector<1x1x17x128xbf16>
    tpu.vector_store %arg4[%c0_23, %c0_24, %c0_25, %c0_26], %28 {strides = array<i32>} : memref<1x17x17x128xbf16, #tpu.memory_space<vmem>>, vector<1x1x17x128xbf16>,
    %c24_27 = arith.constant 24 : index
    %c0_28 = arith.constant 0 : index
    %29 = vector.load %arg5[%c24_27, %c0_28] : memref<408x256xf32, #tpu.memory_space<vmem>>, vector<17x128xf32>
    %c25 = arith.constant 25 : index
    %c128_29 = arith.constant 128 : index
    %30 = vector.load %arg5[%c25, %c128_29] : memref<408x256xf32, #tpu.memory_space<vmem>>, vector<17x128xf32>
    %31 = arith.addf %29, %30 : vector<17x128xf32>
    %32 = vector.broadcast %14 : vector<1x128xf32> to vector<17x128xf32>
    %33 = arith.addf %31, %32 : vector<17x128xf32>
    %cst_30 = arith.constant 0.000000e+00 : f32
    %34 = vector.broadcast %cst_30 : f32 to vector<17x128xf32>
    %35 = arith.cmpf oge, %33, %34 : vector<17x128xf32>
    %cst_31 = arith.constant 2.000000e-01 : f32
    %36 = vector.broadcast %cst_31 : f32 to vector<17x128xf32>
    %37 = arith.mulf %36, %33 : vector<17x128xf32>
    %38 = arith.select %35, %33, %37 : vector<17x128xi1>, vector<17x128xf32>
    %39 = arith.truncf %38 : vector<17x128xf32> to vector<17x128xbf16>
    %c0_32 = arith.constant 0 : index
    %c1_33 = arith.constant 1 : index
    %c0_34 = arith.constant 0 : index
    %c0_35 = arith.constant 0 : index
    %40 = vector.load %arg4[%c0_32, %c1_33, %c0_34, %c0_35] : memref<1x17x17x128xbf16, #tpu.memory_space<vmem>>, vector<1x1x17x128xbf16>
    %41 = vector.shape_cast %40 : vector<1x1x17x128xbf16> to vector<17x128xbf16>
    %42 = vector.shape_cast %39 : vector<17x128xbf16> to vector<1x1x17x128xbf16>
    tpu.vector_store %arg4[%c0_32, %c1_33, %c0_34, %c0_35], %42 {strides = array<i32>} : memref<1x17x17x128xbf16, #tpu.memory_space<vmem>>, vector<1x1x17x128xbf16>,
    %c48 = arith.constant 48 : index
    %c0_36 = arith.constant 0 : index
    %43 = vector.load %arg5[%c48, %c0_36] : memref<408x256xf32, #tpu.memory_space<vmem>>, vector<17x128xf32>
    %c49 = arith.constant 49 : index
    %c128_37 = arith.constant 128 : index
    %44 = vector.load %arg5[%c49, %c128_37] : memref<408x256xf32, #tpu.memory_space<vmem>>, vector<17x128xf32>
    %45 = arith.addf %43, %44 : vector<17x128xf32>
    %46 = vector.broadcast %14 : vector<1x128xf32> to vector<17x128xf32>
    %47 = arith.addf %45, %46 : vector<17x128xf32>
    %cst_38 = arith.constant 0.000000e+00 : f32
    %48 = vector.broadcast %cst_38 : f32 to vector<17x128xf32>
    %49 = arith.cmpf oge, %47, %48 : vector<17x128xf32>
    %cst_39 = arith.constant 2.000000e-01 : f32
    %50 = vector.broadcast %cst_39 : f32 to vector<17x128xf32>
    %51 = arith.mulf %50, %47 : vector<17x128xf32>
    %52 = arith.select %49, %47, %51 : vector<17x128xi1>, vector<17x128xf32>
    %53 = arith.truncf %52 : vector<17x128xf32> to vector<17x128xbf16>
    %c0_40 = arith.constant 0 : index
    %c2 = arith.constant 2 : index
    %c0_41 = arith.constant 0 : index
    %c0_42 = arith.constant 0 : index
    %54 = vector.load %arg4[%c0_40, %c2, %c0_41, %c0_42] : memref<1x17x17x128xbf16, #tpu.memory_space<vmem>>, vector<1x1x17x128xbf16>
    %55 = vector.shape_cast %54 : vector<1x1x17x128xbf16> to vector<17x128xbf16>
    %56 = vector.shape_cast %53 : vector<17x128xbf16> to vector<1x1x17x128xbf16>
    tpu.vector_store %arg4[%c0_40, %c2, %c0_41, %c0_42], %56 {strides = array<i32>} : memref<1x17x17x128xbf16, #tpu.memory_space<vmem>>, vector<1x1x17x128xbf16>,
    %c72 = arith.constant 72 : index
    %c0_43 = arith.constant 0 : index
    %57 = vector.load %arg5[%c72, %c0_43] : memref<408x256xf32, #tpu.memory_space<vmem>>, vector<17x128xf32>
    %c73 = arith.constant 73 : index
    %c128_44 = arith.constant 128 : index
    %58 = vector.load %arg5[%c73, %c128_44] : memref<408x256xf32, #tpu.memory_space<vmem>>, vector<17x128xf32>
    %59 = arith.addf %57, %58 : vector<17x128xf32>
    %60 = vector.broadcast %14 : vector<1x128xf32> to vector<17x128xf32>
    %61 = arith.addf %59, %60 : vector<17x128xf32>
    %cst_45 = arith.constant 0.000000e+00 : f32
    %62 = vector.broadcast %cst_45 : f32 to vector<17x128xf32>
    %63 = arith.cmpf oge, %61, %62 : vector<17x128xf32>
    %cst_46 = arith.constant 2.000000e-01 : f32
    %64 = vector.broadcast %cst_46 : f32 to vector<17x128xf32>
    %65 = arith.mulf %64, %61 : vector<17x128xf32>
    %66 = arith.select %63, %61, %65 : vector<17x128xi1>, vector<17x128xf32>
    %67 = arith.truncf %66 : vector<17x128xf32> to vector<17x128xbf16>
    %c0_47 = arith.constant 0 : index
    %c3 = arith.constant 3 : index
    %c0_48 = arith.constant 0 : index
    %c0_49 = arith.constant 0 : index
    %68 = vector.load %arg4[%c0_47, %c3, %c0_48, %c0_49] : memref<1x17x17x128xbf16, #tpu.memory_space<vmem>>, vector<1x1x17x128xbf16>
    %69 = vector.shape_cast %68 : vector<1x1x17x128xbf16> to vector<17x128xbf16>
    %70 = vector.shape_cast %67 : vector<17x128xbf16> to vector<1x1x17x128xbf16>
    tpu.vector_store %arg4[%c0_47, %c3, %c0_48, %c0_49], %70 {strides = array<i32>} : memref<1x17x17x128xbf16, #tpu.memory_space<vmem>>, vector<1x1x17x128xbf16>,
    %c96 = arith.constant 96 : index
    %c0_50 = arith.constant 0 : index
    %71 = vector.load %arg5[%c96, %c0_50] : memref<408x256xf32, #tpu.memory_space<vmem>>, vector<17x128xf32>
    %c97 = arith.constant 97 : index
    %c128_51 = arith.constant 128 : index
    %72 = vector.load %arg5[%c97, %c128_51] : memref<408x256xf32, #tpu.memory_space<vmem>>, vector<17x128xf32>
    %73 = arith.addf %71, %72 : vector<17x128xf32>
    %74 = vector.broadcast %14 : vector<1x128xf32> to vector<17x128xf32>
    %75 = arith.addf %73, %74 : vector<17x128xf32>
    %cst_52 = arith.constant 0.000000e+00 : f32
    %76 = vector.broadcast %cst_52 : f32 to vector<17x128xf32>
    %77 = arith.cmpf oge, %75, %76 : vector<17x128xf32>
    %cst_53 = arith.constant 2.000000e-01 : f32
    %78 = vector.broadcast %cst_53 : f32 to vector<17x128xf32>
    %79 = arith.mulf %78, %75 : vector<17x128xf32>
    %80 = arith.select %77, %75, %79 : vector<17x128xi1>, vector<17x128xf32>
    %81 = arith.truncf %80 : vector<17x128xf32> to vector<17x128xbf16>
    %c0_54 = arith.constant 0 : index
    %c4 = arith.constant 4 : index
    %c0_55 = arith.constant 0 : index
    %c0_56 = arith.constant 0 : index
    %82 = vector.load %arg4[%c0_54, %c4, %c0_55, %c0_56] : memref<1x17x17x128xbf16, #tpu.memory_space<vmem>>, vector<1x1x17x128xbf16>
    %83 = vector.shape_cast %82 : vector<1x1x17x128xbf16> to vector<17x128xbf16>
    %84 = vector.shape_cast %81 : vector<17x128xbf16> to vector<1x1x17x128xbf16>
    tpu.vector_store %arg4[%c0_54, %c4, %c0_55, %c0_56], %84 {strides = array<i32>} : memref<1x17x17x128xbf16, #tpu.memory_space<vmem>>, vector<1x1x17x128xbf16>,
    %c120 = arith.constant 120 : index
    %c0_57 = arith.constant 0 : index
    %85 = vector.load %arg5[%c120, %c0_57] : memref<408x256xf32, #tpu.memory_space<vmem>>, vector<17x128xf32>
    %c121 = arith.constant 121 : index
    %c128_58 = arith.constant 128 : index
    %86 = vector.load %arg5[%c121, %c128_58] : memref<408x256xf32, #tpu.memory_space<vmem>>, vector<17x128xf32>
    %87 = arith.addf %85, %86 : vector<17x128xf32>
    %88 = vector.broadcast %14 : vector<1x128xf32> to vector<17x128xf32>
    %89 = arith.addf %87, %88 : vector<17x128xf32>
    %cst_59 = arith.constant 0.000000e+00 : f32
    %90 = vector.broadcast %cst_59 : f32 to vector<17x128xf32>
    %91 = arith.cmpf oge, %89, %90 : vector<17x128xf32>
    %cst_60 = arith.constant 2.000000e-01 : f32
    %92 = vector.broadcast %cst_60 : f32 to vector<17x128xf32>
    %93 = arith.mulf %92, %89 : vector<17x128xf32>
    %94 = arith.select %91, %89, %93 : vector<17x128xi1>, vector<17x128xf32>
    %95 = arith.truncf %94 : vector<17x128xf32> to vector<17x128xbf16>
    %c0_61 = arith.constant 0 : index
    %c5 = arith.constant 5 : index
    %c0_62 = arith.constant 0 : index
    %c0_63 = arith.constant 0 : index
    %96 = vector.load %arg4[%c0_61, %c5, %c0_62, %c0_63] : memref<1x17x17x128xbf16, #tpu.memory_space<vmem>>, vector<1x1x17x128xbf16>
    %97 = vector.shape_cast %96 : vector<1x1x17x128xbf16> to vector<17x128xbf16>
    %98 = vector.shape_cast %95 : vector<17x128xbf16> to vector<1x1x17x128xbf16>
    tpu.vector_store %arg4[%c0_61, %c5, %c0_62, %c0_63], %98 {strides = array<i32>} : memref<1x17x17x128xbf16, #tpu.memory_space<vmem>>, vector<1x1x17x128xbf16>,
    %c144 = arith.constant 144 : index
    %c0_64 = arith.constant 0 : index
    %99 = vector.load %arg5[%c144, %c0_64] : memref<408x256xf32, #tpu.memory_space<vmem>>, vector<17x128xf32>
    %c145 = arith.constant 145 : index
    %c128_65 = arith.constant 128 : index
    %100 = vector.load %arg5[%c145, %c128_65] : memref<408x256xf32, #tpu.memory_space<vmem>>, vector<17x128xf32>
    %101 = arith.addf %99, %100 : vector<17x128xf32>
    %102 = vector.broadcast %14 : vector<1x128xf32> to vector<17x128xf32>
    %103 = arith.addf %101, %102 : vector<17x128xf32>
    %cst_66 = arith.constant 0.000000e+00 : f32
    %104 = vector.broadcast %cst_66 : f32 to vector<17x128xf32>
    %105 = arith.cmpf oge, %103, %104 : vector<17x128xf32>
    %cst_67 = arith.constant 2.000000e-01 : f32
    %106 = vector.broadcast %cst_67 : f32 to vector<17x128xf32>
    %107 = arith.mulf %106, %103 : vector<17x128xf32>
    %108 = arith.select %105, %103, %107 : vector<17x128xi1>, vector<17x128xf32>
    %109 = arith.truncf %108 : vector<17x128xf32> to vector<17x128xbf16>
    %c0_68 = arith.constant 0 : index
    %c6 = arith.constant 6 : index
    %c0_69 = arith.constant 0 : index
    %c0_70 = arith.constant 0 : index
    %110 = vector.load %arg4[%c0_68, %c6, %c0_69, %c0_70] : memref<1x17x17x128xbf16, #tpu.memory_space<vmem>>, vector<1x1x17x128xbf16>
    %111 = vector.shape_cast %110 : vector<1x1x17x128xbf16> to vector<17x128xbf16>
    %112 = vector.shape_cast %109 : vector<17x128xbf16> to vector<1x1x17x128xbf16>
    tpu.vector_store %arg4[%c0_68, %c6, %c0_69, %c0_70], %112 {strides = array<i32>} : memref<1x17x17x128xbf16, #tpu.memory_space<vmem>>, vector<1x1x17x128xbf16>,
    %c168 = arith.constant 168 : index
    %c0_71 = arith.constant 0 : index
    %113 = vector.load %arg5[%c168, %c0_71] : memref<408x256xf32, #tpu.memory_space<vmem>>, vector<17x128xf32>
    %c169 = arith.constant 169 : index
    %c128_72 = arith.constant 128 : index
    %114 = vector.load %arg5[%c169, %c128_72] : memref<408x256xf32, #tpu.memory_space<vmem>>, vector<17x128xf32>
    %115 = arith.addf %113, %114 : vector<17x128xf32>
    %116 = vector.broadcast %14 : vector<1x128xf32> to vector<17x128xf32>
    %117 = arith.addf %115, %116 : vector<17x128xf32>
    %cst_73 = arith.constant 0.000000e+00 : f32
    %118 = vector.broadcast %cst_73 : f32 to vector<17x128xf32>
    %119 = arith.cmpf oge, %117, %118 : vector<17x128xf32>
    %cst_74 = arith.constant 2.000000e-01 : f32
    %120 = vector.broadcast %cst_74 : f32 to vector<17x128xf32>
    %121 = arith.mulf %120, %117 : vector<17x128xf32>
    %122 = arith.select %119, %117, %121 : vector<17x128xi1>, vector<17x128xf32>
    %123 = arith.truncf %122 : vector<17x128xf32> to vector<17x128xbf16>
    %c0_75 = arith.constant 0 : index
    %c7 = arith.constant 7 : index
    %c0_76 = arith.constant 0 : index
    %c0_77 = arith.constant 0 : index
    %124 = vector.load %arg4[%c0_75, %c7, %c0_76, %c0_77] : memref<1x17x17x128xbf16, #tpu.memory_space<vmem>>, vector<1x1x17x128xbf16>
    %125 = vector.shape_cast %124 : vector<1x1x17x128xbf16> to vector<17x128xbf16>
    %126 = vector.shape_cast %123 : vector<17x128xbf16> to vector<1x1x17x128xbf16>
    tpu.vector_store %arg4[%c0_75, %c7, %c0_76, %c0_77], %126 {strides = array<i32>} : memref<1x17x17x128xbf16, #tpu.memory_space<vmem>>, vector<1x1x17x128xbf16>,
    %c192 = arith.constant 192 : index
    %c0_78 = arith.constant 0 : index
    %127 = vector.load %arg5[%c192, %c0_78] : memref<408x256xf32, #tpu.memory_space<vmem>>, vector<17x128xf32>
    %c193 = arith.constant 193 : index
    %c128_79 = arith.constant 128 : index
    %128 = vector.load %arg5[%c193, %c128_79] : memref<408x256xf32, #tpu.memory_space<vmem>>, vector<17x128xf32>
    %129 = arith.addf %127, %128 : vector<17x128xf32>
    %130 = vector.broadcast %14 : vector<1x128xf32> to vector<17x128xf32>
    %131 = arith.addf %129, %130 : vector<17x128xf32>
    %cst_80 = arith.constant 0.000000e+00 : f32
    %132 = vector.broadcast %cst_80 : f32 to vector<17x128xf32>
    %133 = arith.cmpf oge, %131, %132 : vector<17x128xf32>
    %cst_81 = arith.constant 2.000000e-01 : f32
    %134 = vector.broadcast %cst_81 : f32 to vector<17x128xf32>
    %135 = arith.mulf %134, %131 : vector<17x128xf32>
    %136 = arith.select %133, %131, %135 : vector<17x128xi1>, vector<17x128xf32>
    %137 = arith.truncf %136 : vector<17x128xf32> to vector<17x128xbf16>
    %c0_82 = arith.constant 0 : index
    %c8 = arith.constant 8 : index
    %c0_83 = arith.constant 0 : index
    %c0_84 = arith.constant 0 : index
    %138 = vector.load %arg4[%c0_82, %c8, %c0_83, %c0_84] : memref<1x17x17x128xbf16, #tpu.memory_space<vmem>>, vector<1x1x17x128xbf16>
    %139 = vector.shape_cast %138 : vector<1x1x17x128xbf16> to vector<17x128xbf16>
    %140 = vector.shape_cast %137 : vector<17x128xbf16> to vector<1x1x17x128xbf16>
    tpu.vector_store %arg4[%c0_82, %c8, %c0_83, %c0_84], %140 {strides = array<i32>} : memref<1x17x17x128xbf16, #tpu.memory_space<vmem>>, vector<1x1x17x128xbf16>,
    %c216 = arith.constant 216 : index
    %c0_85 = arith.constant 0 : index
    %141 = vector.load %arg5[%c216, %c0_85] : memref<408x256xf32, #tpu.memory_space<vmem>>, vector<17x128xf32>
    %c217 = arith.constant 217 : index
    %c128_86 = arith.constant 128 : index
    %142 = vector.load %arg5[%c217, %c128_86] : memref<408x256xf32, #tpu.memory_space<vmem>>, vector<17x128xf32>
    %143 = arith.addf %141, %142 : vector<17x128xf32>
    %144 = vector.broadcast %14 : vector<1x128xf32> to vector<17x128xf32>
    %145 = arith.addf %143, %144 : vector<17x128xf32>
    %cst_87 = arith.constant 0.000000e+00 : f32
    %146 = vector.broadcast %cst_87 : f32 to vector<17x128xf32>
    %147 = arith.cmpf oge, %145, %146 : vector<17x128xf32>
    %cst_88 = arith.constant 2.000000e-01 : f32
    %148 = vector.broadcast %cst_88 : f32 to vector<17x128xf32>
    %149 = arith.mulf %148, %145 : vector<17x128xf32>
    %150 = arith.select %147, %145, %149 : vector<17x128xi1>, vector<17x128xf32>
    %151 = arith.truncf %150 : vector<17x128xf32> to vector<17x128xbf16>
    %c0_89 = arith.constant 0 : index
    %c9 = arith.constant 9 : index
    %c0_90 = arith.constant 0 : index
    %c0_91 = arith.constant 0 : index
    %152 = vector.load %arg4[%c0_89, %c9, %c0_90, %c0_91] : memref<1x17x17x128xbf16, #tpu.memory_space<vmem>>, vector<1x1x17x128xbf16>
    %153 = vector.shape_cast %152 : vector<1x1x17x128xbf16> to vector<17x128xbf16>
    %154 = vector.shape_cast %151 : vector<17x128xbf16> to vector<1x1x17x128xbf16>
    tpu.vector_store %arg4[%c0_89, %c9, %c0_90, %c0_91], %154 {strides = array<i32>} : memref<1x17x17x128xbf16, #tpu.memory_space<vmem>>, vector<1x1x17x128xbf16>,
    %c240 = arith.constant 240 : index
    %c0_92 = arith.constant 0 : index
    %155 = vector.load %arg5[%c240, %c0_92] : memref<408x256xf32, #tpu.memory_space<vmem>>, vector<17x128xf32>
    %c241 = arith.constant 241 : index
    %c128_93 = arith.constant 128 : index
    %156 = vector.load %arg5[%c241, %c128_93] : memref<408x256xf32, #tpu.memory_space<vmem>>, vector<17x128xf32>
    %157 = arith.addf %155, %156 : vector<17x128xf32>
    %158 = vector.broadcast %14 : vector<1x128xf32> to vector<17x128xf32>
    %159 = arith.addf %157, %158 : vector<17x128xf32>
    %cst_94 = arith.constant 0.000000e+00 : f32
    %160 = vector.broadcast %cst_94 : f32 to vector<17x128xf32>
    %161 = arith.cmpf oge, %159, %160 : vector<17x128xf32>
    %cst_95 = arith.constant 2.000000e-01 : f32
    %162 = vector.broadcast %cst_95 : f32 to vector<17x128xf32>
    %163 = arith.mulf %162, %159 : vector<17x128xf32>
    %164 = arith.select %161, %159, %163 : vector<17x128xi1>, vector<17x128xf32>
    %165 = arith.truncf %164 : vector<17x128xf32> to vector<17x128xbf16>
    %c0_96 = arith.constant 0 : index
    %c10 = arith.constant 10 : index
    %c0_97 = arith.constant 0 : index
    %c0_98 = arith.constant 0 : index
    %166 = vector.load %arg4[%c0_96, %c10, %c0_97, %c0_98] : memref<1x17x17x128xbf16, #tpu.memory_space<vmem>>, vector<1x1x17x128xbf16>
    %167 = vector.shape_cast %166 : vector<1x1x17x128xbf16> to vector<17x128xbf16>
    %168 = vector.shape_cast %165 : vector<17x128xbf16> to vector<1x1x17x128xbf16>
    tpu.vector_store %arg4[%c0_96, %c10, %c0_97, %c0_98], %168 {strides = array<i32>} : memref<1x17x17x128xbf16, #tpu.memory_space<vmem>>, vector<1x1x17x128xbf16>,
    %c264 = arith.constant 264 : index
    %c0_99 = arith.constant 0 : index
    %169 = vector.load %arg5[%c264, %c0_99] : memref<408x256xf32, #tpu.memory_space<vmem>>, vector<17x128xf32>
    %c265 = arith.constant 265 : index
    %c128_100 = arith.constant 128 : index
    %170 = vector.load %arg5[%c265, %c128_100] : memref<408x256xf32, #tpu.memory_space<vmem>>, vector<17x128xf32>
    %171 = arith.addf %169, %170 : vector<17x128xf32>
    %172 = vector.broadcast %14 : vector<1x128xf32> to vector<17x128xf32>
    %173 = arith.addf %171, %172 : vector<17x128xf32>
    %cst_101 = arith.constant 0.000000e+00 : f32
    %174 = vector.broadcast %cst_101 : f32 to vector<17x128xf32>
    %175 = arith.cmpf oge, %173, %174 : vector<17x128xf32>
    %cst_102 = arith.constant 2.000000e-01 : f32
    %176 = vector.broadcast %cst_102 : f32 to vector<17x128xf32>
    %177 = arith.mulf %176, %173 : vector<17x128xf32>
    %178 = arith.select %175, %173, %177 : vector<17x128xi1>, vector<17x128xf32>
    %179 = arith.truncf %178 : vector<17x128xf32> to vector<17x128xbf16>
    %c0_103 = arith.constant 0 : index
    %c11 = arith.constant 11 : index
    %c0_104 = arith.constant 0 : index
    %c0_105 = arith.constant 0 : index
    %180 = vector.load %arg4[%c0_103, %c11, %c0_104, %c0_105] : memref<1x17x17x128xbf16, #tpu.memory_space<vmem>>, vector<1x1x17x128xbf16>
    %181 = vector.shape_cast %180 : vector<1x1x17x128xbf16> to vector<17x128xbf16>
    %182 = vector.shape_cast %179 : vector<17x128xbf16> to vector<1x1x17x128xbf16>
    tpu.vector_store %arg4[%c0_103, %c11, %c0_104, %c0_105], %182 {strides = array<i32>} : memref<1x17x17x128xbf16, #tpu.memory_space<vmem>>, vector<1x1x17x128xbf16>,
    %c288 = arith.constant 288 : index
    %c0_106 = arith.constant 0 : index
    %183 = vector.load %arg5[%c288, %c0_106] : memref<408x256xf32, #tpu.memory_space<vmem>>, vector<17x128xf32>
    %c289 = arith.constant 289 : index
    %c128_107 = arith.constant 128 : index
    %184 = vector.load %arg5[%c289, %c128_107] : memref<408x256xf32, #tpu.memory_space<vmem>>, vector<17x128xf32>
    %185 = arith.addf %183, %184 : vector<17x128xf32>
    %186 = vector.broadcast %14 : vector<1x128xf32> to vector<17x128xf32>
    %187 = arith.addf %185, %186 : vector<17x128xf32>
    %cst_108 = arith.constant 0.000000e+00 : f32
    %188 = vector.broadcast %cst_108 : f32 to vector<17x128xf32>
    %189 = arith.cmpf oge, %187, %188 : vector<17x128xf32>
    %cst_109 = arith.constant 2.000000e-01 : f32
    %190 = vector.broadcast %cst_109 : f32 to vector<17x128xf32>
    %191 = arith.mulf %190, %187 : vector<17x128xf32>
    %192 = arith.select %189, %187, %191 : vector<17x128xi1>, vector<17x128xf32>
    %193 = arith.truncf %192 : vector<17x128xf32> to vector<17x128xbf16>
    %c0_110 = arith.constant 0 : index
    %c12 = arith.constant 12 : index
    %c0_111 = arith.constant 0 : index
    %c0_112 = arith.constant 0 : index
    %194 = vector.load %arg4[%c0_110, %c12, %c0_111, %c0_112] : memref<1x17x17x128xbf16, #tpu.memory_space<vmem>>, vector<1x1x17x128xbf16>
    %195 = vector.shape_cast %194 : vector<1x1x17x128xbf16> to vector<17x128xbf16>
    %196 = vector.shape_cast %193 : vector<17x128xbf16> to vector<1x1x17x128xbf16>
    tpu.vector_store %arg4[%c0_110, %c12, %c0_111, %c0_112], %196 {strides = array<i32>} : memref<1x17x17x128xbf16, #tpu.memory_space<vmem>>, vector<1x1x17x128xbf16>,
    %c312 = arith.constant 312 : index
    %c0_113 = arith.constant 0 : index
    %197 = vector.load %arg5[%c312, %c0_113] : memref<408x256xf32, #tpu.memory_space<vmem>>, vector<17x128xf32>
    %c313 = arith.constant 313 : index
    %c128_114 = arith.constant 128 : index
    %198 = vector.load %arg5[%c313, %c128_114] : memref<408x256xf32, #tpu.memory_space<vmem>>, vector<17x128xf32>
    %199 = arith.addf %197, %198 : vector<17x128xf32>
    %200 = vector.broadcast %14 : vector<1x128xf32> to vector<17x128xf32>
    %201 = arith.addf %199, %200 : vector<17x128xf32>
    %cst_115 = arith.constant 0.000000e+00 : f32
    %202 = vector.broadcast %cst_115 : f32 to vector<17x128xf32>
    %203 = arith.cmpf oge, %201, %202 : vector<17x128xf32>
    %cst_116 = arith.constant 2.000000e-01 : f32
    %204 = vector.broadcast %cst_116 : f32 to vector<17x128xf32>
    %205 = arith.mulf %204, %201 : vector<17x128xf32>
    %206 = arith.select %203, %201, %205 : vector<17x128xi1>, vector<17x128xf32>
    %207 = arith.truncf %206 : vector<17x128xf32> to vector<17x128xbf16>
    %c0_117 = arith.constant 0 : index
    %c13 = arith.constant 13 : index
    %c0_118 = arith.constant 0 : index
    %c0_119 = arith.constant 0 : index
    %208 = vector.load %arg4[%c0_117, %c13, %c0_118, %c0_119] : memref<1x17x17x128xbf16, #tpu.memory_space<vmem>>, vector<1x1x17x128xbf16>
    %209 = vector.shape_cast %208 : vector<1x1x17x128xbf16> to vector<17x128xbf16>
    %210 = vector.shape_cast %207 : vector<17x128xbf16> to vector<1x1x17x128xbf16>
    tpu.vector_store %arg4[%c0_117, %c13, %c0_118, %c0_119], %210 {strides = array<i32>} : memref<1x17x17x128xbf16, #tpu.memory_space<vmem>>, vector<1x1x17x128xbf16>,
    %c336 = arith.constant 336 : index
    %c0_120 = arith.constant 0 : index
    %211 = vector.load %arg5[%c336, %c0_120] : memref<408x256xf32, #tpu.memory_space<vmem>>, vector<17x128xf32>
    %c337 = arith.constant 337 : index
    %c128_121 = arith.constant 128 : index
    %212 = vector.load %arg5[%c337, %c128_121] : memref<408x256xf32, #tpu.memory_space<vmem>>, vector<17x128xf32>
    %213 = arith.addf %211, %212 : vector<17x128xf32>
    %214 = vector.broadcast %14 : vector<1x128xf32> to vector<17x128xf32>
    %215 = arith.addf %213, %214 : vector<17x128xf32>
    %cst_122 = arith.constant 0.000000e+00 : f32
    %216 = vector.broadcast %cst_122 : f32 to vector<17x128xf32>
    %217 = arith.cmpf oge, %215, %216 : vector<17x128xf32>
    %cst_123 = arith.constant 2.000000e-01 : f32
    %218 = vector.broadcast %cst_123 : f32 to vector<17x128xf32>
    %219 = arith.mulf %218, %215 : vector<17x128xf32>
    %220 = arith.select %217, %215, %219 : vector<17x128xi1>, vector<17x128xf32>
    %221 = arith.truncf %220 : vector<17x128xf32> to vector<17x128xbf16>
    %c0_124 = arith.constant 0 : index
    %c14 = arith.constant 14 : index
    %c0_125 = arith.constant 0 : index
    %c0_126 = arith.constant 0 : index
    %222 = vector.load %arg4[%c0_124, %c14, %c0_125, %c0_126] : memref<1x17x17x128xbf16, #tpu.memory_space<vmem>>, vector<1x1x17x128xbf16>
    %223 = vector.shape_cast %222 : vector<1x1x17x128xbf16> to vector<17x128xbf16>
    %224 = vector.shape_cast %221 : vector<17x128xbf16> to vector<1x1x17x128xbf16>
    tpu.vector_store %arg4[%c0_124, %c14, %c0_125, %c0_126], %224 {strides = array<i32>} : memref<1x17x17x128xbf16, #tpu.memory_space<vmem>>, vector<1x1x17x128xbf16>,
    %c360 = arith.constant 360 : index
    %c0_127 = arith.constant 0 : index
    %225 = vector.load %arg5[%c360, %c0_127] : memref<408x256xf32, #tpu.memory_space<vmem>>, vector<17x128xf32>
    %c361 = arith.constant 361 : index
    %c128_128 = arith.constant 128 : index
    %226 = vector.load %arg5[%c361, %c128_128] : memref<408x256xf32, #tpu.memory_space<vmem>>, vector<17x128xf32>
    %227 = arith.addf %225, %226 : vector<17x128xf32>
    %228 = vector.broadcast %14 : vector<1x128xf32> to vector<17x128xf32>
    %229 = arith.addf %227, %228 : vector<17x128xf32>
    %cst_129 = arith.constant 0.000000e+00 : f32
    %230 = vector.broadcast %cst_129 : f32 to vector<17x128xf32>
    %231 = arith.cmpf oge, %229, %230 : vector<17x128xf32>
    %cst_130 = arith.constant 2.000000e-01 : f32
    %232 = vector.broadcast %cst_130 : f32 to vector<17x128xf32>
    %233 = arith.mulf %232, %229 : vector<17x128xf32>
    %234 = arith.select %231, %229, %233 : vector<17x128xi1>, vector<17x128xf32>
    %235 = arith.truncf %234 : vector<17x128xf32> to vector<17x128xbf16>
    %c0_131 = arith.constant 0 : index
    %c15 = arith.constant 15 : index
    %c0_132 = arith.constant 0 : index
    %c0_133 = arith.constant 0 : index
    %236 = vector.load %arg4[%c0_131, %c15, %c0_132, %c0_133] : memref<1x17x17x128xbf16, #tpu.memory_space<vmem>>, vector<1x1x17x128xbf16>
    %237 = vector.shape_cast %236 : vector<1x1x17x128xbf16> to vector<17x128xbf16>
    %238 = vector.shape_cast %235 : vector<17x128xbf16> to vector<1x1x17x128xbf16>
    tpu.vector_store %arg4[%c0_131, %c15, %c0_132, %c0_133], %238 {strides = array<i32>} : memref<1x17x17x128xbf16, #tpu.memory_space<vmem>>, vector<1x1x17x128xbf16>,
    %c384 = arith.constant 384 : index
    %c0_134 = arith.constant 0 : index
    %239 = vector.load %arg5[%c384, %c0_134] : memref<408x256xf32, #tpu.memory_space<vmem>>, vector<17x128xf32>
    %c385 = arith.constant 385 : index
    %c128_135 = arith.constant 128 : index
    %240 = vector.load %arg5[%c385, %c128_135] : memref<408x256xf32, #tpu.memory_space<vmem>>, vector<17x128xf32>
    %241 = arith.addf %239, %240 : vector<17x128xf32>
    %242 = vector.broadcast %14 : vector<1x128xf32> to vector<17x128xf32>
    %243 = arith.addf %241, %242 : vector<17x128xf32>
    %cst_136 = arith.constant 0.000000e+00 : f32
    %244 = vector.broadcast %cst_136 : f32 to vector<17x128xf32>
    %245 = arith.cmpf oge, %243, %244 : vector<17x128xf32>
    %cst_137 = arith.constant 2.000000e-01 : f32
    %246 = vector.broadcast %cst_137 : f32 to vector<17x128xf32>
    %247 = arith.mulf %246, %243 : vector<17x128xf32>
    %248 = arith.select %245, %243, %247 : vector<17x128xi1>, vector<17x128xf32>
    %249 = arith.truncf %248 : vector<17x128xf32> to vector<17x128xbf16>
    %c0_138 = arith.constant 0 : index
    %c16 = arith.constant 16 : index
    %c0_139 = arith.constant 0 : index
    %c0_140 = arith.constant 0 : index
    %250 = vector.load %arg4[%c0_138, %c16, %c0_139, %c0_140] : memref<1x17x17x128xbf16, #tpu.memory_space<vmem>>, vector<1x1x17x128xbf16>
    %251 = vector.shape_cast %250 : vector<1x1x17x128xbf16> to vector<17x128xbf16>
    %252 = vector.shape_cast %249 : vector<17x128xbf16> to vector<1x1x17x128xbf16>
    tpu.vector_store %arg4[%c0_138, %c16, %c0_139, %c0_140], %252 {strides = array<i32>} : memref<1x17x17x128xbf16, #tpu.memory_space<vmem>>, vector<1x1x17x128xbf16>,
    return
  }
  func.func @transform_0(%arg0: i32) -> (i32, i32, i32) {
    %c0_i32 = arith.constant 0 : i32
    %c0_i32_0 = arith.constant 0 : i32
    %c0_i32_1 = arith.constant 0 : i32
    return %arg0, %c0_i32, %c0_i32_0 : i32, i32, i32
  }
  func.func @transform_1(%arg0: i32) -> (i32, i32, i32) {
    %c0_i32 = arith.constant 0 : i32
    %c0_i32_0 = arith.constant 0 : i32
    %c0_i32_1 = arith.constant 0 : i32
    %c0_i32_2 = arith.constant 0 : i32
    return %c0_i32, %c0_i32_0, %c0_i32_1 : i32, i32, i32
  }
  func.func @transform_2(%arg0: i32) -> (i32, i32) {
    %c0_i32 = arith.constant 0 : i32
    %c0_i32_0 = arith.constant 0 : i32
    %c0_i32_1 = arith.constant 0 : i32
    return %c0_i32, %c0_i32_0 : i32, i32
  }
  func.func @transform_3(%arg0: i32) -> (i32, i32, i32, i32) {
    %c0_i32 = arith.constant 0 : i32
    %c0_i32_0 = arith.constant 0 : i32
    %c0_i32_1 = arith.constant 0 : i32
    %c0_i32_2 = arith.constant 0 : i32
    return %arg0, %c0_i32, %c0_i32_0, %c0_i32_1 : i32, i32, i32, i32
  }
}

</mosaic_0001>

<llo_original>
// kernel: tpu_custom_call.1
$region0: #{tpu_custom_call.1}
  #allocation0 [shape = 'u32[]', space=smem, size = 0x4, offset = 0x4, fixed_abs, tag = 'smem constant byte address 0x4 - core index']
  #allocation1 [shape = 'u32[144,128]{1,0:T(1,128)}', space=vmem, size = 0x12000, scoped, tag = 'internal scratch']
  #allocation2 [shape = 'f32[408,256]{1,0:T(8,128)}', space=vmem, size = 0x66000, scoped, tag = 'scratch operand']
  %s0 = inlined_call_operand.vmem [shape: bf16[2,432,12], index: 0, kind: input, shape index: {}]
  %s1 = inlined_call_operand.vmem [shape: bf16[2,12,256], index: 1, kind: input, shape index: {}]
  %s2 = inlined_call_operand.vmem [shape: f32[1,128], index: 2, kind: input, shape index: {}]
  %s3 = inlined_call_operand.vmem [shape: bf16[2,17,17,128], index: 3, kind: output, shape index: {}]
  %s4 = sld [smem:[#allocation0]]
  $region45: #{tpu_custom_call.1} parent=0
    _
  %s6 = ssub.s32 1, %s4
  %s7 = scalar_select 0, %s6, %s4
  loop: start=0, step=1, limit=4
  $region2: #{tpu_custom_call.1} parent=0 // loop_pre_header
    _
  $region3: #{tpu_custom_call.1} parent=0 // loop_header
    %s9 = sphi 0, %s13
    %p10 = scmp.ge.s32.totalorder %s9, 4
    %s19 = sphi 0, %s21
    %s22 = sphi 0, %s19
    %s23 = sphi 0, %s22
    %s39 = sphi 0, %s23
    %s43 = sphi 0, %s43
    %s45 = sphi 0, %s43
    %s46 = sphi 0, %s45
    %s60 = sphi 0, %s46
    %s64 = sphi 0, %s64
    %s66 = sphi 0, %s64
    %s67 = sphi 0, %s66
    %s81 = sphi 0, %s67
    %s87 = sphi 0, %s89
    %s90 = sphi 0, %s87
    %s91 = sphi 0, %s90
    %s107 = sphi 0, %s91
  $region4: #{tpu_custom_call.1} parent=0 // loop_header_branch
    %12 = sbr.rel (%p10) target = $region8
  $region5: #{tpu_custom_call.1} parent=0 // loop_body
    %s14 = ssub.s32 %s9, 1
    %s15 = ssub.s32 %s9, 2
    %s16 = sadd.s32 %s9, 1
    %s17 = ssub.s32 %s9, %s16
    %p18 = scmp.eq.s32.totalorder %s17, 0
    %s20 = sadd.s32 %s19, 1
    %s21 = scalar_select %p18, %s19, %s20
    %p24 = pneg %p18
    %p25 = scmp.eq.s32.totalorder %s9, 1
    %p26 = por %p24, %p25
    %p27 = scmp.ne.s32.totalorder %s19, %s22
    %p28 = scmp.eq.s32.totalorder %s9, 0
    %p29 = por %p27, %p28
    %p30 = scmp.ne.s32.totalorder %s19, %s22
    %p31 = scmp.eq.s32.totalorder %s14, 1
    %p32 = por %p30, %p31
    %p33 = scmp.ne.s32.totalorder %s22, %s23
    %p34 = scmp.eq.s32.totalorder %s14, 0
    %p35 = por %p33, %p34
    %p36 = scmp.ne.s32.totalorder %s22, %s23
    %p37 = scmp.eq.s32.totalorder %s15, 1
    %p38 = por %p36, %p37
    %p40 = scmp.ne.s32.totalorder %s23, %s39
    %p41 = scmp.eq.s32.totalorder %s15, 0
    %p42 = por %p40, %p41
    %s44 = sadd.s32 %s43, 1
    %p47 = scmp.eq.s32.totalorder %s9, 1
    %p48 = scmp.ne.s32.totalorder %s43, %s45
    %p49 = scmp.eq.s32.totalorder %s9, 0
    %p50 = por %p48, %p49
    %p51 = scmp.ne.s32.totalorder %s43, %s45
    %p52 = scmp.eq.s32.totalorder %s14, 1
    %p53 = por %p51, %p52
    %p54 = scmp.ne.s32.totalorder %s45, %s46
    %p55 = scmp.eq.s32.totalorder %s14, 0
    %p56 = por %p54, %p55
    %p57 = scmp.ne.s32.totalorder %s45, %s46
    %p58 = scmp.eq.s32.totalorder %s15, 1
    %p59 = por %p57, %p58
    %p61 = scmp.ne.s32.totalorder %s46, %s60
    %p62 = scmp.eq.s32.totalorder %s15, 0
    %p63 = por %p61, %p62
    %s65 = sadd.s32 %s64, 1
    %p68 = scmp.eq.s32.totalorder %s9, 1
    %p69 = scmp.ne.s32.totalorder %s64, %s66
    %p70 = scmp.eq.s32.totalorder %s9, 0
    %p71 = por %p69, %p70
    %p72 = scmp.ne.s32.totalorder %s64, %s66
    %p73 = scmp.eq.s32.totalorder %s14, 1
    %p74 = por %p72, %p73
    %p75 = scmp.ne.s32.totalorder %s66, %s67
    %p76 = scmp.eq.s32.totalorder %s14, 0
    %p77 = por %p75, %p76
    %p78 = scmp.ne.s32.totalorder %s66, %s67
    %p79 = scmp.eq.s32.totalorder %s15, 1
    %p80 = por %p78, %p79
    %p82 = scmp.ne.s32.totalorder %s67, %s81
    %p83 = scmp.eq.s32.totalorder %s15, 0
    %p84 = por %p82, %p83
    %s85 = ssub.s32 %s9, %s16
    %p86 = scmp.eq.s32.totalorder %s85, 0
    %s88 = sadd.s32 %s87, 1
    %s89 = scalar_select %p86, %s87, %s88
    %p92 = pneg %p86
    %p93 = scmp.eq.s32.totalorder %s9, 1
    %p94 = por %p92, %p93
    %p95 = scmp.ne.s32.totalorder %s87, %s90
    %p96 = scmp.eq.s32.totalorder %s9, 0
    %p97 = por %p95, %p96
    %p98 = scmp.ne.s32.totalorder %s87, %s90
    %p99 = scmp.eq.s32.totalorder %s14, 1
    %p100 = por %p98, %p99
    %p101 = scmp.ne.s32.totalorder %s90, %s91
    %p102 = scmp.eq.s32.totalorder %s14, 0
    %p103 = por %p101, %p102
    %p104 = scmp.ne.s32.totalorder %s90, %s91
    %p105 = scmp.eq.s32.totalorder %s15, 1
    %p106 = por %p104, %p105
    %p108 = scmp.ne.s32.totalorder %s91, %s107
    %p109 = scmp.eq.s32.totalorder %s15, 0
    %p110 = por %p108, %p109
    %p111 = scmp.le.s32.totalorder 1, %s9
    %p112 = scmp.lt.s32.totalorder %s9, 3
    %p113 = pnand %p111, %p112
    %p114 = pneg %p113
    // Predicated region
    $region9: #{tpu_custom_call.1} parent=5 // pred_check
      _
    $region10: #{tpu_custom_call.1} parent=5 // pred_check_branch
      %116 = sbr.rel (%p113) target = $region12
    $region11: #{tpu_custom_call.1} parent=5 // pred_region
      %s117 = ssub.s32 %s9, 1
      // Predicated region
      $region13: #{tpu_custom_call.1} parent=11 // pred_check
        %p118 = pneg %p56
      $region14: #{tpu_custom_call.1} parent=11 // pred_check_branch
        %120 = sbr.rel (%p118) target = $region16
      $region15: #{tpu_custom_call.1} parent=11 // pred_region
        _
      $region16: #{tpu_custom_call.1} parent=11 // pred_fallthru
        _
      // Predicated region
      $region17: #{tpu_custom_call.1} parent=11 // pred_check
        %p121 = pneg %p77
      $region18: #{tpu_custom_call.1} parent=11 // pred_check_branch
        %123 = sbr.rel (%p121) target = $region20
      $region19: #{tpu_custom_call.1} parent=11 // pred_region
        _
      $region20: #{tpu_custom_call.1} parent=11 // pred_fallthru
        _
    $region12: #{tpu_custom_call.1} parent=5 // pred_fallthru
      _
    %p124 = scmp.lt.s32.totalorder %s9, 2
    // Predicated region
    $region21: #{tpu_custom_call.1} parent=5 // pred_check
      %p125 = pneg %p124
    $region22: #{tpu_custom_call.1} parent=5 // pred_check_branch
      %127 = sbr.rel (%p125) target = $region24
    $region23: #{tpu_custom_call.1} parent=5 // pred_region
      // Predicated region
      $region25: #{tpu_custom_call.1} parent=23 // pred_check
        %p128 = pneg %p29
      $region26: #{tpu_custom_call.1} parent=23 // pred_check_branch
        %130 = sbr.rel (%p128) target = $region28
      $region27: #{tpu_custom_call.1} parent=23 // pred_region
        %p131 = scmp.lt.s32.totalorder %s9, 1
        %s132 = scalar_select %p131, %s9, 1
        %s133 = smul.addr %s132, 54
        %s134 = smul.addr %s133, 4
        %s135 = scalar_lea.vmem %s0, %s134
      $region28: #{tpu_custom_call.1} parent=23 // pred_fallthru
        _
    $region24: #{tpu_custom_call.1} parent=5 // pred_fallthru
      _
    %p136 = scmp.le.s32.totalorder 1, %s9
    %p137 = scmp.lt.s32.totalorder %s9, 3
    %p138 = pnand %p136, %p137
    %p139 = pneg %p138
    // Predicated region
    $region29: #{tpu_custom_call.1} parent=5 // pred_check
      _
    $region30: #{tpu_custom_call.1} parent=5 // pred_check_branch
      %141 = sbr.rel (%p138) target = $region32
    $region31: #{tpu_custom_call.1} parent=5 // pred_region
      %s142 = ssub.s32 %s9, 1
      %p143 = scmp.lt.s32.totalorder %s14, 1
      %s144 = scalar_select %p143, %s14, 1
      %s145 = smul.addr %s144, 54
      %s146 = smul.addr %s145, 4
      %s147 = scalar_lea.vmem %s0, %s146
      %p148 = pneg %p35
      %p149 = pneg %p32
      %p150 = pneg %p56
      %p151 = pneg %p53
      %p152 = pneg %p77
      %p153 = pneg %p74
      %p154 = pneg %p103
      %p155 = pneg %p100
      %p156 = scmp.lt.s32.totalorder %s14, 1
      %s157 = scalar_select %p156, %s14, 1
      %s158 = smul.addr %s157, 51
      %s159 = smul.addr %s158, 4
      %s160 = scalar_lea.vmem %s3, %s159
      %p161 = scmp.lt.s32.totalorder %s14, 1
      %s162 = scalar_select %p161, %s14, 1
      %s163 = smul.addr %s162, 54
      %s164 = smul.addr %s163, 4
      %s165 = scalar_lea.vmem %s0, %s164
      %p166 = scmp.lt.s32.totalorder %s14, 1
      %s167 = scalar_select %p166, %s14, 1
      %s168 = smul.addr %s167, 51
      %s169 = smul.addr %s168, 4
      %s170 = scalar_lea.vmem %s3, %s169
      %v172 = vld [vmem:[%s165] sm:$0xf]
      %v173 = vld [vmem:[%s165 + $0x4] sm:$0xf]
      %v174 = vld [vmem:[%s165 + $0x8] sm:$0xf]
      %v175 = vld [vmem:[%s165 + $0xc] sm:$0xf]
      %v176 = vld [vmem:[%s165 + $0x10] sm:$0xf]
      %v177 = vld [vmem:[%s165 + $0x14] sm:$0xf]
      %v178 = vld [vmem:[%s165 + $0x18] sm:$0xf]
      %v179 = vld [vmem:[%s165 + $0x1c] sm:$0xf]
      %v180 = vld [vmem:[%s165 + $0x20] sm:$0xf]
      %v181 = vld [vmem:[%s165 + $0x24] sm:$0xf]
      %v182 = vld [vmem:[%s165 + $0x28] sm:$0xf]
      %v183 = vld [vmem:[%s165 + $0x2c] sm:$0xf]
      %v184 = vld [vmem:[%s165 + $0x30] sm:$0xf]
      %v185 = vld [vmem:[%s165 + $0x34] sm:$0xf]
      %v186 = vld [vmem:[%s165 + $0x38] sm:$0xf]
      %v187 = vld [vmem:[%s165 + $0x3c] sm:$0xf]
      %v188 = vld [vmem:[%s165 + $0x40] sm:$0xf]
      %v189 = vld [vmem:[%s165 + $0x44] sm:$0xf]
      %v190 = vld [vmem:[%s165 + $0x48] sm:$0xf]
      %v191 = vld [vmem:[%s165 + $0x4c] sm:$0xf]
      %v192 = vld [vmem:[%s165 + $0x50] sm:$0xf]
      %v193 = vld [vmem:[%s165 + $0x54] sm:$0xf]
      %v194 = vld [vmem:[%s165 + $0x58] sm:$0xf]
      %v195 = vld [vmem:[%s165 + $0x5c] sm:$0xf]
      %v196 = vld [vmem:[%s165 + $0x60] sm:$0xf]
      %v197 = vld [vmem:[%s165 + $0x64] sm:$0xf]
      %v198 = vld [vmem:[%s165 + $0x68] sm:$0xf]
      %v199 = vld [vmem:[%s165 + $0x6c] sm:$0xf]
      %v200 = vld [vmem:[%s165 + $0x70] sm:$0xf]
      %v201 = vld [vmem:[%s165 + $0x74] sm:$0xf]
      %v202 = vld [vmem:[%s165 + $0x78] sm:$0xf]
      %v203 = vld [vmem:[%s165 + $0x7c] sm:$0xf]
      %v204 = vld [vmem:[%s165 + $0x80] sm:$0xf]
      %v205 = vld [vmem:[%s165 + $0x84] sm:$0xf]
      %v206 = vld [vmem:[%s165 + $0x88] sm:$0xf]
      %v207 = vld [vmem:[%s165 + $0x8c] sm:$0xf]
      %v208 = vld [vmem:[%s165 + $0x90] sm:$0xf]
      %v209 = vld [vmem:[%s165 + $0x94] sm:$0xf]
      %v210 = vld [vmem:[%s165 + $0x98] sm:$0xf]
      %v211 = vld [vmem:[%s165 + $0x9c] sm:$0xf]
      %v212 = vld [vmem:[%s165 + $0xa0] sm:$0xf]
      %v213 = vld [vmem:[%s165 + $0xa4] sm:$0xf]
      %v214 = vld [vmem:[%s165 + $0xa8] sm:$0xf]
      %v215 = vld [vmem:[%s165 + $0xac] sm:$0xf]
      %v216 = vld [vmem:[%s165 + $0xb0] sm:$0xf]
      %v217 = vld [vmem:[%s165 + $0xb4] sm:$0xf]
      %v218 = vld [vmem:[%s165 + $0xb8] sm:$0xf]
      %v219 = vld [vmem:[%s165 + $0xbc] sm:$0xf]
      %v220 = vld [vmem:[%s165 + $0xc0] sm:$0xf]
      %v221 = vld [vmem:[%s165 + $0xc4] sm:$0xf]
      %v222 = vld [vmem:[%s165 + $0xc8] sm:$0xf]
      %v223 = vld [vmem:[%s1] sm:$0xff]
      %v224 = vld [vmem:[%s1 + $0x8] sm:$0x33]
      %v276 = vunpack.c.l.b16 %v172
      %v277 = vunpack.c.l.b16 %v173
      %v278 = vunpack.c.l.b16 %v174
      %v279 = vunpack.c.l.b16 %v175
      %v280 = vunpack.c.l.b16 %v176
      %v281 = vunpack.c.l.b16 %v177
      %v282 = vunpack.c.l.b16 %v178
      %v283 = vunpack.c.l.b16 %v179
      %v284 = vunpack.c.l.b16 %v180
      %v285 = vunpack.c.l.b16 %v181
      %v286 = vunpack.c.l.b16 %v182
      %v287 = vunpack.c.l.b16 %v183
      %v288 = vunpack.c.l.b16 %v184
      %v289 = vunpack.c.l.b16 %v185
      %v290 = vunpack.c.l.b16 %v186
      %v291 = vunpack.c.l.b16 %v187
      %v292 = vunpack.c.l.b16 %v188
      %v293 = vunpack.c.l.b16 %v189
      %v294 = vunpack.c.l.b16 %v190
      %v295 = vunpack.c.l.b16 %v191
      %v296 = vunpack.c.l.b16 %v192
      %v297 = vunpack.c.l.b16 %v193
      %v298 = vunpack.c.l.b16 %v194
      %v299 = vunpack.c.l.b16 %v195
      %v300 = vunpack.c.l.b16 %v196
      %v301 = vunpack.c.l.b16 %v197
      %v302 = vunpack.c.l.b16 %v198
      %v303 = vunpack.c.l.b16 %v199
      %v304 = vunpack.c.l.b16 %v200
      %v305 = vunpack.c.l.b16 %v201
      %v306 = vunpack.c.l.b16 %v202
      %v307 = vunpack.c.l.b16 %v203
      %v308 = vunpack.c.l.b16 %v204
      %v309 = vunpack.c.l.b16 %v205
      %v310 = vunpack.c.l.b16 %v206
      %v311 = vunpack.c.l.b16 %v207
      %v312 = vunpack.c.l.b16 %v208
      %v313 = vunpack.c.l.b16 %v209
      %v314 = vunpack.c.l.b16 %v210
      %v315 = vunpack.c.l.b16 %v211
      %v316 = vunpack.c.l.b16 %v212
      %v317 = vunpack.c.l.b16 %v213
      %v318 = vunpack.c.l.b16 %v214
      %v319 = vunpack.c.l.b16 %v215
      %v320 = vunpack.c.l.b16 %v216
      %v321 = vunpack.c.l.b16 %v217
      %v322 = vunpack.c.l.b16 %v218
      %v323 = vunpack.c.l.b16 %v219
      %v324 = vunpack.c.l.b16 %v220
      %v325 = vunpack.c.l.b16 %v221
      %v326 = vunpack.c.l.b16 %v222
      %v327 = vpack.c.b16 %v277, %v276
      %v328 = vpack.c.b16 %v279, %v278
      %v329 = vpack.c.b16 %v281, %v280
      %v330 = vpack.c.b16 %v283, %v282
      %v331 = vpack.c.b16 %v285, %v284
      %v332 = vpack.c.b16 %v287, %v286
      %v333 = vpack.c.b16 %v289, %v288
      %v334 = vpack.c.b16 %v291, %v290
      %v335 = vpack.c.b16 %v293, %v292
      %v336 = vpack.c.b16 %v295, %v294
      %v337 = vpack.c.b16 %v297, %v296
      %v338 = vpack.c.b16 %v299, %v298
      %v339 = vpack.c.b16 %v301, %v300
      %v340 = vpack.c.b16 %v303, %v302
      %v341 = vpack.c.b16 %v305, %v304
      %v342 = vpack.c.b16 %v307, %v306
      %v343 = vpack.c.b16 %v309, %v308
      %v344 = vpack.c.b16 %v311, %v310
      %v345 = vpack.c.b16 %v313, %v312
      %v346 = vpack.c.b16 %v315, %v314
      %v347 = vpack.c.b16 %v317, %v316
      %v348 = vpack.c.b16 %v319, %v318
      %v349 = vpack.c.b16 %v321, %v320
      %v350 = vpack.c.b16 %v323, %v322
      %v351 = vpack.c.b16 %v325, %v324
      %v352 = vpack.c.b16 %v326, %v326
      %v355 = vunpack.c.l.b16 %v223
      %v356 = vunpack.c.h.b16 %v223
      %v357 = vunpack.c.l.b16 %v224
      %v358 = vunpack.c.h.b16 %v224
      %v359 = vpack.c.b16 %v357, %v355
      %v360 = vpack.c.b16 %v358, %v356
      %vm361 = vcmask 97280
      %v363 = vsel %vm361, %v327, 0
      %v366 = vsel %vm361, %v328, 0
      %v369 = vsel %vm361, %v329, 0
      %v372 = vsel %vm361, %v330, 0
      %v375 = vsel %vm361, %v331, 0
      %v378 = vsel %vm361, %v332, 0
      %v381 = vsel %vm361, %v333, 0
      %v384 = vsel %vm361, %v334, 0
      %v387 = vsel %vm361, %v335, 0
      %v390 = vsel %vm361, %v336, 0
      %v393 = vsel %vm361, %v337, 0
      %v396 = vsel %vm361, %v338, 0
      %v399 = vsel %vm361, %v339, 0
      %v402 = vsel %vm361, %v340, 0
      %v405 = vsel %vm361, %v341, 0
      %v408 = vsel %vm361, %v342, 0
      %v411 = vsel %vm361, %v343, 0
      %v414 = vsel %vm361, %v344, 0
      %v417 = vsel %vm361, %v345, 0
      %v420 = vsel %vm361, %v346, 0
      %v423 = vsel %vm361, %v347, 0
      %v426 = vsel %vm361, %v348, 0
      %v429 = vsel %vm361, %v349, 0
      %v432 = vsel %vm361, %v350, 0
      %v435 = vsel %vm361, %v351, 0
      %v438 = vsel %vm361, %v352, 0
      %vm440 = vcmask 1045504
      %v442 = vsel %vm440, %v359, 0
      %v445 = vsel %vm440, %v360, 0
      %447 = vmatprep.subr.bf16.mxu0 0
      %448 = vmatpush1.bf16.msra.mxu0 0
      %449 = vmatprep.subr.bf16.mxu0 0
      %450 = vmatpush1.bf16.msra.mxu0 0
      %451 = vmatprep.subr.bf16.mxu0 0
      %452 = vmatpush1.bf16.msra.mxu0 0
      %453 = vmatprep.subr.bf16.mxu0 0
      %454 = vmatpush1.bf16.msra.mxu0 0
      %455 = vmatprep.subr.bf16.mxu0 0
      %456 = vmatpush1.bf16.msra.mxu0 0
      %457 = vmatprep.subr.bf16.mxu0 0
      %458 = vmatpush1.bf16.msra.mxu0 0
      %459 = vmatprep.subr.bf16.mxu0 0
      %460 = vmatpush1.bf16.msra.mxu0 0
      %461 = vmatprep.subr.bf16.mxu0 %v445
      %462 = vmatpush1.bf16.msra.mxu0 %v442
      %463 = vmatprep.subr.bf16.mxu0 0
      %464 = vmatpush2.bf16.msra.mxu0 0
      %465 = vmatprep.subr.bf16.mxu0 0
      %466 = vmatpush2.bf16.msra.mxu0 0
      %467 = vmatprep.subr.bf16.mxu0 0
      %468 = vmatpush2.bf16.msra.mxu0 0
      %469 = vmatprep.subr.bf16.mxu0 0
      %470 = vmatpush2.bf16.msra.mxu0 0
      %471 = vmatprep.subr.bf16.mxu0 0
      %472 = vmatpush2.bf16.msra.mxu0 0
      %473 = vmatprep.subr.bf16.mxu0 0
      %474 = vmatpush2.bf16.msra.mxu0 0
      %475 = vmatprep.subr.bf16.mxu0 0
      %476 = vmatpush2.bf16.msra.mxu0 0
      %477 = vmatprep.subr.bf16.mxu0 0
      %478 = vmatpush2.bf16.msra.mxu0 0
      %479 = vmatprep.mubr.bf16.mxu0 0
      %480 = vmatmul.mubr.bf16.gmra.mxu0 %v363
      %v481 = vpop.f32.mrf.mxu0
      %v482 = vadd.f32 0.0, %v481
      %v483 = vpop.f32.mrf.mxu0
      %v484 = vadd.f32 0.0, %v483
      %v485 = vpop.f32.mrf.mxu0
      %v486 = vadd.f32 0.0, %v485
      %v487 = vpop.f32.mrf.mxu0
      %v488 = vadd.f32 0.0, %v487
      %489 = vmatprep.mubr.bf16.mxu0 0
      %490 = vmatmul.mubr.bf16.gmra.mxu0 %v366
      %v491 = vpop.f32.mrf.mxu0
      %v492 = vadd.f32 0.0, %v491
      %v493 = vpop.f32.mrf.mxu0
      %v494 = vadd.f32 0.0, %v493
      %v495 = vpop.f32.mrf.mxu0
      %v496 = vadd.f32 0.0, %v495
      %v497 = vpop.f32.mrf.mxu0
      %v498 = vadd.f32 0.0, %v497
      %499 = vmatprep.mubr.bf16.mxu0 0
      %500 = vmatmul.mubr.bf16.gmra.mxu0 %v369
      %v501 = vpop.f32.mrf.mxu0
      %v502 = vadd.f32 0.0, %v501
      %v503 = vpop.f32.mrf.mxu0
      %v504 = vadd.f32 0.0, %v503
      %v505 = vpop.f32.mrf.mxu0
      %v506 = vadd.f32 0.0, %v505
      %v507 = vpop.f32.mrf.mxu0
      %v508 = vadd.f32 0.0, %v507
      %509 = vmatprep.mubr.bf16.mxu0 0
      %510 = vmatmul.mubr.bf16.gmra.mxu0 %v372
      %v511 = vpop.f32.mrf.mxu0
      %v512 = vadd.f32 0.0, %v511
      %v513 = vpop.f32.mrf.mxu0
      %v514 = vadd.f32 0.0, %v513
      %v515 = vpop.f32.mrf.mxu0
      %v516 = vadd.f32 0.0, %v515
      %v517 = vpop.f32.mrf.mxu0
      %v518 = vadd.f32 0.0, %v517
      %519 = vmatprep.mubr.bf16.mxu0 0
      %520 = vmatmul.mubr.bf16.gmra.mxu0 %v375
      %v521 = vpop.f32.mrf.mxu0
      %v522 = vadd.f32 0.0, %v521
      %v523 = vpop.f32.mrf.mxu0
      %v524 = vadd.f32 0.0, %v523
      %v525 = vpop.f32.mrf.mxu0
      %v526 = vadd.f32 0.0, %v525
      %v527 = vpop.f32.mrf.mxu0
      %v528 = vadd.f32 0.0, %v527
      %529 = vmatprep.mubr.bf16.mxu0 0
      %530 = vmatmul.mubr.bf16.gmra.mxu0 %v378
      %v531 = vpop.f32.mrf.mxu0
      %v532 = vadd.f32 0.0, %v531
      %v533 = vpop.f32.mrf.mxu0
      %v534 = vadd.f32 0.0, %v533
      %v535 = vpop.f32.mrf.mxu0
      %v536 = vadd.f32 0.0, %v535
      %v537 = vpop.f32.mrf.mxu0
      %v538 = vadd.f32 0.0, %v537
      %539 = vmatprep.mubr.bf16.mxu0 0
      %540 = vmatmul.mubr.bf16.gmra.mxu0 %v381
      %v541 = vpop.f32.mrf.mxu0
      %v542 = vadd.f32 0.0, %v541
      %v543 = vpop.f32.mrf.mxu0
      %v544 = vadd.f32 0.0, %v543
      %v545 = vpop.f32.mrf.mxu0
      %v546 = vadd.f32 0.0, %v545
      %v547 = vpop.f32.mrf.mxu0
      %v548 = vadd.f32 0.0, %v547
      %549 = vmatprep.mubr.bf16.mxu0 0
      %550 = vmatmul.mubr.bf16.gmra.mxu0 %v384
      %v551 = vpop.f32.mrf.mxu0
      %v552 = vadd.f32 0.0, %v551
      %v553 = vpop.f32.mrf.mxu0
      %v554 = vadd.f32 0.0, %v553
      %v555 = vpop.f32.mrf.mxu0
      %v556 = vadd.f32 0.0, %v555
      %v557 = vpop.f32.mrf.mxu0
      %v558 = vadd.f32 0.0, %v557
      %559 = vmatprep.mubr.bf16.mxu0 0
      %560 = vmatmul.mubr.bf16.gmra.mxu0 %v387
      %v561 = vpop.f32.mrf.mxu0
      %v562 = vadd.f32 0.0, %v561
      %v563 = vpop.f32.mrf.mxu0
      %v564 = vadd.f32 0.0, %v563
      %v565 = vpop.f32.mrf.mxu0
      %v566 = vadd.f32 0.0, %v565
      %v567 = vpop.f32.mrf.mxu0
      %v568 = vadd.f32 0.0, %v567
      %569 = vmatprep.mubr.bf16.mxu0 0
      %570 = vmatmul.mubr.bf16.gmra.mxu0 %v390
      %v571 = vpop.f32.mrf.mxu0
      %v572 = vadd.f32 0.0, %v571
      %v573 = vpop.f32.mrf.mxu0
      %v574 = vadd.f32 0.0, %v573
      %v575 = vpop.f32.mrf.mxu0
      %v576 = vadd.f32 0.0, %v575
      %v577 = vpop.f32.mrf.mxu0
      %v578 = vadd.f32 0.0, %v577
      %579 = vmatprep.mubr.bf16.mxu0 0
      %580 = vmatmul.mubr.bf16.gmra.mxu0 %v393
      %v581 = vpop.f32.mrf.mxu0
      %v582 = vadd.f32 0.0, %v581
      %v583 = vpop.f32.mrf.mxu0
      %v584 = vadd.f32 0.0, %v583
      %v585 = vpop.f32.mrf.mxu0
      %v586 = vadd.f32 0.0, %v585
      %v587 = vpop.f32.mrf.mxu0
      %v588 = vadd.f32 0.0, %v587
      %589 = vmatprep.mubr.bf16.mxu0 0
      %590 = vmatmul.mubr.bf16.gmra.mxu0 %v396
      %v591 = vpop.f32.mrf.mxu0
      %v592 = vadd.f32 0.0, %v591
      %v593 = vpop.f32.mrf.mxu0
      %v594 = vadd.f32 0.0, %v593
      %v595 = vpop.f32.mrf.mxu0
      %v596 = vadd.f32 0.0, %v595
      %v597 = vpop.f32.mrf.mxu0
      %v598 = vadd.f32 0.0, %v597
      %599 = vmatprep.mubr.bf16.mxu0 0
      %600 = vmatmul.mubr.bf16.gmra.mxu0 %v399
      %v601 = vpop.f32.mrf.mxu0
      %v602 = vadd.f32 0.0, %v601
      %v603 = vpop.f32.mrf.mxu0
      %v604 = vadd.f32 0.0, %v603
      %v605 = vpop.f32.mrf.mxu0
      %v606 = vadd.f32 0.0, %v605
      %v607 = vpop.f32.mrf.mxu0
      %v608 = vadd.f32 0.0, %v607
      %609 = vmatprep.mubr.bf16.mxu0 0
      %610 = vmatmul.mubr.bf16.gmra.mxu0 %v402
      %v611 = vpop.f32.mrf.mxu0
      %v612 = vadd.f32 0.0, %v611
      %v613 = vpop.f32.mrf.mxu0
      %v614 = vadd.f32 0.0, %v613
      %v615 = vpop.f32.mrf.mxu0
      %v616 = vadd.f32 0.0, %v615
      %v617 = vpop.f32.mrf.mxu0
      %v618 = vadd.f32 0.0, %v617
      %619 = vmatprep.mubr.bf16.mxu0 0
      %620 = vmatmul.mubr.bf16.gmra.mxu0 %v405
      %v621 = vpop.f32.mrf.mxu0
      %v622 = vadd.f32 0.0, %v621
      %v623 = vpop.f32.mrf.mxu0
      %v624 = vadd.f32 0.0, %v623
      %v625 = vpop.f32.mrf.mxu0
      %v626 = vadd.f32 0.0, %v625
      %v627 = vpop.f32.mrf.mxu0
      %v628 = vadd.f32 0.0, %v627
      %629 = vmatprep.mubr.bf16.mxu0 0
      %630 = vmatmul.mubr.bf16.gmra.mxu0 %v408
      %v631 = vpop.f32.mrf.mxu0
      %v632 = vadd.f32 0.0, %v631
      %v633 = vpop.f32.mrf.mxu0
      %v634 = vadd.f32 0.0, %v633
      %v635 = vpop.f32.mrf.mxu0
      %v636 = vadd.f32 0.0, %v635
      %v637 = vpop.f32.mrf.mxu0
      %v638 = vadd.f32 0.0, %v637
      %639 = vmatprep.mubr.bf16.mxu0 0
      %640 = vmatmul.mubr.bf16.gmra.mxu0 %v411
      %v641 = vpop.f32.mrf.mxu0
      %v642 = vadd.f32 0.0, %v641
      %v643 = vpop.f32.mrf.mxu0
      %v644 = vadd.f32 0.0, %v643
      %v645 = vpop.f32.mrf.mxu0
      %v646 = vadd.f32 0.0, %v645
      %v647 = vpop.f32.mrf.mxu0
      %v648 = vadd.f32 0.0, %v647
      %649 = vmatprep.mubr.bf16.mxu0 0
      %650 = vmatmul.mubr.bf16.gmra.mxu0 %v414
      %v651 = vpop.f32.mrf.mxu0
      %v652 = vadd.f32 0.0, %v651
      %v653 = vpop.f32.mrf.mxu0
      %v654 = vadd.f32 0.0, %v653
      %v655 = vpop.f32.mrf.mxu0
      %v656 = vadd.f32 0.0, %v655
      %v657 = vpop.f32.mrf.mxu0
      %v658 = vadd.f32 0.0, %v657
      %659 = vmatprep.mubr.bf16.mxu0 0
      %660 = vmatmul.mubr.bf16.gmra.mxu0 %v417
      %v661 = vpop.f32.mrf.mxu0
      %v662 = vadd.f32 0.0, %v661
      %v663 = vpop.f32.mrf.mxu0
      %v664 = vadd.f32 0.0, %v663
      %v665 = vpop.f32.mrf.mxu0
      %v666 = vadd.f32 0.0, %v665
      %v667 = vpop.f32.mrf.mxu0
      %v668 = vadd.f32 0.0, %v667
      %669 = vmatprep.mubr.bf16.mxu0 0
      %670 = vmatmul.mubr.bf16.gmra.mxu0 %v420
      %v671 = vpop.f32.mrf.mxu0
      %v672 = vadd.f32 0.0, %v671
      %v673 = vpop.f32.mrf.mxu0
      %v674 = vadd.f32 0.0, %v673
      %v675 = vpop.f32.mrf.mxu0
      %v676 = vadd.f32 0.0, %v675
      %v677 = vpop.f32.mrf.mxu0
      %v678 = vadd.f32 0.0, %v677
      %679 = vmatprep.mubr.bf16.mxu0 0
      %680 = vmatmul.mubr.bf16.gmra.mxu0 %v423
      %v681 = vpop.f32.mrf.mxu0
      %v682 = vadd.f32 0.0, %v681
      %v683 = vpop.f32.mrf.mxu0
      %v684 = vadd.f32 0.0, %v683
      %v685 = vpop.f32.mrf.mxu0
      %v686 = vadd.f32 0.0, %v685
      %v687 = vpop.f32.mrf.mxu0
      %v688 = vadd.f32 0.0, %v687
      %689 = vmatprep.mubr.bf16.mxu0 0
      %690 = vmatmul.mubr.bf16.gmra.mxu0 %v426
      %v691 = vpop.f32.mrf.mxu0
      %v692 = vadd.f32 0.0, %v691
      %v693 = vpop.f32.mrf.mxu0
      %v694 = vadd.f32 0.0, %v693
      %v695 = vpop.f32.mrf.mxu0
      %v696 = vadd.f32 0.0, %v695
      %v697 = vpop.f32.mrf.mxu0
      %v698 = vadd.f32 0.0, %v697
      %699 = vmatprep.mubr.bf16.mxu0 0
      %700 = vmatmul.mubr.bf16.gmra.mxu0 %v429
      %v701 = vpop.f32.mrf.mxu0
      %v702 = vadd.f32 0.0, %v701
      %v703 = vpop.f32.mrf.mxu0
      %v704 = vadd.f32 0.0, %v703
      %v705 = vpop.f32.mrf.mxu0
      %v706 = vadd.f32 0.0, %v705
      %v707 = vpop.f32.mrf.mxu0
      %v708 = vadd.f32 0.0, %v707
      %709 = vmatprep.mubr.bf16.mxu0 0
      %710 = vmatmul.mubr.bf16.gmra.mxu0 %v432
      %v711 = vpop.f32.mrf.mxu0
      %v712 = vadd.f32 0.0, %v711
      %v713 = vpop.f32.mrf.mxu0
      %v714 = vadd.f32 0.0, %v713
      %v715 = vpop.f32.mrf.mxu0
      %v716 = vadd.f32 0.0, %v715
      %v717 = vpop.f32.mrf.mxu0
      %v718 = vadd.f32 0.0, %v717
      %719 = vmatprep.mubr.bf16.mxu0 0
      %720 = vmatmul.mubr.bf16.gmra.mxu0 %v435
      %v721 = vpop.f32.mrf.mxu0
      %v722 = vadd.f32 0.0, %v721
      %v723 = vpop.f32.mrf.mxu0
      %v724 = vadd.f32 0.0, %v723
      %v725 = vpop.f32.mrf.mxu0
      %v726 = vadd.f32 0.0, %v725
      %v727 = vpop.f32.mrf.mxu0
      %v728 = vadd.f32 0.0, %v727
      %729 = vmatprep.mubr.bf16.mxu0 0
      %730 = vmatmul.mubr.bf16.gmra.mxu0 %v438
      %v731 = vpop.f32.mrf.mxu0
      %v732 = vadd.f32 0.0, %v731
      %v733 = vpop.f32.mrf.mxu0
      %v734 = vadd.f32 0.0, %v733
      %v735 = vpop.f32.mrf.mxu0
      %v736 = vpop.f32.mrf.mxu0
      %737 = vdwg.mxu0
      %738 = vst [vmem:[#allocation2] sm:$0xff] %v482
      %739 = vst [vmem:[#allocation2 + $0x8] sm:$0xff] %v484
      %740 = vst [vmem:[#allocation2 + $0x10] sm:$0xff] %v486
      %741 = vst [vmem:[#allocation2 + $0x18] sm:$0xff] %v488
      %742 = vst [vmem:[#allocation2 + $0x20] sm:$0xff] %v492
      %743 = vst [vmem:[#allocation2 + $0x28] sm:$0xff] %v494
      %744 = vst [vmem:[#allocation2 + $0x30] sm:$0xff] %v496
      %745 = vst [vmem:[#allocation2 + $0x38] sm:$0xff] %v498
      %746 = vst [vmem:[#allocation2 + $0x40] sm:$0xff] %v502
      %747 = vst [vmem:[#allocation2 + $0x48] sm:$0xff] %v504
      %748 = vst [vmem:[#allocation2 + $0x50] sm:$0xff] %v506
      %749 = vst [vmem:[#allocation2 + $0x58] sm:$0xff] %v508
      %750 = vst [vmem:[#allocation2 + $0x60] sm:$0xff] %v512
      %751 = vst [vmem:[#allocation2 + $0x68] sm:$0xff] %v514
      %752 = vst [vmem:[#allocation2 + $0x70] sm:$0xff] %v516
      %753 = vst [vmem:[#allocation2 + $0x78] sm:$0xff] %v518
      %754 = vst [vmem:[#allocation2 + $0x80] sm:$0xff] %v522
      %755 = vst [vmem:[#allocation2 + $0x88] sm:$0xff] %v524
      %756 = vst [vmem:[#allocation2 + $0x90] sm:$0xff] %v526
      %757 = vst [vmem:[#allocation2 + $0x98] sm:$0xff] %v528
      %758 = vst [vmem:[#allocation2 + $0xa0] sm:$0xff] %v532
      %759 = vst [vmem:[#allocation2 + $0xa8] sm:$0xff] %v534
      %760 = vst [vmem:[#allocation2 + $0xb0] sm:$0xff] %v536
      %761 = vst [vmem:[#allocation2 + $0xb8] sm:$0xff] %v538
      %762 = vst [vmem:[#allocation2 + $0xc0] sm:$0xff] %v542
      %763 = vst [vmem:[#allocation2 + $0xc8] sm:$0xff] %v544
      %764 = vst [vmem:[#allocation2 + $0xd0] sm:$0xff] %v546
      %765 = vst [vmem:[#allocation2 + $0xd8] sm:$0xff] %v548
      %766 = vst [vmem:[#allocation2 + $0xe0] sm:$0xff] %v552
      %767 = vst [vmem:[#allocation2 + $0xe8] sm:$0xff] %v554
      %768 = vst [vmem:[#allocation2 + $0xf0] sm:$0xff] %v556
      %769 = vst [vmem:[#allocation2 + $0xf8] sm:$0xff] %v558
      %770 = vst [vmem:[#allocation2 + $0x100] sm:$0xff] %v562
      %771 = vst [vmem:[#allocation2 + $0x108] sm:$0xff] %v564
      %772 = vst [vmem:[#allocation2 + $0x110] sm:$0xff] %v566
      %773 = vst [vmem:[#allocation2 + $0x118] sm:$0xff] %v568
      %774 = vst [vmem:[#allocation2 + $0x120] sm:$0xff] %v572
      %775 = vst [vmem:[#allocation2 + $0x128] sm:$0xff] %v574
      %776 = vst [vmem:[#allocation2 + $0x130] sm:$0xff] %v576
      %777 = vst [vmem:[#allocation2 + $0x138] sm:$0xff] %v578
      %778 = vst [vmem:[#allocation2 + $0x140] sm:$0xff] %v582
      %779 = vst [vmem:[#allocation2 + $0x148] sm:$0xff] %v584
      %780 = vst [vmem:[#allocation2 + $0x150] sm:$0xff] %v586
      %781 = vst [vmem:[#allocation2 + $0x158] sm:$0xff] %v588
      %782 = vst [vmem:[#allocation2 + $0x160] sm:$0xff] %v592
      %783 = vst [vmem:[#allocation2 + $0x168] sm:$0xff] %v594
      %784 = vst [vmem:[#allocation2 + $0x170] sm:$0xff] %v596
      %785 = vst [vmem:[#allocation2 + $0x178] sm:$0xff] %v598
      %786 = vst [vmem:[#allocation2 + $0x180] sm:$0xff] %v602
      %787 = vst [vmem:[#allocation2 + $0x188] sm:$0xff] %v604
      %788 = vst [vmem:[#allocation2 + $0x190] sm:$0xff] %v606
      %789 = vst [vmem:[#allocation2 + $0x198] sm:$0xff] %v608
      %790 = vst [vmem:[#allocation2 + $0x1a0] sm:$0xff] %v612
      %791 = vst [vmem:[#allocation2 + $0x1a8] sm:$0xff] %v614
      %792 = vst [vmem:[#allocation2 + $0x1b0] sm:$0xff] %v616
      %793 = vst [vmem:[#allocation2 + $0x1b8] sm:$0xff] %v618
      %794 = vst [vmem:[#allocation2 + $0x1c0] sm:$0xff] %v622
      %795 = vst [vmem:[#allocation2 + $0x1c8] sm:$0xff] %v624
      %796 = vst [vmem:[#allocation2 + $0x1d0] sm:$0xff] %v626
      %797 = vst [vmem:[#allocation2 + $0x1d8] sm:$0xff] %v628
      %798 = vst [vmem:[#allocation2 + $0x1e0] sm:$0xff] %v632
      %799 = vst [vmem:[#allocation2 + $0x1e8] sm:$0xff] %v634
      %800 = vst [vmem:[#allocation2 + $0x1f0] sm:$0xff] %v636
      %801 = vst [vmem:[#allocation2 + $0x1f8] sm:$0xff] %v638
      %802 = vst [vmem:[#allocation2 + $0x200] sm:$0xff] %v642
      %803 = vst [vmem:[#allocation2 + $0x208] sm:$0xff] %v644
      %804 = vst [vmem:[#allocation2 + $0x210] sm:$0xff] %v646
      %805 = vst [vmem:[#allocation2 + $0x218] sm:$0xff] %v648
      %806 = vst [vmem:[#allocation2 + $0x220] sm:$0xff] %v652
      %807 = vst [vmem:[#allocation2 + $0x228] sm:$0xff] %v654
      %808 = vst [vmem:[#allocation2 + $0x230] sm:$0xff] %v656
      %809 = vst [vmem:[#allocation2 + $0x238] sm:$0xff] %v658
      %810 = vst [vmem:[#allocation2 + $0x240] sm:$0xff] %v662
      %811 = vst [vmem:[#allocation2 + $0x248] sm:$0xff] %v664
      %812 = vst [vmem:[#allocation2 + $0x250] sm:$0xff] %v666
      %813 = vst [vmem:[#allocation2 + $0x258] sm:$0xff] %v668
      %814 = vst [vmem:[#allocation2 + $0x260] sm:$0xff] %v672
      %815 = vst [vmem:[#allocation2 + $0x268] sm:$0xff] %v674
      %816 = vst [vmem:[#allocation2 + $0x270] sm:$0xff] %v676
      %817 = vst [vmem:[#allocation2 + $0x278] sm:$0xff] %v678
      %818 = vst [vmem:[#allocation2 + $0x280] sm:$0xff] %v682
      %819 = vst [vmem:[#allocation2 + $0x288] sm:$0xff] %v684
      %820 = vst [vmem:[#allocation2 + $0x290] sm:$0xff] %v686
      %821 = vst [vmem:[#allocation2 + $0x298] sm:$0xff] %v688
      %822 = vst [vmem:[#allocation2 + $0x2a0] sm:$0xff] %v692
      %823 = vst [vmem:[#allocation2 + $0x2a8] sm:$0xff] %v694
      %824 = vst [vmem:[#allocation2 + $0x2b0] sm:$0xff] %v696
      %825 = vst [vmem:[#allocation2 + $0x2b8] sm:$0xff] %v698
      %826 = vst [vmem:[#allocation2 + $0x2c0] sm:$0xff] %v702
      %827 = vst [vmem:[#allocation2 + $0x2c8] sm:$0xff] %v704
      %828 = vst [vmem:[#allocation2 + $0x2d0] sm:$0xff] %v706
      %829 = vst [vmem:[#allocation2 + $0x2d8] sm:$0xff] %v708
      %830 = vst [vmem:[#allocation2 + $0x2e0] sm:$0xff] %v712
      %831 = vst [vmem:[#allocation2 + $0x2e8] sm:$0xff] %v714
      %832 = vst [vmem:[#allocation2 + $0x2f0] sm:$0xff] %v716
      %833 = vst [vmem:[#allocation2 + $0x2f8] sm:$0xff] %v718
      %834 = vst [vmem:[#allocation2 + $0x300] sm:$0xff] %v722
      %835 = vst [vmem:[#allocation2 + $0x308] sm:$0xff] %v724
      %836 = vst [vmem:[#allocation2 + $0x310] sm:$0xff] %v726
      %837 = vst [vmem:[#allocation2 + $0x318] sm:$0xff] %v728
      %838 = vst [vmem:[#allocation2 + $0x320] sm:$0xff] %v732
      %839 = vst [vmem:[#allocation2 + $0x328] sm:$0xff] %v734
      %v840 = vld [vmem:[%s165 + $0xc] sm:$0xf]
      %v841 = vld [vmem:[%s165 + $0x10] sm:$0xf]
      %v842 = vld [vmem:[%s165 + $0x14] sm:$0xf]
      %v843 = vld [vmem:[%s165 + $0x18] sm:$0xf]
      %v844 = vld [vmem:[%s165 + $0x1c] sm:$0xf]
      %v845 = vld [vmem:[%s165 + $0x20] sm:$0xf]
      %v846 = vld [vmem:[%s165 + $0x24] sm:$0xf]
      %v847 = vld [vmem:[%s165 + $0x28] sm:$0xf]
      %v848 = vld [vmem:[%s165 + $0x2c] sm:$0xf]
      %v849 = vld [vmem:[%s165 + $0x30] sm:$0xf]
      %v850 = vld [vmem:[%s165 + $0x34] sm:$0xf]
      %v851 = vld [vmem:[%s165 + $0x38] sm:$0xf]
      %v852 = vld [vmem:[%s165 + $0x3c] sm:$0xf]
      %v853 = vld [vmem:[%s165 + $0x40] sm:$0xf]
      %v854 = vld [vmem:[%s165 + $0x44] sm:$0xf]
      %v855 = vld [vmem:[%s165 + $0x48] sm:$0xf]
      %v856 = vld [vmem:[%s165 + $0x4c] sm:$0xf]
      %v857 = vld [vmem:[%s165 + $0x50] sm:$0xf]
      %v858 = vld [vmem:[%s165 + $0x54] sm:$0xf]
      %v859 = vld [vmem:[%s165 + $0x58] sm:$0xf]
      %v860 = vld [vmem:[%s165 + $0x5c] sm:$0xf]
      %v861 = vld [vmem:[%s165 + $0x60] sm:$0xf]
      %v862 = vld [vmem:[%s165 + $0x64] sm:$0xf]
      %v863 = vld [vmem:[%s165 + $0x68] sm:$0xf]
      %v864 = vld [vmem:[%s165 + $0x6c] sm:$0xf]
      %v865 = vld [vmem:[%s165 + $0x70] sm:$0xf]
      %v866 = vld [vmem:[%s165 + $0x74] sm:$0xf]
      %v867 = vld [vmem:[%s165 + $0x78] sm:$0xf]
      %v868 = vld [vmem:[%s165 + $0x7c] sm:$0xf]
      %v869 = vld [vmem:[%s165 + $0x80] sm:$0xf]
      %v870 = vld [vmem:[%s165 + $0x84] sm:$0xf]
      %v871 = vld [vmem:[%s165 + $0x88] sm:$0xf]
      %v872 = vld [vmem:[%s165 + $0x8c] sm:$0xf]
      %v873 = vld [vmem:[%s165 + $0x90] sm:$0xf]
      %v874 = vld [vmem:[%s165 + $0x94] sm:$0xf]
      %v875 = vld [vmem:[%s165 + $0x98] sm:$0xf]
      %v876 = vld [vmem:[%s165 + $0x9c] sm:$0xf]
      %v877 = vld [vmem:[%s165 + $0xa0] sm:$0xf]
      %v878 = vld [vmem:[%s165 + $0xa4] sm:$0xf]
      %v879 = vld [vmem:[%s165 + $0xa8] sm:$0xf]
      %v880 = vld [vmem:[%s165 + $0xac] sm:$0xf]
      %v881 = vld [vmem:[%s165 + $0xb0] sm:$0xf]
      %v882 = vld [vmem:[%s165 + $0xb4] sm:$0xf]
      %v883 = vld [vmem:[%s165 + $0xb8] sm:$0xf]
      %v884 = vld [vmem:[%s165 + $0xbc] sm:$0xf]
      %v885 = vld [vmem:[%s165 + $0xc0] sm:$0xf]
      %v886 = vld [vmem:[%s165 + $0xc4] sm:$0xf]
      %v887 = vld [vmem:[%s165 + $0xc8] sm:$0xf]
      %v888 = vld [vmem:[%s165 + $0xcc] sm:$0xf]
      %v889 = vld [vmem:[%s165 + $0xd0] sm:$0xf]
      %v890 = vld [vmem:[%s165 + $0xd4] sm:$0xf]
      %s891 = scalar_lea.vmem %s1, 16
      %v892 = vld [vmem:[%s891] sm:$0xff]
      %v893 = vld [vmem:[%s891 + $0x8] sm:$0x33]
      %v945 = vunpack.c.l.b16 %v840
      %v946 = vunpack.c.l.b16 %v841
      %v947 = vunpack.c.l.b16 %v842
      %v948 = vunpack.c.l.b16 %v843
      %v949 = vunpack.c.l.b16 %v844
      %v950 = vunpack.c.l.b16 %v845
      %v951 = vunpack.c.l.b16 %v846
      %v952 = vunpack.c.l.b16 %v847
      %v953 = vunpack.c.l.b16 %v848
      %v954 = vunpack.c.l.b16 %v849
      %v955 = vunpack.c.l.b16 %v850
      %v956 = vunpack.c.l.b16 %v851
      %v957 = vunpack.c.l.b16 %v852
      %v958 = vunpack.c.l.b16 %v853
      %v959 = vunpack.c.l.b16 %v854
      %v960 = vunpack.c.l.b16 %v855
      %v961 = vunpack.c.l.b16 %v856
      %v962 = vunpack.c.l.b16 %v857
      %v963 = vunpack.c.l.b16 %v858
      %v964 = vunpack.c.l.b16 %v859
      %v965 = vunpack.c.l.b16 %v860
      %v966 = vunpack.c.l.b16 %v861
      %v967 = vunpack.c.l.b16 %v862
      %v968 = vunpack.c.l.b16 %v863
      %v969 = vunpack.c.l.b16 %v864
      %v970 = vunpack.c.l.b16 %v865
      %v971 = vunpack.c.l.b16 %v866
      %v972 = vunpack.c.l.b16 %v867
      %v973 = vunpack.c.l.b16 %v868
      %v974 = vunpack.c.l.b16 %v869
      %v975 = vunpack.c.l.b16 %v870
      %v976 = vunpack.c.l.b16 %v871
      %v977 = vunpack.c.l.b16 %v872
      %v978 = vunpack.c.l.b16 %v873
      %v979 = vunpack.c.l.b16 %v874
      %v980 = vunpack.c.l.b16 %v875
      %v981 = vunpack.c.l.b16 %v876
      %v982 = vunpack.c.l.b16 %v877
      %v983 = vunpack.c.l.b16 %v878
      %v984 = vunpack.c.l.b16 %v879
      %v985 = vunpack.c.l.b16 %v880
      %v986 = vunpack.c.l.b16 %v881
      %v987 = vunpack.c.l.b16 %v882
      %v988 = vunpack.c.l.b16 %v883
      %v989 = vunpack.c.l.b16 %v884
      %v990 = vunpack.c.l.b16 %v885
      %v991 = vunpack.c.l.b16 %v886
      %v992 = vunpack.c.l.b16 %v887
      %v993 = vunpack.c.l.b16 %v888
      %v994 = vunpack.c.l.b16 %v889
      %v995 = vunpack.c.l.b16 %v890
      %v996 = vpack.c.b16 %v946, %v945
      %v997 = vpack.c.b16 %v948, %v947
      %v998 = vpack.c.b16 %v950, %v949
      %v999 = vpack.c.b16 %v952, %v951
      %v1000 = vpack.c.b16 %v954, %v953
      %v1001 = vpack.c.b16 %v956, %v955
      %v1002 = vpack.c.b16 %v958, %v957
      %v1003 = vpack.c.b16 %v960, %v959
      %v1004 = vpack.c.b16 %v962, %v961
      %v1005 = vpack.c.b16 %v964, %v963
      %v1006 = vpack.c.b16 %v966, %v965
      %v1007 = vpack.c.b16 %v968, %v967
      %v1008 = vpack.c.b16 %v970, %v969
      %v1009 = vpack.c.b16 %v972, %v971
      %v1010 = vpack.c.b16 %v974, %v973
      %v1011 = vpack.c.b16 %v976, %v975
      %v1012 = vpack.c.b16 %v978, %v977
      %v1013 = vpack.c.b16 %v980, %v979
      %v1014 = vpack.c.b16 %v982, %v981
      %v1015 = vpack.c.b16 %v984, %v983
      %v1016 = vpack.c.b16 %v986, %v985
      %v1017 = vpack.c.b16 %v988, %v987
      %v1018 = vpack.c.b16 %v990, %v989
      %v1019 = vpack.c.b16 %v992, %v991
      %v1020 = vpack.c.b16 %v994, %v993
      %v1021 = vpack.c.b16 %v995, %v995
      %v1024 = vunpack.c.l.b16 %v892
      %v1025 = vunpack.c.h.b16 %v892
      %v1026 = vunpack.c.l.b16 %v893
      %v1027 = vunpack.c.h.b16 %v893
      %v1028 = vpack.c.b16 %v1026, %v1024
      %v1029 = vpack.c.b16 %v1027, %v1025
      %v1031 = vsel %vm361, %v996, 0
      %v1034 = vsel %vm361, %v997, 0
      %v1037 = vsel %vm361, %v998, 0
      %v1040 = vsel %vm361, %v999, 0
      %v1043 = vsel %vm361, %v1000, 0
      %v1046 = vsel %vm361, %v1001, 0
      %v1049 = vsel %vm361, %v1002, 0
      %v1052 = vsel %vm361, %v1003, 0
      %v1055 = vsel %vm361, %v1004, 0
      %v1058 = vsel %vm361, %v1005, 0
      %v1061 = vsel %vm361, %v1006, 0
      %v1064 = vsel %vm361, %v1007, 0
      %v1067 = vsel %vm361, %v1008, 0
      %v1070 = vsel %vm361, %v1009, 0
      %v1073 = vsel %vm361, %v1010, 0
      %v1076 = vsel %vm361, %v1011, 0
      %v1079 = vsel %vm361, %v1012, 0
      %v1082 = vsel %vm361, %v1013, 0
      %v1085 = vsel %vm361, %v1014, 0
      %v1088 = vsel %vm361, %v1015, 0
      %v1091 = vsel %vm361, %v1016, 0
      %v1094 = vsel %vm361, %v1017, 0
      %v1097 = vsel %vm361, %v1018, 0
      %v1100 = vsel %vm361, %v1019, 0
      %v1103 = vsel %vm361, %v1020, 0
      %v1106 = vsel %vm361, %v1021, 0
      %v1109 = vsel %vm440, %v1028, 0
      %v1112 = vsel %vm440, %v1029, 0
      %1114 = vmatprep.subr.bf16.mxu0 0
      %1115 = vmatpush1.bf16.msra.mxu0 0
      %1116 = vmatprep.subr.bf16.mxu0 0
      %1117 = vmatpush1.bf16.msra.mxu0 0
      %1118 = vmatprep.subr.bf16.mxu0 0
      %1119 = vmatpush1.bf16.msra.mxu0 0
      %1120 = vmatprep.subr.bf16.mxu0 0
      %1121 = vmatpush1.bf16.msra.mxu0 0
      %1122 = vmatprep.subr.bf16.mxu0 0
      %1123 = vmatpush1.bf16.msra.mxu0 0
      %1124 = vmatprep.subr.bf16.mxu0 0
      %1125 = vmatpush1.bf16.msra.mxu0 0
      %1126 = vmatprep.subr.bf16.mxu0 0
      %1127 = vmatpush1.bf16.msra.mxu0 0
      %1128 = vmatprep.subr.bf16.mxu0 %v1112
      %1129 = vmatpush1.bf16.msra.mxu0 %v1109
      %1130 = vmatprep.subr.bf16.mxu0 0
      %1131 = vmatpush2.bf16.msra.mxu0 0
      %1132 = vmatprep.subr.bf16.mxu0 0
      %1133 = vmatpush2.bf16.msra.mxu0 0
      %1134 = vmatprep.subr.bf16.mxu0 0
      %1135 = vmatpush2.bf16.msra.mxu0 0
      %1136 = vmatprep.subr.bf16.mxu0 0
      %1137 = vmatpush2.bf16.msra.mxu0 0
      %1138 = vmatprep.subr.bf16.mxu0 0
      %1139 = vmatpush2.bf16.msra.mxu0 0
      %1140 = vmatprep.subr.bf16.mxu0 0
      %1141 = vmatpush2.bf16.msra.mxu0 0
      %1142 = vmatprep.subr.bf16.mxu0 0
      %1143 = vmatpush2.bf16.msra.mxu0 0
      %1144 = vmatprep.subr.bf16.mxu0 0
      %1145 = vmatpush2.bf16.msra.mxu0 0
      %1146 = vmatprep.mubr.bf16.mxu0 0
      %1147 = vmatmul.mubr.bf16.gmra.mxu0 %v1031
      %v1148 = vpop.f32.mrf.mxu0
      %v1149 = vadd.f32 0.0, %v1148
      %v1150 = vpop.f32.mrf.mxu0
      %v1151 = vadd.f32 0.0, %v1150
      %v1152 = vpop.f32.mrf.mxu0
      %v1153 = vadd.f32 0.0, %v1152
      %v1154 = vpop.f32.mrf.mxu0
      %v1155 = vadd.f32 0.0, %v1154
      %1156 = vmatprep.mubr.bf16.mxu0 0
      %1157 = vmatmul.mubr.bf16.gmra.mxu0 %v1034
      %v1158 = vpop.f32.mrf.mxu0
      %v1159 = vadd.f32 0.0, %v1158
      %v1160 = vpop.f32.mrf.mxu0
      %v1161 = vadd.f32 0.0, %v1160
      %v1162 = vpop.f32.mrf.mxu0
      %v1163 = vadd.f32 0.0, %v1162
      %v1164 = vpop.f32.mrf.mxu0
      %v1165 = vadd.f32 0.0, %v1164
      %1166 = vmatprep.mubr.bf16.mxu0 0
      %1167 = vmatmul.mubr.bf16.gmra.mxu0 %v1037
      %v1168 = vpop.f32.mrf.mxu0
      %v1169 = vadd.f32 0.0, %v1168
      %v1170 = vpop.f32.mrf.mxu0
      %v1171 = vadd.f32 0.0, %v1170
      %v1172 = vpop.f32.mrf.mxu0
      %v1173 = vadd.f32 0.0, %v1172
      %v1174 = vpop.f32.mrf.mxu0
      %v1175 = vadd.f32 0.0, %v1174
      %1176 = vmatprep.mubr.bf16.mxu0 0
      %1177 = vmatmul.mubr.bf16.gmra.mxu0 %v1040
      %v1178 = vpop.f32.mrf.mxu0
      %v1179 = vadd.f32 0.0, %v1178
      %v1180 = vpop.f32.mrf.mxu0
      %v1181 = vadd.f32 0.0, %v1180
      %v1182 = vpop.f32.mrf.mxu0
      %v1183 = vadd.f32 0.0, %v1182
      %v1184 = vpop.f32.mrf.mxu0
      %v1185 = vadd.f32 0.0, %v1184
      %1186 = vmatprep.mubr.bf16.mxu0 0
      %1187 = vmatmul.mubr.bf16.gmra.mxu0 %v1043
      %v1188 = vpop.f32.mrf.mxu0
      %v1189 = vadd.f32 0.0, %v1188
      %v1190 = vpop.f32.mrf.mxu0
      %v1191 = vadd.f32 0.0, %v1190
      %v1192 = vpop.f32.mrf.mxu0
      %v1193 = vadd.f32 0.0, %v1192
      %v1194 = vpop.f32.mrf.mxu0
      %v1195 = vadd.f32 0.0, %v1194
      %1196 = vmatprep.mubr.bf16.mxu0 0
      %1197 = vmatmul.mubr.bf16.gmra.mxu0 %v1046
      %v1198 = vpop.f32.mrf.mxu0
      %v1199 = vadd.f32 0.0, %v1198
      %v1200 = vpop.f32.mrf.mxu0
      %v1201 = vadd.f32 0.0, %v1200
      %v1202 = vpop.f32.mrf.mxu0
      %v1203 = vadd.f32 0.0, %v1202
      %v1204 = vpop.f32.mrf.mxu0
      %v1205 = vadd.f32 0.0, %v1204
      %1206 = vmatprep.mubr.bf16.mxu0 0
      %1207 = vmatmul.mubr.bf16.gmra.mxu0 %v1049
      %v1208 = vpop.f32.mrf.mxu0
      %v1209 = vadd.f32 0.0, %v1208
      %v1210 = vpop.f32.mrf.mxu0
      %v1211 = vadd.f32 0.0, %v1210
      %v1212 = vpop.f32.mrf.mxu0
      %v1213 = vadd.f32 0.0, %v1212
      %v1214 = vpop.f32.mrf.mxu0
      %v1215 = vadd.f32 0.0, %v1214
      %1216 = vmatprep.mubr.bf16.mxu0 0
      %1217 = vmatmul.mubr.bf16.gmra.mxu0 %v1052
      %v1218 = vpop.f32.mrf.mxu0
      %v1219 = vadd.f32 0.0, %v1218
      %v1220 = vpop.f32.mrf.mxu0
      %v1221 = vadd.f32 0.0, %v1220
      %v1222 = vpop.f32.mrf.mxu0
      %v1223 = vadd.f32 0.0, %v1222
      %v1224 = vpop.f32.mrf.mxu0
      %v1225 = vadd.f32 0.0, %v1224
      %1226 = vmatprep.mubr.bf16.mxu0 0
      %1227 = vmatmul.mubr.bf16.gmra.mxu0 %v1055
      %v1228 = vpop.f32.mrf.mxu0
      %v1229 = vadd.f32 0.0, %v1228
      %v1230 = vpop.f32.mrf.mxu0
      %v1231 = vadd.f32 0.0, %v1230
      %v1232 = vpop.f32.mrf.mxu0
      %v1233 = vadd.f32 0.0, %v1232
      %v1234 = vpop.f32.mrf.mxu0
      %v1235 = vadd.f32 0.0, %v1234
      %1236 = vmatprep.mubr.bf16.mxu0 0
      %1237 = vmatmul.mubr.bf16.gmra.mxu0 %v1058
      %v1238 = vpop.f32.mrf.mxu0
      %v1239 = vadd.f32 0.0, %v1238
      %v1240 = vpop.f32.mrf.mxu0
      %v1241 = vadd.f32 0.0, %v1240
      %v1242 = vpop.f32.mrf.mxu0
      %v1243 = vadd.f32 0.0, %v1242
      %v1244 = vpop.f32.mrf.mxu0
      %v1245 = vadd.f32 0.0, %v1244
      %1246 = vmatprep.mubr.bf16.mxu0 0
      %1247 = vmatmul.mubr.bf16.gmra.mxu0 %v1061
      %v1248 = vpop.f32.mrf.mxu0
      %v1249 = vadd.f32 0.0, %v1248
      %v1250 = vpop.f32.mrf.mxu0
      %v1251 = vadd.f32 0.0, %v1250
      %v1252 = vpop.f32.mrf.mxu0
      %v1253 = vadd.f32 0.0, %v1252
      %v1254 = vpop.f32.mrf.mxu0
      %v1255 = vadd.f32 0.0, %v1254
      %1256 = vmatprep.mubr.bf16.mxu0 0
      %1257 = vmatmul.mubr.bf16.gmra.mxu0 %v1064
      %v1258 = vpop.f32.mrf.mxu0
      %v1259 = vadd.f32 0.0, %v1258
      %v1260 = vpop.f32.mrf.mxu0
      %v1261 = vadd.f32 0.0, %v1260
      %v1262 = vpop.f32.mrf.mxu0
      %v1263 = vadd.f32 0.0, %v1262
      %v1264 = vpop.f32.mrf.mxu0
      %v1265 = vadd.f32 0.0, %v1264
      %1266 = vmatprep.mubr.bf16.mxu0 0
      %1267 = vmatmul.mubr.bf16.gmra.mxu0 %v1067
      %v1268 = vpop.f32.mrf.mxu0
      %v1269 = vadd.f32 0.0, %v1268
      %v1270 = vpop.f32.mrf.mxu0
      %v1271 = vadd.f32 0.0, %v1270
      %v1272 = vpop.f32.mrf.mxu0
      %v1273 = vadd.f32 0.0, %v1272
      %v1274 = vpop.f32.mrf.mxu0
      %v1275 = vadd.f32 0.0, %v1274
      %1276 = vmatprep.mubr.bf16.mxu0 0
      %1277 = vmatmul.mubr.bf16.gmra.mxu0 %v1070
      %v1278 = vpop.f32.mrf.mxu0
      %v1279 = vadd.f32 0.0, %v1278
      %v1280 = vpop.f32.mrf.mxu0
      %v1281 = vadd.f32 0.0, %v1280
      %v1282 = vpop.f32.mrf.mxu0
      %v1283 = vadd.f32 0.0, %v1282
      %v1284 = vpop.f32.mrf.mxu0
      %v1285 = vadd.f32 0.0, %v1284
      %1286 = vmatprep.mubr.bf16.mxu0 0
      %1287 = vmatmul.mubr.bf16.gmra.mxu0 %v1073
      %v1288 = vpop.f32.mrf.mxu0
      %v1289 = vadd.f32 0.0, %v1288
      %v1290 = vpop.f32.mrf.mxu0
      %v1291 = vadd.f32 0.0, %v1290
      %v1292 = vpop.f32.mrf.mxu0
      %v1293 = vadd.f32 0.0, %v1292
      %v1294 = vpop.f32.mrf.mxu0
      %v1295 = vadd.f32 0.0, %v1294
      %1296 = vmatprep.mubr.bf16.mxu0 0
      %1297 = vmatmul.mubr.bf16.gmra.mxu0 %v1076
      %v1298 = vpop.f32.mrf.mxu0
      %v1299 = vadd.f32 0.0, %v1298
      %v1300 = vpop.f32.mrf.mxu0
      %v1301 = vadd.f32 0.0, %v1300
      %v1302 = vpop.f32.mrf.mxu0
      %v1303 = vadd.f32 0.0, %v1302
      %v1304 = vpop.f32.mrf.mxu0
      %v1305 = vadd.f32 0.0, %v1304
      %1306 = vmatprep.mubr.bf16.mxu0 0
      %1307 = vmatmul.mubr.bf16.gmra.mxu0 %v1079
      %v1308 = vpop.f32.mrf.mxu0
      %v1309 = vadd.f32 0.0, %v1308
      %v1310 = vpop.f32.mrf.mxu0
      %v1311 = vadd.f32 0.0, %v1310
      %v1312 = vpop.f32.mrf.mxu0
      %v1313 = vadd.f32 0.0, %v1312
      %v1314 = vpop.f32.mrf.mxu0
      %v1315 = vadd.f32 0.0, %v1314
      %1316 = vmatprep.mubr.bf16.mxu0 0
      %1317 = vmatmul.mubr.bf16.gmra.mxu0 %v1082
      %v1318 = vpop.f32.mrf.mxu0
      %v1319 = vadd.f32 0.0, %v1318
      %v1320 = vpop.f32.mrf.mxu0
      %v1321 = vadd.f32 0.0, %v1320
      %v1322 = vpop.f32.mrf.mxu0
      %v1323 = vadd.f32 0.0, %v1322
      %v1324 = vpop.f32.mrf.mxu0
      %v1325 = vadd.f32 0.0, %v1324
      %1326 = vmatprep.mubr.bf16.mxu0 0
      %1327 = vmatmul.mubr.bf16.gmra.mxu0 %v1085
      %v1328 = vpop.f32.mrf.mxu0
      %v1329 = vadd.f32 0.0, %v1328
      %v1330 = vpop.f32.mrf.mxu0
      %v1331 = vadd.f32 0.0, %v1330
      %v1332 = vpop.f32.mrf.mxu0
      %v1333 = vadd.f32 0.0, %v1332
      %v1334 = vpop.f32.mrf.mxu0
      %v1335 = vadd.f32 0.0, %v1334
      %1336 = vmatprep.mubr.bf16.mxu0 0
      %1337 = vmatmul.mubr.bf16.gmra.mxu0 %v1088
      %v1338 = vpop.f32.mrf.mxu0
      %v1339 = vadd.f32 0.0, %v1338
      %v1340 = vpop.f32.mrf.mxu0
      %v1341 = vadd.f32 0.0, %v1340
      %v1342 = vpop.f32.mrf.mxu0
      %v1343 = vadd.f32 0.0, %v1342
      %v1344 = vpop.f32.mrf.mxu0
      %v1345 = vadd.f32 0.0, %v1344
      %1346 = vmatprep.mubr.bf16.mxu0 0
      %1347 = vmatmul.mubr.bf16.gmra.mxu0 %v1091
      %v1348 = vpop.f32.mrf.mxu0
      %v1349 = vadd.f32 0.0, %v1348
      %v1350 = vpop.f32.mrf.mxu0
      %v1351 = vadd.f32 0.0, %v1350
      %v1352 = vpop.f32.mrf.mxu0
      %v1353 = vadd.f32 0.0, %v1352
      %v1354 = vpop.f32.mrf.mxu0
      %v1355 = vadd.f32 0.0, %v1354
      %1356 = vmatprep.mubr.bf16.mxu0 0
      %1357 = vmatmul.mubr.bf16.gmra.mxu0 %v1094
      %v1358 = vpop.f32.mrf.mxu0
      %v1359 = vadd.f32 0.0, %v1358
      %v1360 = vpop.f32.mrf.mxu0
      %v1361 = vadd.f32 0.0, %v1360
      %v1362 = vpop.f32.mrf.mxu0
      %v1363 = vadd.f32 0.0, %v1362
      %v1364 = vpop.f32.mrf.mxu0
      %v1365 = vadd.f32 0.0, %v1364
      %1366 = vmatprep.mubr.bf16.mxu0 0
      %1367 = vmatmul.mubr.bf16.gmra.mxu0 %v1097
      %v1368 = vpop.f32.mrf.mxu0
      %v1369 = vadd.f32 0.0, %v1368
      %v1370 = vpop.f32.mrf.mxu0
      %v1371 = vadd.f32 0.0, %v1370
      %v1372 = vpop.f32.mrf.mxu0
      %v1373 = vadd.f32 0.0, %v1372
      %v1374 = vpop.f32.mrf.mxu0
      %v1375 = vadd.f32 0.0, %v1374
      %1376 = vmatprep.mubr.bf16.mxu0 0
      %1377 = vmatmul.mubr.bf16.gmra.mxu0 %v1100
      %v1378 = vpop.f32.mrf.mxu0
      %v1379 = vadd.f32 0.0, %v1378
      %v1380 = vpop.f32.mrf.mxu0
      %v1381 = vadd.f32 0.0, %v1380
      %v1382 = vpop.f32.mrf.mxu0
      %v1383 = vadd.f32 0.0, %v1382
      %v1384 = vpop.f32.mrf.mxu0
      %v1385 = vadd.f32 0.0, %v1384
      %1386 = vmatprep.mubr.bf16.mxu0 0
      %1387 = vmatmul.mubr.bf16.gmra.mxu0 %v1103
      %v1388 = vpop.f32.mrf.mxu0
      %v1389 = vadd.f32 0.0, %v1388
      %v1390 = vpop.f32.mrf.mxu0
      %v1391 = vadd.f32 0.0, %v1390
      %v1392 = vpop.f32.mrf.mxu0
      %v1393 = vadd.f32 0.0, %v1392
      %v1394 = vpop.f32.mrf.mxu0
      %v1395 = vadd.f32 0.0, %v1394
      %1396 = vmatprep.mubr.bf16.mxu0 0
      %1397 = vmatmul.mubr.bf16.gmra.mxu0 %v1106
      %v1398 = vpop.f32.mrf.mxu0
      %v1399 = vadd.f32 0.0, %v1398
      %v1400 = vpop.f32.mrf.mxu0
      %v1401 = vadd.f32 0.0, %v1400
      %v1402 = vpop.f32.mrf.mxu0
      %v1403 = vpop.f32.mrf.mxu0
      %1404 = vdwg.mxu0
      %v1405 = vld [vmem:[#allocation2] sm:$0xff]
      %v1406 = vld [vmem:[#allocation2 + $0x8] sm:$0xff]
      %v1407 = vld [vmem:[#allocation2 + $0x10] sm:$0xff]
      %v1408 = vld [vmem:[#allocation2 + $0x18] sm:$0xff]
      %v1409 = vld [vmem:[#allocation2 + $0x20] sm:$0xff]
      %v1410 = vld [vmem:[#allocation2 + $0x28] sm:$0xff]
      %v1411 = vld [vmem:[#allocation2 + $0x30] sm:$0xff]
      %v1412 = vld [vmem:[#allocation2 + $0x38] sm:$0xff]
      %v1413 = vld [vmem:[#allocation2 + $0x40] sm:$0xff]
      %v1414 = vld [vmem:[#allocation2 + $0x48] sm:$0xff]
      %v1415 = vld [vmem:[#allocation2 + $0x50] sm:$0xff]
      %v1416 = vld [vmem:[#allocation2 + $0x58] sm:$0xff]
      %v1417 = vld [vmem:[#allocation2 + $0x60] sm:$0xff]
      %v1418 = vld [vmem:[#allocation2 + $0x68] sm:$0xff]
      %v1419 = vld [vmem:[#allocation2 + $0x70] sm:$0xff]
      %v1420 = vld [vmem:[#allocation2 + $0x78] sm:$0xff]
      %v1421 = vld [vmem:[#allocation2 + $0x80] sm:$0xff]
      %v1422 = vld [vmem:[#allocation2 + $0x88] sm:$0xff]
      %v1423 = vld [vmem:[#allocation2 + $0x90] sm:$0xff]
      %v1424 = vld [vmem:[#allocation2 + $0x98] sm:$0xff]
      %v1425 = vld [vmem:[#allocation2 + $0xa0] sm:$0xff]
      %v1426 = vld [vmem:[#allocation2 + $0xa8] sm:$0xff]
      %v1427 = vld [vmem:[#allocation2 + $0xb0] sm:$0xff]
      %v1428 = vld [vmem:[#allocation2 + $0xb8] sm:$0xff]
      %v1429 = vld [vmem:[#allocation2 + $0xc0] sm:$0xff]
      %v1430 = vld [vmem:[#allocation2 + $0xc8] sm:$0xff]
      %v1431 = vld [vmem:[#allocation2 + $0xd0] sm:$0xff]
      %v1432 = vld [vmem:[#allocation2 + $0xd8] sm:$0xff]
      %v1433 = vld [vmem:[#allocation2 + $0xe0] sm:$0xff]
      %v1434 = vld [vmem:[#allocation2 + $0xe8] sm:$0xff]
      %v1435 = vld [vmem:[#allocation2 + $0xf0] sm:$0xff]
      %v1436 = vld [vmem:[#allocation2 + $0xf8] sm:$0xff]
      %v1437 = vld [vmem:[#allocation2 + $0x100] sm:$0xff]
      %v1438 = vld [vmem:[#allocation2 + $0x108] sm:$0xff]
      %v1439 = vld [vmem:[#allocation2 + $0x110] sm:$0xff]
      %v1440 = vld [vmem:[#allocation2 + $0x118] sm:$0xff]
      %v1441 = vld [vmem:[#allocation2 + $0x120] sm:$0xff]
      %v1442 = vld [vmem:[#allocation2 + $0x128] sm:$0xff]
      %v1443 = vld [vmem:[#allocation2 + $0x130] sm:$0xff]
      %v1444 = vld [vmem:[#allocation2 + $0x138] sm:$0xff]
      %v1445 = vld [vmem:[#allocation2 + $0x140] sm:$0xff]
      %v1446 = vld [vmem:[#allocation2 + $0x148] sm:$0xff]
      %v1447 = vld [vmem:[#allocation2 + $0x150] sm:$0xff]
      %v1448 = vld [vmem:[#allocation2 + $0x158] sm:$0xff]
      %v1449 = vld [vmem:[#allocation2 + $0x160] sm:$0xff]
      %v1450 = vld [vmem:[#allocation2 + $0x168] sm:$0xff]
      %v1451 = vld [vmem:[#allocation2 + $0x170] sm:$0xff]
      %v1452 = vld [vmem:[#allocation2 + $0x178] sm:$0xff]
      %v1453 = vld [vmem:[#allocation2 + $0x180] sm:$0xff]
      %v1454 = vld [vmem:[#allocation2 + $0x188] sm:$0xff]
      %v1455 = vld [vmem:[#allocation2 + $0x190] sm:$0xff]
      %v1456 = vld [vmem:[#allocation2 + $0x198] sm:$0xff]
      %v1457 = vld [vmem:[#allocation2 + $0x1a0] sm:$0xff]
      %v1458 = vld [vmem:[#allocation2 + $0x1a8] sm:$0xff]
      %v1459 = vld [vmem:[#allocation2 + $0x1b0] sm:$0xff]
      %v1460 = vld [vmem:[#allocation2 + $0x1b8] sm:$0xff]
      %v1461 = vld [vmem:[#allocation2 + $0x1c0] sm:$0xff]
      %v1462 = vld [vmem:[#allocation2 + $0x1c8] sm:$0xff]
      %v1463 = vld [vmem:[#allocation2 + $0x1d0] sm:$0xff]
      %v1464 = vld [vmem:[#allocation2 + $0x1d8] sm:$0xff]
      %v1465 = vld [vmem:[#allocation2 + $0x1e0] sm:$0xff]
      %v1466 = vld [vmem:[#allocation2 + $0x1e8] sm:$0xff]
      %v1467 = vld [vmem:[#allocation2 + $0x1f0] sm:$0xff]
      %v1468 = vld [vmem:[#allocation2 + $0x1f8] sm:$0xff]
      %v1469 = vld [vmem:[#allocation2 + $0x200] sm:$0xff]
      %v1470 = vld [vmem:[#allocation2 + $0x208] sm:$0xff]
      %v1471 = vld [vmem:[#allocation2 + $0x210] sm:$0xff]
      %v1472 = vld [vmem:[#allocation2 + $0x218] sm:$0xff]
      %v1473 = vld [vmem:[#allocation2 + $0x220] sm:$0xff]
      %v1474 = vld [vmem:[#allocation2 + $0x228] sm:$0xff]
      %v1475 = vld [vmem:[#allocation2 + $0x230] sm:$0xff]
      %v1476 = vld [vmem:[#allocation2 + $0x238] sm:$0xff]
      %v1477 = vld [vmem:[#allocation2 + $0x240] sm:$0xff]
      %v1478 = vld [vmem:[#allocation2 + $0x248] sm:$0xff]
      %v1479 = vld [vmem:[#allocation2 + $0x250] sm:$0xff]
      %v1480 = vld [vmem:[#allocation2 + $0x258] sm:$0xff]
      %v1481 = vld [vmem:[#allocation2 + $0x260] sm:$0xff]
      %v1482 = vld [vmem:[#allocation2 + $0x268] sm:$0xff]
      %v1483 = vld [vmem:[#allocation2 + $0x270] sm:$0xff]
      %v1484 = vld [vmem:[#allocation2 + $0x278] sm:$0xff]
      %v1485 = vld [vmem:[#allocation2 + $0x280] sm:$0xff]
      %v1486 = vld [vmem:[#allocation2 + $0x288] sm:$0xff]
      %v1487 = vld [vmem:[#allocation2 + $0x290] sm:$0xff]
      %v1488 = vld [vmem:[#allocation2 + $0x298] sm:$0xff]
      %v1489 = vld [vmem:[#allocation2 + $0x2a0] sm:$0xff]
      %v1490 = vld [vmem:[#allocation2 + $0x2a8] sm:$0xff]
      %v1491 = vld [vmem:[#allocation2 + $0x2b0] sm:$0xff]
      %v1492 = vld [vmem:[#allocation2 + $0x2b8] sm:$0xff]
      %v1493 = vld [vmem:[#allocation2 + $0x2c0] sm:$0xff]
      %v1494 = vld [vmem:[#allocation2 + $0x2c8] sm:$0xff]
      %v1495 = vld [vmem:[#allocation2 + $0x2d0] sm:$0xff]
      %v1496 = vld [vmem:[#allocation2 + $0x2d8] sm:$0xff]
      %v1497 = vld [vmem:[#allocation2 + $0x2e0] sm:$0xff]
      %v1498 = vld [vmem:[#allocation2 + $0x2e8] sm:$0xff]
      %v1499 = vld [vmem:[#allocation2 + $0x2f0] sm:$0xff]
      %v1500 = vld [vmem:[#allocation2 + $0x2f8] sm:$0xff]
      %v1501 = vld [vmem:[#allocation2 + $0x300] sm:$0xff]
      %v1502 = vld [vmem:[#allocation2 + $0x308] sm:$0xff]
      %v1503 = vld [vmem:[#allocation2 + $0x310] sm:$0xff]
      %v1504 = vld [vmem:[#allocation2 + $0x318] sm:$0xff]
      %v1505 = vld [vmem:[#allocation2 + $0x320] sm:$0xff]
      %v1506 = vld [vmem:[#allocation2 + $0x328] sm:$0xff]
      %v1507 = vadd.f32 %v1405, %v1149
      %v1508 = vadd.f32 %v1406, %v1151
      %v1509 = vadd.f32 %v1407, %v1153
      %v1510 = vadd.f32 %v1408, %v1155
      %v1511 = vadd.f32 %v1409, %v1159
      %v1512 = vadd.f32 %v1410, %v1161
      %v1513 = vadd.f32 %v1411, %v1163
      %v1514 = vadd.f32 %v1412, %v1165
      %v1515 = vadd.f32 %v1413, %v1169
      %v1516 = vadd.f32 %v1414, %v1171
      %v1517 = vadd.f32 %v1415, %v1173
      %v1518 = vadd.f32 %v1416, %v1175
      %v1519 = vadd.f32 %v1417, %v1179
      %v1520 = vadd.f32 %v1418, %v1181
      %v1521 = vadd.f32 %v1419, %v1183
      %v1522 = vadd.f32 %v1420, %v1185
      %v1523 = vadd.f32 %v1421, %v1189
      %v1524 = vadd.f32 %v1422, %v1191
      %v1525 = vadd.f32 %v1423, %v1193
      %v1526 = vadd.f32 %v1424, %v1195
      %v1527 = vadd.f32 %v1425, %v1199
      %v1528 = vadd.f32 %v1426, %v1201
      %v1529 = vadd.f32 %v1427, %v1203
      %v1530 = vadd.f32 %v1428, %v1205
      %v1531 = vadd.f32 %v1429, %v1209
      %v1532 = vadd.f32 %v1430, %v1211
      %v1533 = vadd.f32 %v1431, %v1213
      %v1534 = vadd.f32 %v1432, %v1215
      %v1535 = vadd.f32 %v1433, %v1219
      %v1536 = vadd.f32 %v1434, %v1221
      %v1537 = vadd.f32 %v1435, %v1223
      %v1538 = vadd.f32 %v1436, %v1225
      %v1539 = vadd.f32 %v1437, %v1229
      %v1540 = vadd.f32 %v1438, %v1231
      %v1541 = vadd.f32 %v1439, %v1233
      %v1542 = vadd.f32 %v1440, %v1235
      %v1543 = vadd.f32 %v1441, %v1239
      %v1544 = vadd.f32 %v1442, %v1241
      %v1545 = vadd.f32 %v1443, %v1243
      %v1546 = vadd.f32 %v1444, %v1245
      %v1547 = vadd.f32 %v1445, %v1249
      %v1548 = vadd.f32 %v1446, %v1251
      %v1549 = vadd.f32 %v1447, %v1253
      %v1550 = vadd.f32 %v1448, %v1255
      %v1551 = vadd.f32 %v1449, %v1259
      %v1552 = vadd.f32 %v1450, %v1261
      %v1553 = vadd.f32 %v1451, %v1263
      %v1554 = vadd.f32 %v1452, %v1265
      %v1555 = vadd.f32 %v1453, %v1269
      %v1556 = vadd.f32 %v1454, %v1271
      %v1557 = vadd.f32 %v1455, %v1273
      %v1558 = vadd.f32 %v1456, %v1275
      %v1559 = vadd.f32 %v1457, %v1279
      %v1560 = vadd.f32 %v1458, %v1281
      %v1561 = vadd.f32 %v1459, %v1283
      %v1562 = vadd.f32 %v1460, %v1285
      %v1563 = vadd.f32 %v1461, %v1289
      %v1564 = vadd.f32 %v1462, %v1291
      %v1565 = vadd.f32 %v1463, %v1293
      %v1566 = vadd.f32 %v1464, %v1295
      %v1567 = vadd.f32 %v1465, %v1299
      %v1568 = vadd.f32 %v1466, %v1301
      %v1569 = vadd.f32 %v1467, %v1303
      %v1570 = vadd.f32 %v1468, %v1305
      %v1571 = vadd.f32 %v1469, %v1309
      %v1572 = vadd.f32 %v1470, %v1311
      %v1573 = vadd.f32 %v1471, %v1313
      %v1574 = vadd.f32 %v1472, %v1315
      %v1575 = vadd.f32 %v1473, %v1319
      %v1576 = vadd.f32 %v1474, %v1321
      %v1577 = vadd.f32 %v1475, %v1323
      %v1578 = vadd.f32 %v1476, %v1325
      %v1579 = vadd.f32 %v1477, %v1329
      %v1580 = vadd.f32 %v1478, %v1331
      %v1581 = vadd.f32 %v1479, %v1333
      %v1582 = vadd.f32 %v1480, %v1335
      %v1583 = vadd.f32 %v1481, %v1339
      %v1584 = vadd.f32 %v1482, %v1341
      %v1585 = vadd.f32 %v1483, %v1343
      %v1586 = vadd.f32 %v1484, %v1345
      %v1587 = vadd.f32 %v1485, %v1349
      %v1588 = vadd.f32 %v1486, %v1351
      %v1589 = vadd.f32 %v1487, %v1353
      %v1590 = vadd.f32 %v1488, %v1355
      %v1591 = vadd.f32 %v1489, %v1359
      %v1592 = vadd.f32 %v1490, %v1361
      %v1593 = vadd.f32 %v1491, %v1363
      %v1594 = vadd.f32 %v1492, %v1365
      %v1595 = vadd.f32 %v1493, %v1369
      %v1596 = vadd.f32 %v1494, %v1371
      %v1597 = vadd.f32 %v1495, %v1373
      %v1598 = vadd.f32 %v1496, %v1375
      %v1599 = vadd.f32 %v1497, %v1379
      %v1600 = vadd.f32 %v1498, %v1381
      %v1601 = vadd.f32 %v1499, %v1383
      %v1602 = vadd.f32 %v1500, %v1385
      %v1603 = vadd.f32 %v1501, %v1389
      %v1604 = vadd.f32 %v1502, %v1391
      %v1605 = vadd.f32 %v1503, %v1393
      %v1606 = vadd.f32 %v1504, %v1395
      %v1607 = vadd.f32 %v1505, %v1399
      %v1608 = vadd.f32 %v1506, %v1401
      %1609 = vst [vmem:[#allocation2] sm:$0xff] %v1507
      %1610 = vst [vmem:[#allocation2 + $0x8] sm:$0xff] %v1508
      %1611 = vst [vmem:[#allocation2 + $0x10] sm:$0xff] %v1509
      %1612 = vst [vmem:[#allocation2 + $0x18] sm:$0xff] %v1510
      %1613 = vst [vmem:[#allocation2 + $0x20] sm:$0xff] %v1511
      %1614 = vst [vmem:[#allocation2 + $0x28] sm:$0xff] %v1512
      %1615 = vst [vmem:[#allocation2 + $0x30] sm:$0xff] %v1513
      %1616 = vst [vmem:[#allocation2 + $0x38] sm:$0xff] %v1514
      %1617 = vst [vmem:[#allocation2 + $0x40] sm:$0xff] %v1515
      %1618 = vst [vmem:[#allocation2 + $0x48] sm:$0xff] %v1516
      %1619 = vst [vmem:[#allocation2 + $0x50] sm:$0xff] %v1517
      %1620 = vst [vmem:[#allocation2 + $0x58] sm:$0xff] %v1518
      %1621 = vst [vmem:[#allocation2 + $0x60] sm:$0xff] %v1519
      %1622 = vst [vmem:[#allocation2 + $0x68] sm:$0xff] %v1520
      %1623 = vst [vmem:[#allocation2 + $0x70] sm:$0xff] %v1521
      %1624 = vst [vmem:[#allocation2 + $0x78] sm:$0xff] %v1522
      %1625 = vst [vmem:[#allocation2 + $0x80] sm:$0xff] %v1523
      %1626 = vst [vmem:[#allocation2 + $0x88] sm:$0xff] %v1524
      %1627 = vst [vmem:[#allocation2 + $0x90] sm:$0xff] %v1525
      %1628 = vst [vmem:[#allocation2 + $0x98] sm:$0xff] %v1526
      %1629 = vst [vmem:[#allocation2 + $0xa0] sm:$0xff] %v1527
      %1630 = vst [vmem:[#allocation2 + $0xa8] sm:$0xff] %v1528
      %1631 = vst [vmem:[#allocation2 + $0xb0] sm:$0xff] %v1529
      %1632 = vst [vmem:[#allocation2 + $0xb8] sm:$0xff] %v1530
      %1633 = vst [vmem:[#allocation2 + $0xc0] sm:$0xff] %v1531
      %1634 = vst [vmem:[#allocation2 + $0xc8] sm:$0xff] %v1532
      %1635 = vst [vmem:[#allocation2 + $0xd0] sm:$0xff] %v1533
      %1636 = vst [vmem:[#allocation2 + $0xd8] sm:$0xff] %v1534
      %1637 = vst [vmem:[#allocation2 + $0xe0] sm:$0xff] %v1535
      %1638 = vst [vmem:[#allocation2 + $0xe8] sm:$0xff] %v1536
      %1639 = vst [vmem:[#allocation2 + $0xf0] sm:$0xff] %v1537
      %1640 = vst [vmem:[#allocation2 + $0xf8] sm:$0xff] %v1538
      %1641 = vst [vmem:[#allocation2 + $0x100] sm:$0xff] %v1539
      %1642 = vst [vmem:[#allocation2 + $0x108] sm:$0xff] %v1540
      %1643 = vst [vmem:[#allocation2 + $0x110] sm:$0xff] %v1541
      %1644 = vst [vmem:[#allocation2 + $0x118] sm:$0xff] %v1542
      %1645 = vst [vmem:[#allocation2 + $0x120] sm:$0xff] %v1543
      %1646 = vst [vmem:[#allocation2 + $0x128] sm:$0xff] %v1544
      %1647 = vst [vmem:[#allocation2 + $0x130] sm:$0xff] %v1545
      %1648 = vst [vmem:[#allocation2 + $0x138] sm:$0xff] %v1546
      %1649 = vst [vmem:[#allocation2 + $0x140] sm:$0xff] %v1547
      %1650 = vst [vmem:[#allocation2 + $0x148] sm:$0xff] %v1548
      %1651 = vst [vmem:[#allocation2 + $0x150] sm:$0xff] %v1549
      %1652 = vst [vmem:[#allocation2 + $0x158] sm:$0xff] %v1550
      %1653 = vst [vmem:[#allocation2 + $0x160] sm:$0xff] %v1551
      %1654 = vst [vmem:[#allocation2 + $0x168] sm:$0xff] %v1552
      %1655 = vst [vmem:[#allocation2 + $0x170] sm:$0xff] %v1553
      %1656 = vst [vmem:[#allocation2 + $0x178] sm:$0xff] %v1554
      %1657 = vst [vmem:[#allocation2 + $0x180] sm:$0xff] %v1555
      %1658 = vst [vmem:[#allocation2 + $0x188] sm:$0xff] %v1556
      %1659 = vst [vmem:[#allocation2 + $0x190] sm:$0xff] %v1557
      %1660 = vst [vmem:[#allocation2 + $0x198] sm:$0xff] %v1558
      %1661 = vst [vmem:[#allocation2 + $0x1a0] sm:$0xff] %v1559
      %1662 = vst [vmem:[#allocation2 + $0x1a8] sm:$0xff] %v1560
      %1663 = vst [vmem:[#allocation2 + $0x1b0] sm:$0xff] %v1561
      %1664 = vst [vmem:[#allocation2 + $0x1b8] sm:$0xff] %v1562
      %1665 = vst [vmem:[#allocation2 + $0x1c0] sm:$0xff] %v1563
      %1666 = vst [vmem:[#allocation2 + $0x1c8] sm:$0xff] %v1564
      %1667 = vst [vmem:[#allocation2 + $0x1d0] sm:$0xff] %v1565
      %1668 = vst [vmem:[#allocation2 + $0x1d8] sm:$0xff] %v1566
      %1669 = vst [vmem:[#allocation2 + $0x1e0] sm:$0xff] %v1567
      %1670 = vst [vmem:[#allocation2 + $0x1e8] sm:$0xff] %v1568
      %1671 = vst [vmem:[#allocation2 + $0x1f0] sm:$0xff] %v1569
      %1672 = vst [vmem:[#allocation2 + $0x1f8] sm:$0xff] %v1570
      %1673 = vst [vmem:[#allocation2 + $0x200] sm:$0xff] %v1571
      %1674 = vst [vmem:[#allocation2 + $0x208] sm:$0xff] %v1572
      %1675 = vst [vmem:[#allocation2 + $0x210] sm:$0xff] %v1573
      %1676 = vst [vmem:[#allocation2 + $0x218] sm:$0xff] %v1574
      %1677 = vst [vmem:[#allocation2 + $0x220] sm:$0xff] %v1575
      %1678 = vst [vmem:[#allocation2 + $0x228] sm:$0xff] %v1576
      %1679 = vst [vmem:[#allocation2 + $0x230] sm:$0xff] %v1577
      %1680 = vst [vmem:[#allocation2 + $0x238] sm:$0xff] %v1578
      %1681 = vst [vmem:[#allocation2 + $0x240] sm:$0xff] %v1579
      %1682 = vst [vmem:[#allocation2 + $0x248] sm:$0xff] %v1580
      %1683 = vst [vmem:[#allocation2 + $0x250] sm:$0xff] %v1581
      %1684 = vst [vmem:[#allocation2 + $0x258] sm:$0xff] %v1582
      %1685 = vst [vmem:[#allocation2 + $0x260] sm:$0xff] %v1583
      %1686 = vst [vmem:[#allocation2 + $0x268] sm:$0xff] %v1584
      %1687 = vst [vmem:[#allocation2 + $0x270] sm:$0xff] %v1585
      %1688 = vst [vmem:[#allocation2 + $0x278] sm:$0xff] %v1586
      %1689 = vst [vmem:[#allocation2 + $0x280] sm:$0xff] %v1587
      %1690 = vst [vmem:[#allocation2 + $0x288] sm:$0xff] %v1588
      %1691 = vst [vmem:[#allocation2 + $0x290] sm:$0xff] %v1589
      %1692 = vst [vmem:[#allocation2 + $0x298] sm:$0xff] %v1590
      %1693 = vst [vmem:[#allocation2 + $0x2a0] sm:$0xff] %v1591
      %1694 = vst [vmem:[#allocation2 + $0x2a8] sm:$0xff] %v1592
      %1695 = vst [vmem:[#allocation2 + $0x2b0] sm:$0xff] %v1593
      %1696 = vst [vmem:[#allocation2 + $0x2b8] sm:$0xff] %v1594
      %1697 = vst [vmem:[#allocation2 + $0x2c0] sm:$0xff] %v1595
      %1698 = vst [vmem:[#allocation2 + $0x2c8] sm:$0xff] %v1596
      %1699 = vst [vmem:[#allocation2 + $0x2d0] sm:$0xff] %v1597
      %1700 = vst [vmem:[#allocation2 + $0x2d8] sm:$0xff] %v1598
      %1701 = vst [vmem:[#allocation2 + $0x2e0] sm:$0xff] %v1599
      %1702 = vst [vmem:[#allocation2 + $0x2e8] sm:$0xff] %v1600
      %1703 = vst [vmem:[#allocation2 + $0x2f0] sm:$0xff] %v1601
      %1704 = vst [vmem:[#allocation2 + $0x2f8] sm:$0xff] %v1602
      %1705 = vst [vmem:[#allocation2 + $0x300] sm:$0xff] %v1603
      %1706 = vst [vmem:[#allocation2 + $0x308] sm:$0xff] %v1604
      %1707 = vst [vmem:[#allocation2 + $0x310] sm:$0xff] %v1605
      %1708 = vst [vmem:[#allocation2 + $0x318] sm:$0xff] %v1606
      %1709 = vst [vmem:[#allocation2 + $0x320] sm:$0xff] %v1607
      %1710 = vst [vmem:[#allocation2 + $0x328] sm:$0xff] %v1608
      %v1711 = vld [vmem:[%s2] sm:$0x1]
      %v1712 = vld [vmem:[#allocation2] sm:$0xff]
      %v1713 = vld [vmem:[#allocation2 + $0x10] sm:$0xff]
      %v1714 = vld [vmem:[#allocation2 + $0x20] sm:$0x1]
      %v1715 = vld [vmem:[#allocation2 + $0x8] sm:$0xfe]
      %v1716 = vld [vmem:[#allocation2 + $0x18] sm:$0xff]
      %v1717 = vld [vmem:[#allocation2 + $0x28] sm:$0x3]
      %vm1721 = vcmask 1046528
      %v1722 = vrot.slane %v1715, 1
      %v1723 = vrot.slane %v1716, 1
      %v1724 = vsel %vm1721, %v1722, %v1723
      %v1725 = vrot.slane %v1717, 1
      %v1726 = vsel %vm1721, %v1723, %v1725
      %v1730 = vadd.f32 %v1712, %v1724
      %v1731 = vadd.f32 %v1713, %v1726
      %v1732 = vadd.f32 %v1714, %v1725
      %v1734 = vlaneseq
      %v1735 = vshrl.u32 %v1734, 7
      %v1736 = vsub.s32 0, %v1735
      %v1737 = vrot.slane %v1711, %v1736
      %v1739 = vadd.f32 %v1730, %v1737
      %v1740 = vadd.f32 %v1731, %v1737
      %v1741 = vadd.f32 %v1732, %v1737
      %vm1742 = vcmp.ge.f32.partialorder %v1739, 0.0
      %vm1743 = vcmp.ge.f32.partialorder %v1740, 0.0
      %vm1744 = vcmp.ge.f32.partialorder %v1741, 0.0
      %v1745 = vmul.f32 %v1739, 0.2
      %v1746 = vmul.f32 %v1740, 0.2
      %v1747 = vmul.f32 %v1741, 0.2
      %v1748 = vsel %vm1742, %v1739, %v1745
      %v1749 = vsel %vm1743, %v1740, %v1746
      %v1750 = vsel %vm1744, %v1741, %v1747
      %v1751 = vpack.c.bf16 %v1749, %v1748
      %v1752 = vpack.c.bf16 %v1750, %v1750
      %v1755 = vunpack.c.l.b16 %v1751
      %v1756 = vunpack.c.h.b16 %v1751
      %v1757 = vunpack.c.l.b16 %v1752
      %v1758 = vpack.c.b16 %v1755, %v1755
      %v1759 = vpack.c.b16 %v1756, %v1756
      %v1760 = vpack.c.b16 %v1757, %v1757
      %1764 = vst [vmem:[%s170] sm:$0xf] %v1758
      %1765 = vst [vmem:[%s170 + $0x4] sm:$0xf] %v1759
      %vm1766 = vcmask 1040384
      %vm1767 = vsmask.f32 256
      %vm1768 = vmand %vm1766, %vm1767
      %v1769 = vld [vmem:[%s170 + $0x8] sm:$0x1]
      %v1770 = vsel %vm1768, %v1760, %v1769
      %1771 = vst [vmem:[%s170 + $0x8] sm:$0x1] %v1770
      %v1772 = vld [vmem:[#allocation2 + $0x30] sm:$0xff]
      %v1773 = vld [vmem:[#allocation2 + $0x40] sm:$0xff]
      %v1774 = vld [vmem:[#allocation2 + $0x50] sm:$0x1]
      %v1775 = vld [vmem:[#allocation2 + $0x38] sm:$0xfe]
      %v1776 = vld [vmem:[#allocation2 + $0x48] sm:$0xff]
      %v1777 = vld [vmem:[#allocation2 + $0x58] sm:$0x3]
      %v1781 = vrot.slane %v1775, 1
      %v1782 = vrot.slane %v1776, 1
      %v1783 = vsel %vm1721, %v1781, %v1782
      %v1784 = vrot.slane %v1777, 1
      %v1785 = vsel %vm1721, %v1782, %v1784
      %v1789 = vadd.f32 %v1772, %v1783
      %v1790 = vadd.f32 %v1773, %v1785
      %v1791 = vadd.f32 %v1774, %v1784
      %v1792 = vadd.f32 %v1789, %v1737
      %v1793 = vadd.f32 %v1790, %v1737
      %v1794 = vadd.f32 %v1791, %v1737
      %vm1795 = vcmp.ge.f32.partialorder %v1792, 0.0
      %vm1796 = vcmp.ge.f32.partialorder %v1793, 0.0
      %vm1797 = vcmp.ge.f32.partialorder %v1794, 0.0
      %v1798 = vmul.f32 %v1792, 0.2
      %v1799 = vmul.f32 %v1793, 0.2
      %v1800 = vmul.f32 %v1794, 0.2
      %v1801 = vsel %vm1795, %v1792, %v1798
      %v1802 = vsel %vm1796, %v1793, %v1799
      %v1803 = vsel %vm1797, %v1794, %v1800
      %v1804 = vpack.c.bf16 %v1802, %v1801
      %v1805 = vpack.c.bf16 %v1803, %v1803
      %v1808 = vunpack.c.l.b16 %v1804
      %v1809 = vunpack.c.h.b16 %v1804
      %v1810 = vunpack.c.l.b16 %v1805
      %v1811 = vpack.c.b16 %v1808, %v1808
      %v1812 = vpack.c.b16 %v1809, %v1809
      %v1813 = vpack.c.b16 %v1810, %v1810
      %s1817 = scalar_lea.vmem %s170, 12
      %1818 = vst [vmem:[%s1817] sm:$0xf] %v1811
      %1819 = vst [vmem:[%s1817 + $0x4] sm:$0xf] %v1812
      %v1820 = vld [vmem:[%s1817 + $0x8] sm:$0x1]
      %v1821 = vsel %vm1768, %v1813, %v1820
      %1822 = vst [vmem:[%s1817 + $0x8] sm:$0x1] %v1821
      %v1823 = vld [vmem:[#allocation2 + $0x60] sm:$0xff]
      %v1824 = vld [vmem:[#allocation2 + $0x70] sm:$0xff]
      %v1825 = vld [vmem:[#allocation2 + $0x80] sm:$0x1]
      %v1826 = vld [vmem:[#allocation2 + $0x68] sm:$0xfe]
      %v1827 = vld [vmem:[#allocation2 + $0x78] sm:$0xff]
      %v1828 = vld [vmem:[#allocation2 + $0x88] sm:$0x3]
      %v1832 = vrot.slane %v1826, 1
      %v1833 = vrot.slane %v1827, 1
      %v1834 = vsel %vm1721, %v1832, %v1833
      %v1835 = vrot.slane %v1828, 1
      %v1836 = vsel %vm1721, %v1833, %v1835
      %v1840 = vadd.f32 %v1823, %v1834
      %v1841 = vadd.f32 %v1824, %v1836
      %v1842 = vadd.f32 %v1825, %v1835
      %v1843 = vadd.f32 %v1840, %v1737
      %v1844 = vadd.f32 %v1841, %v1737
      %v1845 = vadd.f32 %v1842, %v1737
      %vm1846 = vcmp.ge.f32.partialorder %v1843, 0.0
      %vm1847 = vcmp.ge.f32.partialorder %v1844, 0.0
      %vm1848 = vcmp.ge.f32.partialorder %v1845, 0.0
      %v1849 = vmul.f32 %v1843, 0.2
      %v1850 = vmul.f32 %v1844, 0.2
      %v1851 = vmul.f32 %v1845, 0.2
      %v1852 = vsel %vm1846, %v1843, %v1849
      %v1853 = vsel %vm1847, %v1844, %v1850
      %v1854 = vsel %vm1848, %v1845, %v1851
      %v1855 = vpack.c.bf16 %v1853, %v1852
      %v1856 = vpack.c.bf16 %v1854, %v1854
      %v1859 = vunpack.c.l.b16 %v1855
      %v1860 = vunpack.c.h.b16 %v1855
      %v1861 = vunpack.c.l.b16 %v1856
      %v1862 = vpack.c.b16 %v1859, %v1859
      %v1863 = vpack.c.b16 %v1860, %v1860
      %v1864 = vpack.c.b16 %v1861, %v1861
      %s1868 = scalar_lea.vmem %s170, 24
      %1869 = vst [vmem:[%s1868] sm:$0xf] %v1862
      %1870 = vst [vmem:[%s1868 + $0x4] sm:$0xf] %v1863
      %v1871 = vld [vmem:[%s1868 + $0x8] sm:$0x1]
      %v1872 = vsel %vm1768, %v1864, %v1871
      %1873 = vst [vmem:[%s1868 + $0x8] sm:$0x1] %v1872
      %v1874 = vld [vmem:[#allocation2 + $0x90] sm:$0xff]
      %v1875 = vld [vmem:[#allocation2 + $0xa0] sm:$0xff]
      %v1876 = vld [vmem:[#allocation2 + $0xb0] sm:$0x1]
      %v1877 = vld [vmem:[#allocation2 + $0x98] sm:$0xfe]
      %v1878 = vld [vmem:[#allocation2 + $0xa8] sm:$0xff]
      %v1879 = vld [vmem:[#allocation2 + $0xb8] sm:$0x3]
      %v1883 = vrot.slane %v1877, 1
      %v1884 = vrot.slane %v1878, 1
      %v1885 = vsel %vm1721, %v1883, %v1884
      %v1886 = vrot.slane %v1879, 1
      %v1887 = vsel %vm1721, %v1884, %v1886
      %v1891 = vadd.f32 %v1874, %v1885
      %v1892 = vadd.f32 %v1875, %v1887
      %v1893 = vadd.f32 %v1876, %v1886
      %v1894 = vadd.f32 %v1891, %v1737
      %v1895 = vadd.f32 %v1892, %v1737
      %v1896 = vadd.f32 %v1893, %v1737
      %vm1897 = vcmp.ge.f32.partialorder %v1894, 0.0
      %vm1898 = vcmp.ge.f32.partialorder %v1895, 0.0
      %vm1899 = vcmp.ge.f32.partialorder %v1896, 0.0
      %v1900 = vmul.f32 %v1894, 0.2
      %v1901 = vmul.f32 %v1895, 0.2
      %v1902 = vmul.f32 %v1896, 0.2
      %v1903 = vsel %vm1897, %v1894, %v1900
      %v1904 = vsel %vm1898, %v1895, %v1901
      %v1905 = vsel %vm1899, %v1896, %v1902
      %v1906 = vpack.c.bf16 %v1904, %v1903
      %v1907 = vpack.c.bf16 %v1905, %v1905
      %v1910 = vunpack.c.l.b16 %v1906
      %v1911 = vunpack.c.h.b16 %v1906
      %v1912 = vunpack.c.l.b16 %v1907
      %v1913 = vpack.c.b16 %v1910, %v1910
      %v1914 = vpack.c.b16 %v1911, %v1911
      %v1915 = vpack.c.b16 %v1912, %v1912
      %s1919 = scalar_lea.vmem %s170, 36
      %1920 = vst [vmem:[%s1919] sm:$0xf] %v1913
      %1921 = vst [vmem:[%s1919 + $0x4] sm:$0xf] %v1914
      %v1922 = vld [vmem:[%s1919 + $0x8] sm:$0x1]
      %v1923 = vsel %vm1768, %v1915, %v1922
      %1924 = vst [vmem:[%s1919 + $0x8] sm:$0x1] %v1923
      %v1925 = vld [vmem:[#allocation2 + $0xc0] sm:$0xff]
      %v1926 = vld [vmem:[#allocation2 + $0xd0] sm:$0xff]
      %v1927 = vld [vmem:[#allocation2 + $0xe0] sm:$0x1]
      %v1928 = vld [vmem:[#allocation2 + $0xc8] sm:$0xfe]
      %v1929 = vld [vmem:[#allocation2 + $0xd8] sm:$0xff]
      %v1930 = vld [vmem:[#allocation2 + $0xe8] sm:$0x3]
      %v1934 = vrot.slane %v1928, 1
      %v1935 = vrot.slane %v1929, 1
      %v1936 = vsel %vm1721, %v1934, %v1935
      %v1937 = vrot.slane %v1930, 1
      %v1938 = vsel %vm1721, %v1935, %v1937
      %v1942 = vadd.f32 %v1925, %v1936
      %v1943 = vadd.f32 %v1926, %v1938
      %v1944 = vadd.f32 %v1927, %v1937
      %v1945 = vadd.f32 %v1942, %v1737
      %v1946 = vadd.f32 %v1943, %v1737
      %v1947 = vadd.f32 %v1944, %v1737
      %vm1948 = vcmp.ge.f32.partialorder %v1945, 0.0
      %vm1949 = vcmp.ge.f32.partialorder %v1946, 0.0
      %vm1950 = vcmp.ge.f32.partialorder %v1947, 0.0
      %v1951 = vmul.f32 %v1945, 0.2
      %v1952 = vmul.f32 %v1946, 0.2
      %v1953 = vmul.f32 %v1947, 0.2
      %v1954 = vsel %vm1948, %v1945, %v1951
      %v1955 = vsel %vm1949, %v1946, %v1952
      %v1956 = vsel %vm1950, %v1947, %v1953
      %v1957 = vpack.c.bf16 %v1955, %v1954
      %v1958 = vpack.c.bf16 %v1956, %v1956
      %v1961 = vunpack.c.l.b16 %v1957
      %v1962 = vunpack.c.h.b16 %v1957
      %v1963 = vunpack.c.l.b16 %v1958
      %v1964 = vpack.c.b16 %v1961, %v1961
      %v1965 = vpack.c.b16 %v1962, %v1962
      %v1966 = vpack.c.b16 %v1963, %v1963
      %s1970 = scalar_lea.vmem %s170, 48
      %1971 = vst [vmem:[%s1970] sm:$0xf] %v1964
      %1972 = vst [vmem:[%s1970 + $0x4] sm:$0xf] %v1965
      %v1973 = vld [vmem:[%s1970 + $0x8] sm:$0x1]
      %v1974 = vsel %vm1768, %v1966, %v1973
      %1975 = vst [vmem:[%s1970 + $0x8] sm:$0x1] %v1974
      %v1976 = vld [vmem:[#allocation2 + $0xf0] sm:$0xff]
      %v1977 = vld [vmem:[#allocation2 + $0x100] sm:$0xff]
      %v1978 = vld [vmem:[#allocation2 + $0x110] sm:$0x1]
      %v1979 = vld [vmem:[#allocation2 + $0xf8] sm:$0xfe]
      %v1980 = vld [vmem:[#allocation2 + $0x108] sm:$0xff]
      %v1981 = vld [vmem:[#allocation2 + $0x118] sm:$0x3]
      %v1985 = vrot.slane %v1979, 1
      %v1986 = vrot.slane %v1980, 1
      %v1987 = vsel %vm1721, %v1985, %v1986
      %v1988 = vrot.slane %v1981, 1
      %v1989 = vsel %vm1721, %v1986, %v1988
      %v1993 = vadd.f32 %v1976, %v1987
      %v1994 = vadd.f32 %v1977, %v1989
      %v1995 = vadd.f32 %v1978, %v1988
      %v1996 = vadd.f32 %v1993, %v1737
      %v1997 = vadd.f32 %v1994, %v1737
      %v1998 = vadd.f32 %v1995, %v1737
      %vm1999 = vcmp.ge.f32.partialorder %v1996, 0.0
      %vm2000 = vcmp.ge.f32.partialorder %v1997, 0.0
      %vm2001 = vcmp.ge.f32.partialorder %v1998, 0.0
      %v2002 = vmul.f32 %v1996, 0.2
      %v2003 = vmul.f32 %v1997, 0.2
      %v2004 = vmul.f32 %v1998, 0.2
      %v2005 = vsel %vm1999, %v1996, %v2002
      %v2006 = vsel %vm2000, %v1997, %v2003
      %v2007 = vsel %vm2001, %v1998, %v2004
      %v2008 = vpack.c.bf16 %v2006, %v2005
      %v2009 = vpack.c.bf16 %v2007, %v2007
      %v2012 = vunpack.c.l.b16 %v2008
      %v2013 = vunpack.c.h.b16 %v2008
      %v2014 = vunpack.c.l.b16 %v2009
      %v2015 = vpack.c.b16 %v2012, %v2012
      %v2016 = vpack.c.b16 %v2013, %v2013
      %v2017 = vpack.c.b16 %v2014, %v2014
      %s2021 = scalar_lea.vmem %s170, 60
      %2022 = vst [vmem:[%s2021] sm:$0xf] %v2015
      %2023 = vst [vmem:[%s2021 + $0x4] sm:$0xf] %v2016
      %v2024 = vld [vmem:[%s2021 + $0x8] sm:$0x1]
      %v2025 = vsel %vm1768, %v2017, %v2024
      %2026 = vst [vmem:[%s2021 + $0x8] sm:$0x1] %v2025
      %v2027 = vld [vmem:[#allocation2 + $0x120] sm:$0xff]
      %v2028 = vld [vmem:[#allocation2 + $0x130] sm:$0xff]
      %v2029 = vld [vmem:[#allocation2 + $0x140] sm:$0x1]
      %v2030 = vld [vmem:[#allocation2 + $0x128] sm:$0xfe]
      %v2031 = vld [vmem:[#allocation2 + $0x138] sm:$0xff]
      %v2032 = vld [vmem:[#allocation2 + $0x148] sm:$0x3]
      %v2036 = vrot.slane %v2030, 1
      %v2037 = vrot.slane %v2031, 1
      %v2038 = vsel %vm1721, %v2036, %v2037
      %v2039 = vrot.slane %v2032, 1
      %v2040 = vsel %vm1721, %v2037, %v2039
      %v2044 = vadd.f32 %v2027, %v2038
      %v2045 = vadd.f32 %v2028, %v2040
      %v2046 = vadd.f32 %v2029, %v2039
      %v2047 = vadd.f32 %v2044, %v1737
      %v2048 = vadd.f32 %v2045, %v1737
      %v2049 = vadd.f32 %v2046, %v1737
      %vm2050 = vcmp.ge.f32.partialorder %v2047, 0.0
      %vm2051 = vcmp.ge.f32.partialorder %v2048, 0.0
      %vm2052 = vcmp.ge.f32.partialorder %v2049, 0.0
      %v2053 = vmul.f32 %v2047, 0.2
      %v2054 = vmul.f32 %v2048, 0.2
      %v2055 = vmul.f32 %v2049, 0.2
      %v2056 = vsel %vm2050, %v2047, %v2053
      %v2057 = vsel %vm2051, %v2048, %v2054
      %v2058 = vsel %vm2052, %v2049, %v2055
      %v2059 = vpack.c.bf16 %v2057, %v2056
      %v2060 = vpack.c.bf16 %v2058, %v2058
      %v2063 = vunpack.c.l.b16 %v2059
      %v2064 = vunpack.c.h.b16 %v2059
      %v2065 = vunpack.c.l.b16 %v2060
      %v2066 = vpack.c.b16 %v2063, %v2063
      %v2067 = vpack.c.b16 %v2064, %v2064
      %v2068 = vpack.c.b16 %v2065, %v2065
      %s2072 = scalar_lea.vmem %s170, 72
      %2073 = vst [vmem:[%s2072] sm:$0xf] %v2066
      %2074 = vst [vmem:[%s2072 + $0x4] sm:$0xf] %v2067
      %v2075 = vld [vmem:[%s2072 + $0x8] sm:$0x1]
      %v2076 = vsel %vm1768, %v2068, %v2075
      %2077 = vst [vmem:[%s2072 + $0x8] sm:$0x1] %v2076
      %v2078 = vld [vmem:[#allocation2 + $0x150] sm:$0xff]
      %v2079 = vld [vmem:[#allocation2 + $0x160] sm:$0xff]
      %v2080 = vld [vmem:[#allocation2 + $0x170] sm:$0x1]
      %v2081 = vld [vmem:[#allocation2 + $0x158] sm:$0xfe]
      %v2082 = vld [vmem:[#allocation2 + $0x168] sm:$0xff]
      %v2083 = vld [vmem:[#allocation2 + $0x178] sm:$0x3]
      %v2087 = vrot.slane %v2081, 1
      %v2088 = vrot.slane %v2082, 1
      %v2089 = vsel %vm1721, %v2087, %v2088
      %v2090 = vrot.slane %v2083, 1
      %v2091 = vsel %vm1721, %v2088, %v2090
      %v2095 = vadd.f32 %v2078, %v2089
      %v2096 = vadd.f32 %v2079, %v2091
      %v2097 = vadd.f32 %v2080, %v2090
      %v2098 = vadd.f32 %v2095, %v1737
      %v2099 = vadd.f32 %v2096, %v1737
      %v2100 = vadd.f32 %v2097, %v1737
      %vm2101 = vcmp.ge.f32.partialorder %v2098, 0.0
      %vm2102 = vcmp.ge.f32.partialorder %v2099, 0.0
      %vm2103 = vcmp.ge.f32.partialorder %v2100, 0.0
      %v2104 = vmul.f32 %v2098, 0.2
      %v2105 = vmul.f32 %v2099, 0.2
      %v2106 = vmul.f32 %v2100, 0.2
      %v2107 = vsel %vm2101, %v2098, %v2104
      %v2108 = vsel %vm2102, %v2099, %v2105
      %v2109 = vsel %vm2103, %v2100, %v2106
      %v2110 = vpack.c.bf16 %v2108, %v2107
      %v2111 = vpack.c.bf16 %v2109, %v2109
      %v2114 = vunpack.c.l.b16 %v2110
      %v2115 = vunpack.c.h.b16 %v2110
      %v2116 = vunpack.c.l.b16 %v2111
      %v2117 = vpack.c.b16 %v2114, %v2114
      %v2118 = vpack.c.b16 %v2115, %v2115
      %v2119 = vpack.c.b16 %v2116, %v2116
      %s2123 = scalar_lea.vmem %s170, 84
      %2124 = vst [vmem:[%s2123] sm:$0xf] %v2117
      %2125 = vst [vmem:[%s2123 + $0x4] sm:$0xf] %v2118
      %v2126 = vld [vmem:[%s2123 + $0x8] sm:$0x1]
      %v2127 = vsel %vm1768, %v2119, %v2126
      %2128 = vst [vmem:[%s2123 + $0x8] sm:$0x1] %v2127
      %v2129 = vld [vmem:[#allocation2 + $0x180] sm:$0xff]
      %v2130 = vld [vmem:[#allocation2 + $0x190] sm:$0xff]
      %v2131 = vld [vmem:[#allocation2 + $0x1a0] sm:$0x1]
      %v2132 = vld [vmem:[#allocation2 + $0x188] sm:$0xfe]
      %v2133 = vld [vmem:[#allocation2 + $0x198] sm:$0xff]
      %v2134 = vld [vmem:[#allocation2 + $0x1a8] sm:$0x3]
      %v2138 = vrot.slane %v2132, 1
      %v2139 = vrot.slane %v2133, 1
      %v2140 = vsel %vm1721, %v2138, %v2139
      %v2141 = vrot.slane %v2134, 1
      %v2142 = vsel %vm1721, %v2139, %v2141
      %v2146 = vadd.f32 %v2129, %v2140
      %v2147 = vadd.f32 %v2130, %v2142
      %v2148 = vadd.f32 %v2131, %v2141
      %v2149 = vadd.f32 %v2146, %v1737
      %v2150 = vadd.f32 %v2147, %v1737
      %v2151 = vadd.f32 %v2148, %v1737
      %vm2152 = vcmp.ge.f32.partialorder %v2149, 0.0
      %vm2153 = vcmp.ge.f32.partialorder %v2150, 0.0
      %vm2154 = vcmp.ge.f32.partialorder %v2151, 0.0
      %v2155 = vmul.f32 %v2149, 0.2
      %v2156 = vmul.f32 %v2150, 0.2
      %v2157 = vmul.f32 %v2151, 0.2
      %v2158 = vsel %vm2152, %v2149, %v2155
      %v2159 = vsel %vm2153, %v2150, %v2156
      %v2160 = vsel %vm2154, %v2151, %v2157
      %v2161 = vpack.c.bf16 %v2159, %v2158
      %v2162 = vpack.c.bf16 %v2160, %v2160
      %v2165 = vunpack.c.l.b16 %v2161
      %v2166 = vunpack.c.h.b16 %v2161
      %v2167 = vunpack.c.l.b16 %v2162
      %v2168 = vpack.c.b16 %v2165, %v2165
      %v2169 = vpack.c.b16 %v2166, %v2166
      %v2170 = vpack.c.b16 %v2167, %v2167
      %s2174 = scalar_lea.vmem %s170, 96
      %2175 = vst [vmem:[%s2174] sm:$0xf] %v2168
      %2176 = vst [vmem:[%s2174 + $0x4] sm:$0xf] %v2169
      %v2177 = vld [vmem:[%s2174 + $0x8] sm:$0x1]
      %v2178 = vsel %vm1768, %v2170, %v2177
      %2179 = vst [vmem:[%s2174 + $0x8] sm:$0x1] %v2178
      %v2180 = vld [vmem:[#allocation2 + $0x1b0] sm:$0xff]
      %v2181 = vld [vmem:[#allocation2 + $0x1c0] sm:$0xff]
      %v2182 = vld [vmem:[#allocation2 + $0x1d0] sm:$0x1]
      %v2183 = vld [vmem:[#allocation2 + $0x1b8] sm:$0xfe]
      %v2184 = vld [vmem:[#allocation2 + $0x1c8] sm:$0xff]
      %v2185 = vld [vmem:[#allocation2 + $0x1d8] sm:$0x3]
      %v2189 = vrot.slane %v2183, 1
      %v2190 = vrot.slane %v2184, 1
      %v2191 = vsel %vm1721, %v2189, %v2190
      %v2192 = vrot.slane %v2185, 1
      %v2193 = vsel %vm1721, %v2190, %v2192
      %v2197 = vadd.f32 %v2180, %v2191
      %v2198 = vadd.f32 %v2181, %v2193
      %v2199 = vadd.f32 %v2182, %v2192
      %v2200 = vadd.f32 %v2197, %v1737
      %v2201 = vadd.f32 %v2198, %v1737
      %v2202 = vadd.f32 %v2199, %v1737
      %vm2203 = vcmp.ge.f32.partialorder %v2200, 0.0
      %vm2204 = vcmp.ge.f32.partialorder %v2201, 0.0
      %vm2205 = vcmp.ge.f32.partialorder %v2202, 0.0
      %v2206 = vmul.f32 %v2200, 0.2
      %v2207 = vmul.f32 %v2201, 0.2
      %v2208 = vmul.f32 %v2202, 0.2
      %v2209 = vsel %vm2203, %v2200, %v2206
      %v2210 = vsel %vm2204, %v2201, %v2207
      %v2211 = vsel %vm2205, %v2202, %v2208
      %v2212 = vpack.c.bf16 %v2210, %v2209
      %v2213 = vpack.c.bf16 %v2211, %v2211
      %v2216 = vunpack.c.l.b16 %v2212
      %v2217 = vunpack.c.h.b16 %v2212
      %v2218 = vunpack.c.l.b16 %v2213
      %v2219 = vpack.c.b16 %v2216, %v2216
      %v2220 = vpack.c.b16 %v2217, %v2217
      %v2221 = vpack.c.b16 %v2218, %v2218
      %s2225 = scalar_lea.vmem %s170, 108
      %2226 = vst [vmem:[%s2225] sm:$0xf] %v2219
      %2227 = vst [vmem:[%s2225 + $0x4] sm:$0xf] %v2220
      %v2228 = vld [vmem:[%s2225 + $0x8] sm:$0x1]
      %v2229 = vsel %vm1768, %v2221, %v2228
      %2230 = vst [vmem:[%s2225 + $0x8] sm:$0x1] %v2229
      %v2231 = vld [vmem:[#allocation2 + $0x1e0] sm:$0xff]
      %v2232 = vld [vmem:[#allocation2 + $0x1f0] sm:$0xff]
      %v2233 = vld [vmem:[#allocation2 + $0x200] sm:$0x1]
      %v2234 = vld [vmem:[#allocation2 + $0x1e8] sm:$0xfe]
      %v2235 = vld [vmem:[#allocation2 + $0x1f8] sm:$0xff]
      %v2236 = vld [vmem:[#allocation2 + $0x208] sm:$0x3]
      %v2240 = vrot.slane %v2234, 1
      %v2241 = vrot.slane %v2235, 1
      %v2242 = vsel %vm1721, %v2240, %v2241
      %v2243 = vrot.slane %v2236, 1
      %v2244 = vsel %vm1721, %v2241, %v2243
      %v2248 = vadd.f32 %v2231, %v2242
      %v2249 = vadd.f32 %v2232, %v2244
      %v2250 = vadd.f32 %v2233, %v2243
      %v2251 = vadd.f32 %v2248, %v1737
      %v2252 = vadd.f32 %v2249, %v1737
      %v2253 = vadd.f32 %v2250, %v1737
      %vm2254 = vcmp.ge.f32.partialorder %v2251, 0.0
      %vm2255 = vcmp.ge.f32.partialorder %v2252, 0.0
      %vm2256 = vcmp.ge.f32.partialorder %v2253, 0.0
      %v2257 = vmul.f32 %v2251, 0.2
      %v2258 = vmul.f32 %v2252, 0.2
      %v2259 = vmul.f32 %v2253, 0.2
      %v2260 = vsel %vm2254, %v2251, %v2257
      %v2261 = vsel %vm2255, %v2252, %v2258
      %v2262 = vsel %vm2256, %v2253, %v2259
      %v2263 = vpack.c.bf16 %v2261, %v2260
      %v2264 = vpack.c.bf16 %v2262, %v2262
      %v2267 = vunpack.c.l.b16 %v2263
      %v2268 = vunpack.c.h.b16 %v2263
      %v2269 = vunpack.c.l.b16 %v2264
      %v2270 = vpack.c.b16 %v2267, %v2267
      %v2271 = vpack.c.b16 %v2268, %v2268
      %v2272 = vpack.c.b16 %v2269, %v2269
      %s2276 = scalar_lea.vmem %s170, 120
      %2277 = vst [vmem:[%s2276] sm:$0xf] %v2270
      %2278 = vst [vmem:[%s2276 + $0x4] sm:$0xf] %v2271
      %v2279 = vld [vmem:[%s2276 + $0x8] sm:$0x1]
      %v2280 = vsel %vm1768, %v2272, %v2279
      %2281 = vst [vmem:[%s2276 + $0x8] sm:$0x1] %v2280
      %v2282 = vld [vmem:[#allocation2 + $0x210] sm:$0xff]
      %v2283 = vld [vmem:[#allocation2 + $0x220] sm:$0xff]
      %v2284 = vld [vmem:[#allocation2 + $0x230] sm:$0x1]
      %v2285 = vld [vmem:[#allocation2 + $0x218] sm:$0xfe]
      %v2286 = vld [vmem:[#allocation2 + $0x228] sm:$0xff]
      %v2287 = vld [vmem:[#allocation2 + $0x238] sm:$0x3]
      %v2291 = vrot.slane %v2285, 1
      %v2292 = vrot.slane %v2286, 1
      %v2293 = vsel %vm1721, %v2291, %v2292
      %v2294 = vrot.slane %v2287, 1
      %v2295 = vsel %vm1721, %v2292, %v2294
      %v2299 = vadd.f32 %v2282, %v2293
      %v2300 = vadd.f32 %v2283, %v2295
      %v2301 = vadd.f32 %v2284, %v2294
      %v2302 = vadd.f32 %v2299, %v1737
      %v2303 = vadd.f32 %v2300, %v1737
      %v2304 = vadd.f32 %v2301, %v1737
      %vm2305 = vcmp.ge.f32.partialorder %v2302, 0.0
      %vm2306 = vcmp.ge.f32.partialorder %v2303, 0.0
      %vm2307 = vcmp.ge.f32.partialorder %v2304, 0.0
      %v2308 = vmul.f32 %v2302, 0.2
      %v2309 = vmul.f32 %v2303, 0.2
      %v2310 = vmul.f32 %v2304, 0.2
      %v2311 = vsel %vm2305, %v2302, %v2308
      %v2312 = vsel %vm2306, %v2303, %v2309
      %v2313 = vsel %vm2307, %v2304, %v2310
      %v2314 = vpack.c.bf16 %v2312, %v2311
      %v2315 = vpack.c.bf16 %v2313, %v2313
      %v2318 = vunpack.c.l.b16 %v2314
      %v2319 = vunpack.c.h.b16 %v2314
      %v2320 = vunpack.c.l.b16 %v2315
      %v2321 = vpack.c.b16 %v2318, %v2318
      %v2322 = vpack.c.b16 %v2319, %v2319
      %v2323 = vpack.c.b16 %v2320, %v2320
      %s2327 = scalar_lea.vmem %s170, 132
      %2328 = vst [vmem:[%s2327] sm:$0xf] %v2321
      %2329 = vst [vmem:[%s2327 + $0x4] sm:$0xf] %v2322
      %v2330 = vld [vmem:[%s2327 + $0x8] sm:$0x1]
      %v2331 = vsel %vm1768, %v2323, %v2330
      %2332 = vst [vmem:[%s2327 + $0x8] sm:$0x1] %v2331
      %v2333 = vld [vmem:[#allocation2 + $0x240] sm:$0xff]
      %v2334 = vld [vmem:[#allocation2 + $0x250] sm:$0xff]
      %v2335 = vld [vmem:[#allocation2 + $0x260] sm:$0x1]
      %v2336 = vld [vmem:[#allocation2 + $0x248] sm:$0xfe]
      %v2337 = vld [vmem:[#allocation2 + $0x258] sm:$0xff]
      %v2338 = vld [vmem:[#allocation2 + $0x268] sm:$0x3]
      %v2342 = vrot.slane %v2336, 1
      %v2343 = vrot.slane %v2337, 1
      %v2344 = vsel %vm1721, %v2342, %v2343
      %v2345 = vrot.slane %v2338, 1
      %v2346 = vsel %vm1721, %v2343, %v2345
      %v2350 = vadd.f32 %v2333, %v2344
      %v2351 = vadd.f32 %v2334, %v2346
      %v2352 = vadd.f32 %v2335, %v2345
      %v2353 = vadd.f32 %v2350, %v1737
      %v2354 = vadd.f32 %v2351, %v1737
      %v2355 = vadd.f32 %v2352, %v1737
      %vm2356 = vcmp.ge.f32.partialorder %v2353, 0.0
      %vm2357 = vcmp.ge.f32.partialorder %v2354, 0.0
      %vm2358 = vcmp.ge.f32.partialorder %v2355, 0.0
      %v2359 = vmul.f32 %v2353, 0.2
      %v2360 = vmul.f32 %v2354, 0.2
      %v2361 = vmul.f32 %v2355, 0.2
      %v2362 = vsel %vm2356, %v2353, %v2359
      %v2363 = vsel %vm2357, %v2354, %v2360
      %v2364 = vsel %vm2358, %v2355, %v2361
      %v2365 = vpack.c.bf16 %v2363, %v2362
      %v2366 = vpack.c.bf16 %v2364, %v2364
      %v2369 = vunpack.c.l.b16 %v2365
      %v2370 = vunpack.c.h.b16 %v2365
      %v2371 = vunpack.c.l.b16 %v2366
      %v2372 = vpack.c.b16 %v2369, %v2369
      %v2373 = vpack.c.b16 %v2370, %v2370
      %v2374 = vpack.c.b16 %v2371, %v2371
      %s2378 = scalar_lea.vmem %s170, 144
      %2379 = vst [vmem:[%s2378] sm:$0xf] %v2372
      %2380 = vst [vmem:[%s2378 + $0x4] sm:$0xf] %v2373
      %v2381 = vld [vmem:[%s2378 + $0x8] sm:$0x1]
      %v2382 = vsel %vm1768, %v2374, %v2381
      %2383 = vst [vmem:[%s2378 + $0x8] sm:$0x1] %v2382
      %v2384 = vld [vmem:[#allocation2 + $0x270] sm:$0xff]
      %v2385 = vld [vmem:[#allocation2 + $0x280] sm:$0xff]
      %v2386 = vld [vmem:[#allocation2 + $0x290] sm:$0x1]
      %v2387 = vld [vmem:[#allocation2 + $0x278] sm:$0xfe]
      %v2388 = vld [vmem:[#allocation2 + $0x288] sm:$0xff]
      %v2389 = vld [vmem:[#allocation2 + $0x298] sm:$0x3]
      %v2393 = vrot.slane %v2387, 1
      %v2394 = vrot.slane %v2388, 1
      %v2395 = vsel %vm1721, %v2393, %v2394
      %v2396 = vrot.slane %v2389, 1
      %v2397 = vsel %vm1721, %v2394, %v2396
      %v2401 = vadd.f32 %v2384, %v2395
      %v2402 = vadd.f32 %v2385, %v2397
      %v2403 = vadd.f32 %v2386, %v2396
      %v2404 = vadd.f32 %v2401, %v1737
      %v2405 = vadd.f32 %v2402, %v1737
      %v2406 = vadd.f32 %v2403, %v1737
      %vm2407 = vcmp.ge.f32.partialorder %v2404, 0.0
      %vm2408 = vcmp.ge.f32.partialorder %v2405, 0.0
      %vm2409 = vcmp.ge.f32.partialorder %v2406, 0.0
      %v2410 = vmul.f32 %v2404, 0.2
      %v2411 = vmul.f32 %v2405, 0.2
      %v2412 = vmul.f32 %v2406, 0.2
      %v2413 = vsel %vm2407, %v2404, %v2410
      %v2414 = vsel %vm2408, %v2405, %v2411
      %v2415 = vsel %vm2409, %v2406, %v2412
      %v2416 = vpack.c.bf16 %v2414, %v2413
      %v2417 = vpack.c.bf16 %v2415, %v2415
      %v2420 = vunpack.c.l.b16 %v2416
      %v2421 = vunpack.c.h.b16 %v2416
      %v2422 = vunpack.c.l.b16 %v2417
      %v2423 = vpack.c.b16 %v2420, %v2420
      %v2424 = vpack.c.b16 %v2421, %v2421
      %v2425 = vpack.c.b16 %v2422, %v2422
      %s2429 = scalar_lea.vmem %s170, 156
      %2430 = vst [vmem:[%s2429] sm:$0xf] %v2423
      %2431 = vst [vmem:[%s2429 + $0x4] sm:$0xf] %v2424
      %v2432 = vld [vmem:[%s2429 + $0x8] sm:$0x1]
      %v2433 = vsel %vm1768, %v2425, %v2432
      %2434 = vst [vmem:[%s2429 + $0x8] sm:$0x1] %v2433
      %v2435 = vld [vmem:[#allocation2 + $0x2a0] sm:$0xff]
      %v2436 = vld [vmem:[#allocation2 + $0x2b0] sm:$0xff]
      %v2437 = vld [vmem:[#allocation2 + $0x2c0] sm:$0x1]
      %v2438 = vld [vmem:[#allocation2 + $0x2a8] sm:$0xfe]
      %v2439 = vld [vmem:[#allocation2 + $0x2b8] sm:$0xff]
      %v2440 = vld [vmem:[#allocation2 + $0x2c8] sm:$0x3]
      %v2444 = vrot.slane %v2438, 1
      %v2445 = vrot.slane %v2439, 1
      %v2446 = vsel %vm1721, %v2444, %v2445
      %v2447 = vrot.slane %v2440, 1
      %v2448 = vsel %vm1721, %v2445, %v2447
      %v2452 = vadd.f32 %v2435, %v2446
      %v2453 = vadd.f32 %v2436, %v2448
      %v2454 = vadd.f32 %v2437, %v2447
      %v2455 = vadd.f32 %v2452, %v1737
      %v2456 = vadd.f32 %v2453, %v1737
      %v2457 = vadd.f32 %v2454, %v1737
      %vm2458 = vcmp.ge.f32.partialorder %v2455, 0.0
      %vm2459 = vcmp.ge.f32.partialorder %v2456, 0.0
      %vm2460 = vcmp.ge.f32.partialorder %v2457, 0.0
      %v2461 = vmul.f32 %v2455, 0.2
      %v2462 = vmul.f32 %v2456, 0.2
      %v2463 = vmul.f32 %v2457, 0.2
      %v2464 = vsel %vm2458, %v2455, %v2461
      %v2465 = vsel %vm2459, %v2456, %v2462
      %v2466 = vsel %vm2460, %v2457, %v2463
      %v2467 = vpack.c.bf16 %v2465, %v2464
      %v2468 = vpack.c.bf16 %v2466, %v2466
      %v2471 = vunpack.c.l.b16 %v2467
      %v2472 = vunpack.c.h.b16 %v2467
      %v2473 = vunpack.c.l.b16 %v2468
      %v2474 = vpack.c.b16 %v2471, %v2471
      %v2475 = vpack.c.b16 %v2472, %v2472
      %v2476 = vpack.c.b16 %v2473, %v2473
      %s2480 = scalar_lea.vmem %s170, 168
      %2481 = vst [vmem:[%s2480] sm:$0xf] %v2474
      %2482 = vst [vmem:[%s2480 + $0x4] sm:$0xf] %v2475
      %v2483 = vld [vmem:[%s2480 + $0x8] sm:$0x1]
      %v2484 = vsel %vm1768, %v2476, %v2483
      %2485 = vst [vmem:[%s2480 + $0x8] sm:$0x1] %v2484
      %v2486 = vld [vmem:[#allocation2 + $0x2d0] sm:$0xff]
      %v2487 = vld [vmem:[#allocation2 + $0x2e0] sm:$0xff]
      %v2488 = vld [vmem:[#allocation2 + $0x2f0] sm:$0x1]
      %v2489 = vld [vmem:[#allocation2 + $0x2d8] sm:$0xfe]
      %v2490 = vld [vmem:[#allocation2 + $0x2e8] sm:$0xff]
      %v2491 = vld [vmem:[#allocation2 + $0x2f8] sm:$0x3]
      %v2495 = vrot.slane %v2489, 1
      %v2496 = vrot.slane %v2490, 1
      %v2497 = vsel %vm1721, %v2495, %v2496
      %v2498 = vrot.slane %v2491, 1
      %v2499 = vsel %vm1721, %v2496, %v2498
      %v2503 = vadd.f32 %v2486, %v2497
      %v2504 = vadd.f32 %v2487, %v2499
      %v2505 = vadd.f32 %v2488, %v2498
      %v2506 = vadd.f32 %v2503, %v1737
      %v2507 = vadd.f32 %v2504, %v1737
      %v2508 = vadd.f32 %v2505, %v1737
      %vm2509 = vcmp.ge.f32.partialorder %v2506, 0.0
      %vm2510 = vcmp.ge.f32.partialorder %v2507, 0.0
      %vm2511 = vcmp.ge.f32.partialorder %v2508, 0.0
      %v2512 = vmul.f32 %v2506, 0.2
      %v2513 = vmul.f32 %v2507, 0.2
      %v2514 = vmul.f32 %v2508, 0.2
      %v2515 = vsel %vm2509, %v2506, %v2512
      %v2516 = vsel %vm2510, %v2507, %v2513
      %v2517 = vsel %vm2511, %v2508, %v2514
      %v2518 = vpack.c.bf16 %v2516, %v2515
      %v2519 = vpack.c.bf16 %v2517, %v2517
      %v2522 = vunpack.c.l.b16 %v2518
      %v2523 = vunpack.c.h.b16 %v2518
      %v2524 = vunpack.c.l.b16 %v2519
      %v2525 = vpack.c.b16 %v2522, %v2522
      %v2526 = vpack.c.b16 %v2523, %v2523
      %v2527 = vpack.c.b16 %v2524, %v2524
      %s2531 = scalar_lea.vmem %s170, 180
      %2532 = vst [vmem:[%s2531] sm:$0xf] %v2525
      %2533 = vst [vmem:[%s2531 + $0x4] sm:$0xf] %v2526
      %v2534 = vld [vmem:[%s2531 + $0x8] sm:$0x1]
      %v2535 = vsel %vm1768, %v2527, %v2534
      %2536 = vst [vmem:[%s2531 + $0x8] sm:$0x1] %v2535
      %v2537 = vld [vmem:[#allocation2 + $0x300] sm:$0xff]
      %v2538 = vld [vmem:[#allocation2 + $0x310] sm:$0xff]
      %v2539 = vld [vmem:[#allocation2 + $0x320] sm:$0x1]
      %v2540 = vld [vmem:[#allocation2 + $0x308] sm:$0xfe]
      %v2541 = vld [vmem:[#allocation2 + $0x318] sm:$0xff]
      %v2542 = vld [vmem:[#allocation2 + $0x328] sm:$0x3]
      %v2546 = vrot.slane %v2540, 1
      %v2547 = vrot.slane %v2541, 1
      %v2548 = vsel %vm1721, %v2546, %v2547
      %v2549 = vrot.slane %v2542, 1
      %v2550 = vsel %vm1721, %v2547, %v2549
      %v2554 = vadd.f32 %v2537, %v2548
      %v2555 = vadd.f32 %v2538, %v2550
      %v2556 = vadd.f32 %v2539, %v2549
      %v2557 = vadd.f32 %v2554, %v1737
      %v2558 = vadd.f32 %v2555, %v1737
      %v2559 = vadd.f32 %v2556, %v1737
      %vm2560 = vcmp.ge.f32.partialorder %v2557, 0.0
      %vm2561 = vcmp.ge.f32.partialorder %v2558, 0.0
      %vm2562 = vcmp.ge.f32.partialorder %v2559, 0.0
      %v2563 = vmul.f32 %v2557, 0.2
      %v2564 = vmul.f32 %v2558, 0.2
      %v2565 = vmul.f32 %v2559, 0.2
      %v2566 = vsel %vm2560, %v2557, %v2563
      %v2567 = vsel %vm2561, %v2558, %v2564
      %v2568 = vsel %vm2562, %v2559, %v2565
      %v2569 = vpack.c.bf16 %v2567, %v2566
      %v2570 = vpack.c.bf16 %v2568, %v2568
      %v2573 = vunpack.c.l.b16 %v2569
      %v2574 = vunpack.c.h.b16 %v2569
      %v2575 = vunpack.c.l.b16 %v2570
      %v2576 = vpack.c.b16 %v2573, %v2573
      %v2577 = vpack.c.b16 %v2574, %v2574
      %v2578 = vpack.c.b16 %v2575, %v2575
      %s2582 = scalar_lea.vmem %s170, 192
      %2583 = vst [vmem:[%s2582] sm:$0xf] %v2576
      %2584 = vst [vmem:[%s2582 + $0x4] sm:$0xf] %v2577
      %v2585 = vld [vmem:[%s2582 + $0x8] sm:$0x1]
      %v2586 = vsel %vm1768, %v2578, %v2585
      %2587 = vst [vmem:[%s2582 + $0x8] sm:$0x1] %v2586
      %p2588 = scmp.lt.s32.totalorder %s14, 1
      %s2589 = scalar_select %p2588, %s14, 1
      %s2590 = smul.addr %s2589, 51
      %s2591 = smul.addr %s2590, 4
      %s2592 = scalar_lea.vmem %s3, %s2591
      // Predicated region
      $region33: #{tpu_custom_call.1} parent=31 // pred_check
        %p2593 = pneg %p100
      $region34: #{tpu_custom_call.1} parent=31 // pred_check_branch
        %2595 = sbr.rel (%p2593) target = $region36
      $region35: #{tpu_custom_call.1} parent=31 // pred_region
        _
      $region36: #{tpu_custom_call.1} parent=31 // pred_fallthru
        _
    $region32: #{tpu_custom_call.1} parent=5 // pred_fallthru
      _
    %p2596 = scmp.le.s32.totalorder 2, %s9
    // Predicated region
    $region37: #{tpu_custom_call.1} parent=5 // pred_check
      %p2597 = pneg %p2596
    $region38: #{tpu_custom_call.1} parent=5 // pred_check_branch
      %2599 = sbr.rel (%p2597) target = $region40
    $region39: #{tpu_custom_call.1} parent=5 // pred_region
      %s2600 = ssub.s32 %s9, 2
      // Predicated region
      $region41: #{tpu_custom_call.1} parent=39 // pred_check
        %p2601 = pneg %p106
      $region42: #{tpu_custom_call.1} parent=39 // pred_check_branch
        %2603 = sbr.rel (%p2601) target = $region44
      $region43: #{tpu_custom_call.1} parent=39 // pred_region
        %p2604 = scmp.lt.s32.totalorder %s15, 1
        %s2605 = scalar_select %p2604, %s15, 1
        %s2606 = smul.addr %s2605, 51
        %s2607 = smul.addr %s2606, 4
        %s2608 = scalar_lea.vmem %s3, %s2607
      $region44: #{tpu_custom_call.1} parent=39 // pred_fallthru
        _
    $region40: #{tpu_custom_call.1} parent=5 // pred_fallthru
      _
  $region6: #{tpu_custom_call.1} parent=0 // loop_footer
    %s13 = sadd.s32 1, %s9
  $region7: #{tpu_custom_call.1} parent=0 // loop_footer_branch
    %8 = sbr.rel target = $region3
  $region8: #{tpu_custom_call.1} parent=0 // loop_exit
    _

</llo_original>
